<compile_context>
chip_gen: v7x
topology: tpu7x:2x2x1
jax: 0.10.0
libtpu: 0.0.40
codegen_flags: <defaults>
</compile_context>

<pallas_src>
import jax
import jax.numpy as jnp
import numpy as np
from jax.experimental import pallas as pl
from jax.experimental.pallas import tpu as pltpu  # noqa: F401  (see CORE_PARALLEL TODO)

# ----------------------------- configuration -------------------------------
B = 2        # per-input batch
S = 8        # sequence length
H = 32       # hidden size
F = 64       # FFN intermediate size
VOCAB = 50   # vocab size
LN_EPS = 1e-12
BC = 2 * B                  # context-tower batch (pos|neg); query tower zero-padded to BC
LANES = BC * H              # 128 — lane width of the weight slab and the output
assert LANES == 4 * H == 128

# weight-slab row layout (per tower, all rows 128 lanes wide)
ROW_QKVO = 0                # [wq*scale | wk | wv | wo]            rows [0, 32)
ROW_W1 = H                  # [w1 | 0]                             rows [32, 64)
ROW_W2 = 2 * H              # [w2 | 0]                             rows [64, 128)
ROW_WPW = 2 * H + F         # wp_wide = [wp|wp|wp|wp]              rows [128, 160)
ROW_SEL = ROW_WPW + H       # block-diag selection mask            rows [160, 164)
ROW_VEC = ROW_SEL + BC      # 11 bias / LN rows                    rows [164, 175)
N_VEC = 11
W_ROWS = ROW_VEC + N_VEC    # 175
W_ROWS_PAD = 176            # pad to sublane multiple

# activation-slab row layout (per tower, 32 lanes wide)
X_ROWS = BC * S + BC        # 36: BC*S token rows + BC additive-mask rows
X_ROWS_PAD = 40

# advisory cost estimate for XLA scheduling around the custom call
_FLOPS = 2 * (2 * (BC * S) * H * (2 * H)      # fused K|V projection
              + 2 * BC * H * H                # Q (CLS rows only)
              + 2 * BC * S * H * 2            # scores + context
              + 2 * BC * H * H                # Wo
              + 2 * BC * H * F * 2            # FFN
              + 2 * BC * H * LANES)           # widened pooler
_TRANS = 2 * (BC * S + BC + BC * F + LANES + 4 * BC)
_BYTES = (2 * X_ROWS_PAD * H + 2 * W_ROWS_PAD * LANES + 2 * LANES) * 4


# ------------------------------ Pallas kernel -------------------------------
def _layernorm(x, g, b):
    mu = jnp.mean(x, axis=-1, keepdims=True)
    var = jnp.mean((x - mu) ** 2, axis=-1, keepdims=True)
    return (x - mu) * jax.lax.rsqrt(var + LN_EPS) * g + b


def _gelu(x):
    c = jnp.sqrt(2.0 / jnp.pi).astype(x.dtype)
    return 0.5 * x * (1.0 + jnp.tanh(c * (x + 0.044715 * x * x * x)))


def biencoder_kernel(x_ref, w_ref, out_ref):
    # x_ref : (2, X_ROWS_PAD, H)    activations + additive attention mask rows
    # w_ref : (2, W_ROWS_PAD, 128)  packed per-tower weights (pre-stacked host-side)
    # out_ref: (2, BC*H)            lane-dense pooled outputs (one 128-lane row/tower)
    for t in range(2):                                   # static unroll over towers
        x2 = x_ref[t, 0:BC * S, :]                       # (BC*S, H) token states
        madd = x_ref[t, BC * S:BC * S + BC, 0:S]         # (BC, S)   additive mask

        def vec(i, width=H):
            return w_ref[t, ROW_VEC + i:ROW_VEC + i + 1, 0:width]   # (1, width)

        bq, bk, bv, bo = vec(0), vec(1), vec(2), vec(3)
        ln1g, ln1b = vec(4), vec(5)
        b1 = vec(6, F)
        b2, ln2g, ln2b = vec(7), vec(8), vec(9)
        bp_wide = vec(10, LANES)                         # (1, 128) tiled pooler bias

        # ---- fused K|V projection over all tokens (one MXU op) ------------
        kv = jnp.dot(x2, w_ref[t, ROW_QKVO:ROW_QKVO + H, H:3 * H],
                     preferred_element_type=jnp.float32)             # (BC*S, 2H)
        k = (kv[:, 0:H] + bk).reshape(BC, S, H)
        v = (kv[:, H:2 * H] + bv).reshape(BC, S, H)

        # ---- Q only for the CLS token (1/sqrt(H) folded into wq/bq) -------
        cls_x = x2.reshape(BC, S, H)[:, 0, :]                        # (BC, H)
        q = jnp.dot(cls_x, w_ref[t, ROW_QKVO:ROW_QKVO + H, 0:H],
                    preferred_element_type=jnp.float32) + bq         # (BC, H)

        # ---- attention for the CLS row only (contract over H, no transpose)
        scores = jnp.einsum("bqd,bkd->bqk", q[:, None, :], k,
                            preferred_element_type=jnp.float32)      # (BC, 1, S)
        scores = scores + madd[:, None, :]
        scores = scores - jnp.max(scores, axis=-1, keepdims=True)
        p = jnp.exp(scores)
        p = p * pl.reciprocal(jnp.sum(p, axis=-1, keepdims=True), approx=True)
        ctx = jnp.einsum("bqk,bkd->bqd", p, v,
                         preferred_element_type=jnp.float32)[:, 0, :]  # (BC, H)

        attn_out = jnp.dot(ctx, w_ref[t, ROW_QKVO:ROW_QKVO + H, 3 * H:4 * H],
                           preferred_element_type=jnp.float32) + bo  # (BC, H)
        h = _layernorm(cls_x + attn_out, ln1g, ln1b)

        # ---- feed-forward on the BC CLS rows only --------------------------
        ff = _gelu(jnp.dot(h, w_ref[t, ROW_W1:ROW_W1 + H, 0:F],
                           preferred_element_type=jnp.float32) + b1) # (BC, F)
        ff = jnp.dot(ff, w_ref[t, ROW_W2:ROW_W2 + F, 0:H],
                     preferred_element_type=jnp.float32) + b2        # (BC, H)
        h2 = _layernorm(h + ff, ln2g, ln2b)

        # ---- pooler fused with the lane-dense repack ------------------------
        # wp_wide = [wp|wp|wp|wp]; sel is block-diagonal, so the sublane sum
        # places sequence b's pooled vector in lanes [b*H, (b+1)*H).
        tw = jnp.dot(h2, w_ref[t, ROW_WPW:ROW_WPW + H, :],
                     preferred_element_type=jnp.float32)             # (BC, 128)
        sel = w_ref[t, ROW_SEL:ROW_SEL + BC, :]                      # (BC, 128)
        pooled = jnp.tanh(jnp.sum(tw * sel, axis=0, keepdims=True) + bp_wide)
        out_ref[t:t + 1, :] = pooled                                 # one 128-lane row


# --------------------------- host-side weight packing ------------------------
def pack_towers(params_q, params_k):
    """ONE-TIME host transform: both towers' 18 tensors -> a single pre-stacked
    lane-dense (2, W_ROWS_PAD, 128) slab (+ embedding glue params)."""
    sel_np = np.kron(np.eye(BC, dtype=np.float32), np.ones((1, H), np.float32))

    def pack_one(p):
        s = np.float32(1.0 / np.sqrt(H))

        def lanepad(a):
            return jnp.pad(a, ((0, 0), (0, LANES - a.shape[1])))

        wqkvo = jnp.concatenate([p["wq"] * s, p["wk"], p["wv"], p["wo"]], axis=1)  # (H,128)
        w1_rows = lanepad(p["w1"])                                                 # (H,128)
        w2_rows = lanepad(p["w2"])                                                 # (F,128)
        wp_wide = jnp.concatenate([p["wp"]] * BC, axis=1)                          # (H,128)
        bp_wide = jnp.concatenate([p["bp"]] * BC, axis=1)                          # (1,128)
        bias = jnp.concatenate(
            [lanepad(p["bq"] * s), lanepad(p["bk"]), lanepad(p["bv"]),
             lanepad(p["bo"]), lanepad(p["ln1g"]), lanepad(p["ln1b"]),
             lanepad(p["b1"]), lanepad(p["b2"]), lanepad(p["ln2g"]),
             lanepad(p["ln2b"]), bp_wide], axis=0)                                 # (11,128)
        slab = jnp.concatenate(
            [wqkvo, w1_rows, w2_rows, wp_wide, jnp.asarray(sel_np), bias], axis=0)
        return jnp.pad(slab, ((0, W_ROWS_PAD - slab.shape[0]), (0, 0)))

    w_all = jnp.stack([pack_one(params_q), pack_one(params_k)])    # (2, 176, 128)
    emb_names = ("word_emb", "pos_emb", "emb_ln_g", "emb_ln_b")
    emb_q = {n: params_q[n] for n in emb_names}
    emb_k = {n: params_k[n] for n in emb_names}
    return w_all, emb_q, emb_k


# ------------------------------ wrapper (glue) -------------------------------
def _embed(emb, input_ids):
    # embedding lookup + embedding LayerNorm (gather = JAX glue, no Pallas equivalent)
    tok = emb["word_emb"][input_ids]                       # (N, S, H)
    pos = emb["pos_emb"][None, :, :]                       # (1, S, H)
    e = tok + pos
    mu = jnp.mean(e, axis=-1, keepdims=True)
    var = jnp.mean((e - mu) ** 2, axis=-1, keepdims=True)
    return ((e - mu) * jax.lax.rsqrt(var + LN_EPS) * emb["emb_ln_g"]
            + emb["emb_ln_b"]).astype(jnp.float32)


def _activation_slab(x, attn_mask, n):
    """x: (n, S, H) embedded tokens; attn_mask: (n, S) int. Returns (X_ROWS_PAD, H)."""
    rows = x.reshape(n * S, H)
    madd = (attn_mask.astype(jnp.float32) - 1.0) * 1e9     # additive mask, precomputed
    if n < BC:                                             # zero-pad query tower to BC
        rows = jnp.concatenate([rows, jnp.zeros(((BC - n) * S, H), jnp.float32)], 0)
        madd = jnp.concatenate([madd, jnp.zeros((BC - n, S), jnp.float32)], 0)
    mrows = jnp.pad(madd, ((0, 0), (0, H - S)))            # (BC, H), mask in lanes [0,S)
    slab = jnp.concatenate([rows, mrows], axis=0)          # (BC*S + BC, H)
    return jnp.pad(slab, ((0, X_ROWS_PAD - slab.shape[0]), (0, 0)))


@jax.jit
def bi_encoder_forward(w_all, emb_q, emb_k, batch):
    """BiEncoderRetrieverBase.forward: one fused single-step launch, both towers."""
    xq = _embed(emb_q, batch["query"]["input_ids"])                    # (B, S, H)
    ctx_ids = jnp.concatenate([batch["pos_ctx"]["input_ids"],
                               batch["neg_ctx"]["input_ids"]], axis=0)  # (BC, S)
    ctx_msk = jnp.concatenate([batch["pos_ctx"]["attention_mask"],
                               batch["neg_ctx"]["attention_mask"]], axis=0)
    xk = _embed(emb_k, ctx_ids)                                        # (BC, S, H)

    x_all = jnp.stack([_activation_slab(xq, batch["query"]["attention_mask"], B),
                       _activation_slab(xk, ctx_msk, BC)])             # (2, 40, 32)

    out = pl.pallas_call(
        biencoder_kernel,
        out_shape=jax.ShapeDtypeStruct((2, BC * H), jnp.float32),       # lane-dense
        cost_estimate=pl.CostEstimate(flops=_FLOPS, transcendentals=_TRANS,
                                      bytes_accessed=_BYTES),
    )(x_all, w_all)                                                     # 2 input DMAs

    pooled = out.reshape(2, BC, H)
    return {"query": pooled[0, :B], "pos_ctx": pooled[1, :B], "neg_ctx": pooled[1, B:]}


# --------------------------- deterministic params ----------------------------
def make_params(key):
    ks = jax.random.split(key, 20)
    sc = 0.05

    def rnd(i, shape):
        return sc * jax.random.normal(ks[i], shape, jnp.float32)

    return {
        "word_emb": rnd(0, (VOCAB, H)),
        "pos_emb": rnd(1, (S, H)),
        "emb_ln_g": jnp.ones((1, 1, H), jnp.float32),
        "emb_ln_b": jnp.zeros((1, 1, H), jnp.float32),
        "wq": rnd(2, (H, H)), "bq": rnd(10, (1, H)),
        "wk": rnd(3, (H, H)), "bk": rnd(11, (1, H)),
        "wv": rnd(4, (H, H)), "bv": rnd(12, (1, H)),
        "wo": rnd(5, (H, H)), "bo": rnd(13, (1, H)),
        "ln1g": jnp.ones((1, H), jnp.float32), "ln1b": jnp.zeros((1, H), jnp.float32),
        "w1": rnd(6, (H, F)), "b1": rnd(14, (1, F)),
        "w2": rnd(7, (F, H)), "b2": rnd(15, (1, H)),
        "ln2g": jnp.ones((1, H), jnp.float32), "ln2b": jnp.zeros((1, H), jnp.float32),
        "wp": rnd(8, (H, H)), "bp": rnd(16, (1, H)),
    }


# ------------------------------ pure-JAX reference ---------------------------
def encoder_reference(params, input_ids, attention_mask):
    tok = params["word_emb"][input_ids]
    pos = params["pos_emb"][jnp.arange(S)][None, :, :]
    emb = tok + pos
    mu = jnp.mean(emb, -1, keepdims=True)
    var = jnp.mean((emb - mu) ** 2, -1, keepdims=True)
    x = (emb - mu) * jax.lax.rsqrt(var + LN_EPS) * params["emb_ln_g"] + params["emb_ln_b"]

    def ln(y, g, b):
        m = jnp.mean(y, -1, keepdims=True)
        v = jnp.mean((y - m) ** 2, -1, keepdims=True)
        return (y - m) * jax.lax.rsqrt(v + LN_EPS) * g + b

    def gelu(y):
        c = jnp.sqrt(2.0 / jnp.pi)
        return 0.5 * y * (1.0 + jnp.tanh(c * (y + 0.044715 * y ** 3)))

    q = x @ params["wq"] + params["bq"]
    k = x @ params["wk"] + params["bk"]
    v = x @ params["wv"] + params["bv"]
    scores = jnp.einsum("bqd,bkd->bqk", q, k) / jnp.sqrt(jnp.float32(H))
    scores = scores + (1.0 - attention_mask.astype(jnp.float32))[:, None, :] * (-1e9)
    p = jax.nn.softmax(scores, axis=-1)
    ctx = jnp.einsum("bqk,bkd->bqd", p, v)
    h = ln(x + (ctx @ params["wo"] + params["bo"]), params["ln1g"], params["ln1b"])
    ff = gelu(h @ params["w1"] + params["b1"]) @ params["w2"] + params["b2"]
    h2 = ln(h + ff, params["ln2g"], params["ln2b"])
    return jnp.tanh(h2[:, 0, :] @ params["wp"] + params["bp"])


# ----------------------------------- main ------------------------------------
if __name__ == "__main__":
    root = jax.random.PRNGKey(0)
    k_q, k_k, k_ids = jax.random.split(root, 3)

    params_q = make_params(k_q)          # encoder_q (query tower)
    params_k = make_params(k_k)          # encoder_k (context tower)
    # one-time, pre-stacked host-side packing (no per-call weight stacking)
    w_all, emb_q, emb_k = pack_towers(params_q, params_k)

    def make_inputs(key):
        ids = jax.random.randint(key, (B, S), 0, VOCAB, dtype=jnp.int32)
        mask = jnp.ones((B, S), jnp.int32).at[1, S - 2:].set(0)   # pad tail of row 1
        return {"input_ids": ids, "attention_mask": mask}

    k1, k2, k3 = jax.random.split(k_ids, 3)
    batch = {"query": make_inputs(k1), "pos_ctx": make_inputs(k2), "neg_ctx": make_inputs(k3)}

    vectors = bi_encoder_forward(w_all, emb_q, emb_k, batch)
    jax.block_until_ready(vectors)

    # correctness check vs pure-JAX reference (tolerance covers the ~2^-12
    # relative error of the approx softmax reciprocal)
    ref = {
        "query": encoder_reference(params_q, batch["query"]["input_ids"],
                                   batch["query"]["attention_mask"]),
        "pos_ctx": encoder_reference(params_k, batch["pos_ctx"]["input_ids"],
                                     batch["pos_ctx"]["attention_mask"]),
        "neg_ctx": encoder_reference(params_k, batch["neg_ctx"]["input_ids"],
                                     batch["neg_ctx"]["attention_mask"]),
    }
    for name in ("query", "pos_ctx", "neg_ctx"):
        assert vectors[name].shape == (B, H)
        np.testing.assert_allclose(np.asarray(vectors[name]), np.asarray(ref[name]),
                                   rtol=5e-4, atol=5e-4)

    print("KERNEL_OK")
</pallas_src>

<mosaic_0001>
module attributes {stable_mosaic.version = 11 : i64} {
  func.func @biencoder_kernel(%arg0: memref<2x40x32xf32, #tpu.memory_space<vmem>>, %arg1: memref<2x176x128xf32, #tpu.memory_space<vmem>>, %arg2: memref<2x128xf32, #tpu.memory_space<vmem>>) attributes {dimension_semantics = [], scalar_prefetch = 0 : i64, scratch_operands = 0 : i64, tpu.core_type = #tpu.core_type<tc>} {
    %c0 = arith.constant 0 : index
    %c0_0 = arith.constant 0 : index
    %c0_1 = arith.constant 0 : index
    %0 = vector.load %arg0[%c0, %c0_0, %c0_1] : memref<2x40x32xf32, #tpu.memory_space<vmem>>, vector<1x32x32xf32>
    %1 = vector.shape_cast %0 : vector<1x32x32xf32> to vector<32x32xf32>
    %c0_2 = arith.constant 0 : index
    %c32 = arith.constant 32 : index
    %c0_3 = arith.constant 0 : index
    %2 = vector.load %arg0[%c0_2, %c32, %c0_3] : memref<2x40x32xf32, #tpu.memory_space<vmem>>, vector<1x4x8xf32>
    %3 = vector.shape_cast %2 : vector<1x4x8xf32> to vector<4x8xf32>
    %c0_4 = arith.constant 0 : index
    %c164 = arith.constant 164 : index
    %c0_5 = arith.constant 0 : index
    %4 = vector.load %arg1[%c0_4, %c164, %c0_5] : memref<2x176x128xf32, #tpu.memory_space<vmem>>, vector<1x1x32xf32>
    %5 = vector.shape_cast %4 : vector<1x1x32xf32> to vector<1x32xf32>
    %c0_6 = arith.constant 0 : index
    %c165 = arith.constant 165 : index
    %c0_7 = arith.constant 0 : index
    %6 = vector.load %arg1[%c0_6, %c165, %c0_7] : memref<2x176x128xf32, #tpu.memory_space<vmem>>, vector<1x1x32xf32>
    %7 = vector.shape_cast %6 : vector<1x1x32xf32> to vector<1x32xf32>
    %c0_8 = arith.constant 0 : index
    %c166 = arith.constant 166 : index
    %c0_9 = arith.constant 0 : index
    %8 = vector.load %arg1[%c0_8, %c166, %c0_9] : memref<2x176x128xf32, #tpu.memory_space<vmem>>, vector<1x1x32xf32>
    %9 = vector.shape_cast %8 : vector<1x1x32xf32> to vector<1x32xf32>
    %c0_10 = arith.constant 0 : index
    %c167 = arith.constant 167 : index
    %c0_11 = arith.constant 0 : index
    %10 = vector.load %arg1[%c0_10, %c167, %c0_11] : memref<2x176x128xf32, #tpu.memory_space<vmem>>, vector<1x1x32xf32>
    %11 = vector.shape_cast %10 : vector<1x1x32xf32> to vector<1x32xf32>
    %c0_12 = arith.constant 0 : index
    %c168 = arith.constant 168 : index
    %c0_13 = arith.constant 0 : index
    %12 = vector.load %arg1[%c0_12, %c168, %c0_13] : memref<2x176x128xf32, #tpu.memory_space<vmem>>, vector<1x1x32xf32>
    %13 = vector.shape_cast %12 : vector<1x1x32xf32> to vector<1x32xf32>
    %c0_14 = arith.constant 0 : index
    %c169 = arith.constant 169 : index
    %c0_15 = arith.constant 0 : index
    %14 = vector.load %arg1[%c0_14, %c169, %c0_15] : memref<2x176x128xf32, #tpu.memory_space<vmem>>, vector<1x1x32xf32>
    %15 = vector.shape_cast %14 : vector<1x1x32xf32> to vector<1x32xf32>
    %c0_16 = arith.constant 0 : index
    %c170 = arith.constant 170 : index
    %c0_17 = arith.constant 0 : index
    %16 = vector.load %arg1[%c0_16, %c170, %c0_17] : memref<2x176x128xf32, #tpu.memory_space<vmem>>, vector<1x1x64xf32>
    %17 = vector.shape_cast %16 : vector<1x1x64xf32> to vector<1x64xf32>
    %c0_18 = arith.constant 0 : index
    %c171 = arith.constant 171 : index
    %c0_19 = arith.constant 0 : index
    %18 = vector.load %arg1[%c0_18, %c171, %c0_19] : memref<2x176x128xf32, #tpu.memory_space<vmem>>, vector<1x1x32xf32>
    %19 = vector.shape_cast %18 : vector<1x1x32xf32> to vector<1x32xf32>
    %c0_20 = arith.constant 0 : index
    %c172 = arith.constant 172 : index
    %c0_21 = arith.constant 0 : index
    %20 = vector.load %arg1[%c0_20, %c172, %c0_21] : memref<2x176x128xf32, #tpu.memory_space<vmem>>, vector<1x1x32xf32>
    %21 = vector.shape_cast %20 : vector<1x1x32xf32> to vector<1x32xf32>
    %c0_22 = arith.constant 0 : index
    %c173 = arith.constant 173 : index
    %c0_23 = arith.constant 0 : index
    %22 = vector.load %arg1[%c0_22, %c173, %c0_23] : memref<2x176x128xf32, #tpu.memory_space<vmem>>, vector<1x1x32xf32>
    %23 = vector.shape_cast %22 : vector<1x1x32xf32> to vector<1x32xf32>
    %c0_24 = arith.constant 0 : index
    %c174 = arith.constant 174 : index
    %c0_25 = arith.constant 0 : index
    %24 = vector.load %arg1[%c0_24, %c174, %c0_25] : memref<2x176x128xf32, #tpu.memory_space<vmem>>, vector<1x1x128xf32>
    %25 = vector.shape_cast %24 : vector<1x1x128xf32> to vector<1x128xf32>
    %c0_26 = arith.constant 0 : index
    %c0_27 = arith.constant 0 : index
    %c32_28 = arith.constant 32 : index
    %26 = vector.load %arg1[%c0_26, %c0_27, %c32_28] : memref<2x176x128xf32, #tpu.memory_space<vmem>>, vector<1x32x64xf32>
    %27 = vector.shape_cast %26 : vector<1x32x64xf32> to vector<32x64xf32>
    %cst = arith.constant dense<0.000000e+00> : vector<32x64xf32>
    %28 = tpu.matmul %1, %27, %cst {dimension_numbers = #tpu.dot_dimension_numbers<[1], [0], [0], [1], [0, 0, 1, 1], [], []>} : vector<32x32xf32>, vector<32x64xf32>, vector<32x64xf32> -> vector<32x64xf32>
    %29 = vector.extract_strided_slice %28 {offsets = [0, 0], sizes = [32, 32], strides = [1, 1]} : vector<32x64xf32> to vector<32x32xf32>
    %30 = vector.broadcast %7 : vector<1x32xf32> to vector<32x32xf32>
    %31 = arith.addf %29, %30 : vector<32x32xf32>
    %32 = vector.shape_cast %31 : vector<32x32xf32> to vector<4x8x32xf32>
    %33 = vector.extract_strided_slice %28 {offsets = [0, 32], sizes = [32, 32], strides = [1, 1]} : vector<32x64xf32> to vector<32x32xf32>
    %34 = vector.broadcast %9 : vector<1x32xf32> to vector<32x32xf32>
    %35 = arith.addf %33, %34 : vector<32x32xf32>
    %36 = vector.shape_cast %35 : vector<32x32xf32> to vector<4x8x32xf32>
    %37 = vector.shape_cast %1 : vector<32x32xf32> to vector<4x8x32xf32>
    %38 = vector.extract_strided_slice %37 {offsets = [0, 0, 0], sizes = [4, 1, 32], strides = [1, 1, 1]} : vector<4x8x32xf32> to vector<4x1x32xf32>
    %39 = vector.shape_cast %38 : vector<4x1x32xf32> to vector<4x32xf32>
    %c0_29 = arith.constant 0 : index
    %c0_30 = arith.constant 0 : index
    %c0_31 = arith.constant 0 : index
    %40 = vector.load %arg1[%c0_29, %c0_30, %c0_31] : memref<2x176x128xf32, #tpu.memory_space<vmem>>, vector<1x32x32xf32>
    %41 = vector.shape_cast %40 : vector<1x32x32xf32> to vector<32x32xf32>
    %cst_32 = arith.constant dense<0.000000e+00> : vector<4x32xf32>
    %42 = tpu.matmul %39, %41, %cst_32 {dimension_numbers = #tpu.dot_dimension_numbers<[1], [0], [0], [1], [0, 0, 1, 1], [], []>} : vector<4x32xf32>, vector<32x32xf32>, vector<4x32xf32> -> vector<4x32xf32>
    %43 = vector.broadcast %5 : vector<1x32xf32> to vector<4x32xf32>
    %44 = arith.addf %42, %43 : vector<4x32xf32>
    %45 = vector.shape_cast %44 : vector<4x32xf32> to vector<4x1x32xf32>
    "tpu.trace_start"() <{level = 10 : i32, message = "bqd,bkd->bqk"}> : () -> ()
    %cst_33 = arith.constant dense<0.000000e+00> : vector<4x1x8xf32>
    %46 = tpu.matmul %45, %32, %cst_33 {dimension_numbers = #tpu.dot_dimension_numbers<[2], [2], [1], [1], [0, 0, 0, 1, 1, 1], [0], [0]>} : vector<4x1x32xf32>, vector<4x8x32xf32>, vector<4x1x8xf32> -> vector<4x1x8xf32>
    "tpu.trace_stop"() : () -> ()
    %47 = vector.shape_cast %3 : vector<4x8xf32> to vector<4x1x8xf32>
    %48 = arith.addf %46, %47 : vector<4x1x8xf32>
    %cst_34 = arith.constant dense<0xFF800000> : vector<4x1xf32>
    %49 = vector.multi_reduction <maximumf>, %48, %cst_34 [2] : vector<4x1x8xf32> to vector<4x1xf32>
    %50 = vector.shape_cast %49 : vector<4x1xf32> to vector<4x1x1xf32>
    %51 = vector.broadcast %50 : vector<4x1x1xf32> to vector<4x1x8xf32>
    %52 = arith.subf %48, %51 : vector<4x1x8xf32>
    %53 = math.exp %52 : vector<4x1x8xf32>
    %cst_35 = arith.constant dense<0.000000e+00> : vector<4x1xf32>
    %54 = vector.multi_reduction <add>, %53, %cst_35 [2] : vector<4x1x8xf32> to vector<4x1xf32>
    %55 = vector.shape_cast %54 : vector<4x1xf32> to vector<4x1x1xf32>
    %56 = tpu.reciprocal %55 {approx = true} : vector<4x1x1xf32> -> vector<4x1x1xf32>
    %57 = vector.broadcast %56 : vector<4x1x1xf32> to vector<4x1x8xf32>
    %58 = arith.mulf %53, %57 : vector<4x1x8xf32>
    "tpu.trace_start"() <{level = 10 : i32, message = "bqk,bkd->bqd"}> : () -> ()
    %cst_36 = arith.constant dense<0.000000e+00> : vector<4x1x32xf32>
    %59 = tpu.matmul %58, %36, %cst_36 {dimension_numbers = #tpu.dot_dimension_numbers<[2], [1], [1], [2], [0, 0, 0, 1, 1, 2], [0], [0]>} : vector<4x1x8xf32>, vector<4x8x32xf32>, vector<4x1x32xf32> -> vector<4x1x32xf32>
    "tpu.trace_stop"() : () -> ()
    %60 = vector.shape_cast %59 : vector<4x1x32xf32> to vector<4x32xf32>
    %c0_37 = arith.constant 0 : index
    %c0_38 = arith.constant 0 : index
    %c96 = arith.constant 96 : index
    %61 = vector.load %arg1[%c0_37, %c0_38, %c96] : memref<2x176x128xf32, #tpu.memory_space<vmem>>, vector<1x32x32xf32>
    %62 = vector.shape_cast %61 : vector<1x32x32xf32> to vector<32x32xf32>
    %cst_39 = arith.constant dense<0.000000e+00> : vector<4x32xf32>
    %63 = tpu.matmul %60, %62, %cst_39 {dimension_numbers = #tpu.dot_dimension_numbers<[1], [0], [0], [1], [0, 0, 1, 1], [], []>} : vector<4x32xf32>, vector<32x32xf32>, vector<4x32xf32> -> vector<4x32xf32>
    %64 = vector.broadcast %11 : vector<1x32xf32> to vector<4x32xf32>
    %65 = arith.addf %63, %64 : vector<4x32xf32>
    %66 = arith.addf %39, %65 : vector<4x32xf32>
    %cst_40 = arith.constant dense<0.000000e+00> : vector<4xf32>
    %67 = vector.multi_reduction <add>, %66, %cst_40 [1] : vector<4x32xf32> to vector<4xf32>
    %68 = vector.shape_cast %67 : vector<4xf32> to vector<4x1xf32>
    %cst_41 = arith.constant 3.200000e+01 : f32
    %69 = vector.broadcast %cst_41 : f32 to vector<4x1xf32>
    %70 = arith.divf %68, %69 : vector<4x1xf32>
    %71 = vector.broadcast %70 : vector<4x1xf32> to vector<4x32xf32>
    %72 = arith.subf %66, %71 : vector<4x32xf32>
    %73 = arith.mulf %72, %72 : vector<4x32xf32>
    %cst_42 = arith.constant dense<0.000000e+00> : vector<4xf32>
    %74 = vector.multi_reduction <add>, %73, %cst_42 [1] : vector<4x32xf32> to vector<4xf32>
    %75 = vector.shape_cast %74 : vector<4xf32> to vector<4x1xf32>
    %cst_43 = arith.constant 3.200000e+01 : f32
    %76 = vector.broadcast %cst_43 : f32 to vector<4x1xf32>
    %77 = arith.divf %75, %76 : vector<4x1xf32>
    %78 = vector.broadcast %70 : vector<4x1xf32> to vector<4x32xf32>
    %79 = arith.subf %66, %78 : vector<4x32xf32>
    %cst_44 = arith.constant 9.99999996E-13 : f32
    %80 = vector.broadcast %cst_44 : f32 to vector<4x1xf32>
    %81 = arith.addf %77, %80 : vector<4x1xf32>
    %82 = math.rsqrt %81 : vector<4x1xf32>
    %83 = vector.broadcast %82 : vector<4x1xf32> to vector<4x32xf32>
    %84 = arith.mulf %79, %83 : vector<4x32xf32>
    %85 = vector.broadcast %13 : vector<1x32xf32> to vector<4x32xf32>
    %86 = arith.mulf %84, %85 : vector<4x32xf32>
    %87 = vector.broadcast %15 : vector<1x32xf32> to vector<4x32xf32>
    %88 = arith.addf %86, %87 : vector<4x32xf32>
    %c0_45 = arith.constant 0 : index
    %c32_46 = arith.constant 32 : index
    %c0_47 = arith.constant 0 : index
    %89 = vector.load %arg1[%c0_45, %c32_46, %c0_47] : memref<2x176x128xf32, #tpu.memory_space<vmem>>, vector<1x32x64xf32>
    %90 = vector.shape_cast %89 : vector<1x32x64xf32> to vector<32x64xf32>
    %cst_48 = arith.constant dense<0.000000e+00> : vector<4x64xf32>
    %91 = tpu.matmul %88, %90, %cst_48 {dimension_numbers = #tpu.dot_dimension_numbers<[1], [0], [0], [1], [0, 0, 1, 1], [], []>} : vector<4x32xf32>, vector<32x64xf32>, vector<4x64xf32> -> vector<4x64xf32>
    %92 = vector.broadcast %17 : vector<1x64xf32> to vector<4x64xf32>
    %93 = arith.addf %91, %92 : vector<4x64xf32>
    %cst_49 = arith.constant 0.636619746 : f32
    %94 = math.sqrt %cst_49 : f32
    %cst_50 = arith.constant 5.000000e-01 : f32
    %95 = vector.broadcast %cst_50 : f32 to vector<4x64xf32>
    %96 = arith.mulf %95, %93 : vector<4x64xf32>
    %cst_51 = arith.constant 4.471500e-02 : f32
    %97 = vector.broadcast %cst_51 : f32 to vector<4x64xf32>
    %98 = arith.mulf %97, %93 : vector<4x64xf32>
    %99 = arith.mulf %98, %93 : vector<4x64xf32>
    %100 = arith.mulf %99, %93 : vector<4x64xf32>
    %101 = arith.addf %93, %100 : vector<4x64xf32>
    %102 = vector.broadcast %94 : f32 to vector<4x64xf32>
    %103 = arith.mulf %102, %101 : vector<4x64xf32>
    %104 = math.tanh %103 : vector<4x64xf32>
    %cst_52 = arith.constant 1.000000e+00 : f32
    %105 = vector.broadcast %cst_52 : f32 to vector<4x64xf32>
    %106 = arith.addf %105, %104 : vector<4x64xf32>
    %107 = arith.mulf %96, %106 : vector<4x64xf32>
    %c0_53 = arith.constant 0 : index
    %c64 = arith.constant 64 : index
    %c0_54 = arith.constant 0 : index
    %108 = vector.load %arg1[%c0_53, %c64, %c0_54] : memref<2x176x128xf32, #tpu.memory_space<vmem>>, vector<1x64x32xf32>
    %109 = vector.shape_cast %108 : vector<1x64x32xf32> to vector<64x32xf32>
    %cst_55 = arith.constant dense<0.000000e+00> : vector<4x32xf32>
    %110 = tpu.matmul %107, %109, %cst_55 {dimension_numbers = #tpu.dot_dimension_numbers<[1], [0], [0], [1], [0, 0, 1, 1], [], []>} : vector<4x64xf32>, vector<64x32xf32>, vector<4x32xf32> -> vector<4x32xf32>
    %111 = vector.broadcast %19 : vector<1x32xf32> to vector<4x32xf32>
    %112 = arith.addf %110, %111 : vector<4x32xf32>
    %113 = arith.addf %88, %112 : vector<4x32xf32>
    %cst_56 = arith.constant dense<0.000000e+00> : vector<4xf32>
    %114 = vector.multi_reduction <add>, %113, %cst_56 [1] : vector<4x32xf32> to vector<4xf32>
    %115 = vector.shape_cast %114 : vector<4xf32> to vector<4x1xf32>
    %cst_57 = arith.constant 3.200000e+01 : f32
    %116 = vector.broadcast %cst_57 : f32 to vector<4x1xf32>
    %117 = arith.divf %115, %116 : vector<4x1xf32>
    %118 = vector.broadcast %117 : vector<4x1xf32> to vector<4x32xf32>
    %119 = arith.subf %113, %118 : vector<4x32xf32>
    %120 = arith.mulf %119, %119 : vector<4x32xf32>
    %cst_58 = arith.constant dense<0.000000e+00> : vector<4xf32>
    %121 = vector.multi_reduction <add>, %120, %cst_58 [1] : vector<4x32xf32> to vector<4xf32>
    %122 = vector.shape_cast %121 : vector<4xf32> to vector<4x1xf32>
    %cst_59 = arith.constant 3.200000e+01 : f32
    %123 = vector.broadcast %cst_59 : f32 to vector<4x1xf32>
    %124 = arith.divf %122, %123 : vector<4x1xf32>
    %125 = vector.broadcast %117 : vector<4x1xf32> to vector<4x32xf32>
    %126 = arith.subf %113, %125 : vector<4x32xf32>
    %cst_60 = arith.constant 9.99999996E-13 : f32
    %127 = vector.broadcast %cst_60 : f32 to vector<4x1xf32>
    %128 = arith.addf %124, %127 : vector<4x1xf32>
    %129 = math.rsqrt %128 : vector<4x1xf32>
    %130 = vector.broadcast %129 : vector<4x1xf32> to vector<4x32xf32>
    %131 = arith.mulf %126, %130 : vector<4x32xf32>
    %132 = vector.broadcast %21 : vector<1x32xf32> to vector<4x32xf32>
    %133 = arith.mulf %131, %132 : vector<4x32xf32>
    %134 = vector.broadcast %23 : vector<1x32xf32> to vector<4x32xf32>
    %135 = arith.addf %133, %134 : vector<4x32xf32>
    %c0_61 = arith.constant 0 : index
    %c128 = arith.constant 128 : index
    %c0_62 = arith.constant 0 : index
    %136 = vector.load %arg1[%c0_61, %c128, %c0_62] : memref<2x176x128xf32, #tpu.memory_space<vmem>>, vector<1x32x128xf32>
    %137 = vector.shape_cast %136 : vector<1x32x128xf32> to vector<32x128xf32>
    %cst_63 = arith.constant dense<0.000000e+00> : vector<4x128xf32>
    %138 = tpu.matmul %135, %137, %cst_63 {dimension_numbers = #tpu.dot_dimension_numbers<[1], [0], [0], [1], [0, 0, 1, 1], [], []>} : vector<4x32xf32>, vector<32x128xf32>, vector<4x128xf32> -> vector<4x128xf32>
    %c0_64 = arith.constant 0 : index
    %c160 = arith.constant 160 : index
    %c0_65 = arith.constant 0 : index
    %139 = vector.load %arg1[%c0_64, %c160, %c0_65] : memref<2x176x128xf32, #tpu.memory_space<vmem>>, vector<1x4x128xf32>
    %140 = vector.shape_cast %139 : vector<1x4x128xf32> to vector<4x128xf32>
    %141 = arith.mulf %138, %140 : vector<4x128xf32>
    %cst_66 = arith.constant dense<0.000000e+00> : vector<128xf32>
    %142 = vector.multi_reduction <add>, %141, %cst_66 [0] : vector<4x128xf32> to vector<128xf32>
    %143 = vector.shape_cast %142 : vector<128xf32> to vector<1x128xf32>
    %144 = arith.addf %143, %25 : vector<1x128xf32>
    %145 = math.tanh %144 : vector<1x128xf32>
    %c0_67 = arith.constant 0 : index
    %c0_68 = arith.constant 0 : index
    %146 = vector.load %arg2[%c0_67, %c0_68] : memref<2x128xf32, #tpu.memory_space<vmem>>, vector<1x128xf32>
    tpu.vector_store %arg2[%c0_67, %c0_68], %145 {strides = array<i32>} : memref<2x128xf32, #tpu.memory_space<vmem>>, vector<1x128xf32>,
    %c1 = arith.constant 1 : index
    %c0_69 = arith.constant 0 : index
    %c0_70 = arith.constant 0 : index
    %147 = vector.load %arg0[%c1, %c0_69, %c0_70] : memref<2x40x32xf32, #tpu.memory_space<vmem>>, vector<1x32x32xf32>
    %148 = vector.shape_cast %147 : vector<1x32x32xf32> to vector<32x32xf32>
    %c1_71 = arith.constant 1 : index
    %c32_72 = arith.constant 32 : index
    %c0_73 = arith.constant 0 : index
    %149 = vector.load %arg0[%c1_71, %c32_72, %c0_73] : memref<2x40x32xf32, #tpu.memory_space<vmem>>, vector<1x4x8xf32>
    %150 = vector.shape_cast %149 : vector<1x4x8xf32> to vector<4x8xf32>
    %c1_74 = arith.constant 1 : index
    %c164_75 = arith.constant 164 : index
    %c0_76 = arith.constant 0 : index
    %151 = vector.load %arg1[%c1_74, %c164_75, %c0_76] : memref<2x176x128xf32, #tpu.memory_space<vmem>>, vector<1x1x32xf32>
    %152 = vector.shape_cast %151 : vector<1x1x32xf32> to vector<1x32xf32>
    %c1_77 = arith.constant 1 : index
    %c165_78 = arith.constant 165 : index
    %c0_79 = arith.constant 0 : index
    %153 = vector.load %arg1[%c1_77, %c165_78, %c0_79] : memref<2x176x128xf32, #tpu.memory_space<vmem>>, vector<1x1x32xf32>
    %154 = vector.shape_cast %153 : vector<1x1x32xf32> to vector<1x32xf32>
    %c1_80 = arith.constant 1 : index
    %c166_81 = arith.constant 166 : index
    %c0_82 = arith.constant 0 : index
    %155 = vector.load %arg1[%c1_80, %c166_81, %c0_82] : memref<2x176x128xf32, #tpu.memory_space<vmem>>, vector<1x1x32xf32>
    %156 = vector.shape_cast %155 : vector<1x1x32xf32> to vector<1x32xf32>
    %c1_83 = arith.constant 1 : index
    %c167_84 = arith.constant 167 : index
    %c0_85 = arith.constant 0 : index
    %157 = vector.load %arg1[%c1_83, %c167_84, %c0_85] : memref<2x176x128xf32, #tpu.memory_space<vmem>>, vector<1x1x32xf32>
    %158 = vector.shape_cast %157 : vector<1x1x32xf32> to vector<1x32xf32>
    %c1_86 = arith.constant 1 : index
    %c168_87 = arith.constant 168 : index
    %c0_88 = arith.constant 0 : index
    %159 = vector.load %arg1[%c1_86, %c168_87, %c0_88] : memref<2x176x128xf32, #tpu.memory_space<vmem>>, vector<1x1x32xf32>
    %160 = vector.shape_cast %159 : vector<1x1x32xf32> to vector<1x32xf32>
    %c1_89 = arith.constant 1 : index
    %c169_90 = arith.constant 169 : index
    %c0_91 = arith.constant 0 : index
    %161 = vector.load %arg1[%c1_89, %c169_90, %c0_91] : memref<2x176x128xf32, #tpu.memory_space<vmem>>, vector<1x1x32xf32>
    %162 = vector.shape_cast %161 : vector<1x1x32xf32> to vector<1x32xf32>
    %c1_92 = arith.constant 1 : index
    %c170_93 = arith.constant 170 : index
    %c0_94 = arith.constant 0 : index
    %163 = vector.load %arg1[%c1_92, %c170_93, %c0_94] : memref<2x176x128xf32, #tpu.memory_space<vmem>>, vector<1x1x64xf32>
    %164 = vector.shape_cast %163 : vector<1x1x64xf32> to vector<1x64xf32>
    %c1_95 = arith.constant 1 : index
    %c171_96 = arith.constant 171 : index
    %c0_97 = arith.constant 0 : index
    %165 = vector.load %arg1[%c1_95, %c171_96, %c0_97] : memref<2x176x128xf32, #tpu.memory_space<vmem>>, vector<1x1x32xf32>
    %166 = vector.shape_cast %165 : vector<1x1x32xf32> to vector<1x32xf32>
    %c1_98 = arith.constant 1 : index
    %c172_99 = arith.constant 172 : index
    %c0_100 = arith.constant 0 : index
    %167 = vector.load %arg1[%c1_98, %c172_99, %c0_100] : memref<2x176x128xf32, #tpu.memory_space<vmem>>, vector<1x1x32xf32>
    %168 = vector.shape_cast %167 : vector<1x1x32xf32> to vector<1x32xf32>
    %c1_101 = arith.constant 1 : index
    %c173_102 = arith.constant 173 : index
    %c0_103 = arith.constant 0 : index
    %169 = vector.load %arg1[%c1_101, %c173_102, %c0_103] : memref<2x176x128xf32, #tpu.memory_space<vmem>>, vector<1x1x32xf32>
    %170 = vector.shape_cast %169 : vector<1x1x32xf32> to vector<1x32xf32>
    %c1_104 = arith.constant 1 : index
    %c174_105 = arith.constant 174 : index
    %c0_106 = arith.constant 0 : index
    %171 = vector.load %arg1[%c1_104, %c174_105, %c0_106] : memref<2x176x128xf32, #tpu.memory_space<vmem>>, vector<1x1x128xf32>
    %172 = vector.shape_cast %171 : vector<1x1x128xf32> to vector<1x128xf32>
    %c1_107 = arith.constant 1 : index
    %c0_108 = arith.constant 0 : index
    %c32_109 = arith.constant 32 : index
    %173 = vector.load %arg1[%c1_107, %c0_108, %c32_109] : memref<2x176x128xf32, #tpu.memory_space<vmem>>, vector<1x32x64xf32>
    %174 = vector.shape_cast %173 : vector<1x32x64xf32> to vector<32x64xf32>
    %cst_110 = arith.constant dense<0.000000e+00> : vector<32x64xf32>
    %175 = tpu.matmul %148, %174, %cst_110 {dimension_numbers = #tpu.dot_dimension_numbers<[1], [0], [0], [1], [0, 0, 1, 1], [], []>} : vector<32x32xf32>, vector<32x64xf32>, vector<32x64xf32> -> vector<32x64xf32>
    %176 = vector.extract_strided_slice %175 {offsets = [0, 0], sizes = [32, 32], strides = [1, 1]} : vector<32x64xf32> to vector<32x32xf32>
    %177 = vector.broadcast %154 : vector<1x32xf32> to vector<32x32xf32>
    %178 = arith.addf %176, %177 : vector<32x32xf32>
    %179 = vector.shape_cast %178 : vector<32x32xf32> to vector<4x8x32xf32>
    %180 = vector.extract_strided_slice %175 {offsets = [0, 32], sizes = [32, 32], strides = [1, 1]} : vector<32x64xf32> to vector<32x32xf32>
    %181 = vector.broadcast %156 : vector<1x32xf32> to vector<32x32xf32>
    %182 = arith.addf %180, %181 : vector<32x32xf32>
    %183 = vector.shape_cast %182 : vector<32x32xf32> to vector<4x8x32xf32>
    %184 = vector.shape_cast %148 : vector<32x32xf32> to vector<4x8x32xf32>
    %185 = vector.extract_strided_slice %184 {offsets = [0, 0, 0], sizes = [4, 1, 32], strides = [1, 1, 1]} : vector<4x8x32xf32> to vector<4x1x32xf32>
    %186 = vector.shape_cast %185 : vector<4x1x32xf32> to vector<4x32xf32>
    %c1_111 = arith.constant 1 : index
    %c0_112 = arith.constant 0 : index
    %c0_113 = arith.constant 0 : index
    %187 = vector.load %arg1[%c1_111, %c0_112, %c0_113] : memref<2x176x128xf32, #tpu.memory_space<vmem>>, vector<1x32x32xf32>
    %188 = vector.shape_cast %187 : vector<1x32x32xf32> to vector<32x32xf32>
    %cst_114 = arith.constant dense<0.000000e+00> : vector<4x32xf32>
    %189 = tpu.matmul %186, %188, %cst_114 {dimension_numbers = #tpu.dot_dimension_numbers<[1], [0], [0], [1], [0, 0, 1, 1], [], []>} : vector<4x32xf32>, vector<32x32xf32>, vector<4x32xf32> -> vector<4x32xf32>
    %190 = vector.broadcast %152 : vector<1x32xf32> to vector<4x32xf32>
    %191 = arith.addf %189, %190 : vector<4x32xf32>
    %192 = vector.shape_cast %191 : vector<4x32xf32> to vector<4x1x32xf32>
    "tpu.trace_start"() <{level = 10 : i32, message = "bqd,bkd->bqk"}> : () -> ()
    %cst_115 = arith.constant dense<0.000000e+00> : vector<4x1x8xf32>
    %193 = tpu.matmul %192, %179, %cst_115 {dimension_numbers = #tpu.dot_dimension_numbers<[2], [2], [1], [1], [0, 0, 0, 1, 1, 1], [0], [0]>} : vector<4x1x32xf32>, vector<4x8x32xf32>, vector<4x1x8xf32> -> vector<4x1x8xf32>
    "tpu.trace_stop"() : () -> ()
    %194 = vector.shape_cast %150 : vector<4x8xf32> to vector<4x1x8xf32>
    %195 = arith.addf %193, %194 : vector<4x1x8xf32>
    %cst_116 = arith.constant dense<0xFF800000> : vector<4x1xf32>
    %196 = vector.multi_reduction <maximumf>, %195, %cst_116 [2] : vector<4x1x8xf32> to vector<4x1xf32>
    %197 = vector.shape_cast %196 : vector<4x1xf32> to vector<4x1x1xf32>
    %198 = vector.broadcast %197 : vector<4x1x1xf32> to vector<4x1x8xf32>
    %199 = arith.subf %195, %198 : vector<4x1x8xf32>
    %200 = math.exp %199 : vector<4x1x8xf32>
    %cst_117 = arith.constant dense<0.000000e+00> : vector<4x1xf32>
    %201 = vector.multi_reduction <add>, %200, %cst_117 [2] : vector<4x1x8xf32> to vector<4x1xf32>
    %202 = vector.shape_cast %201 : vector<4x1xf32> to vector<4x1x1xf32>
    %203 = tpu.reciprocal %202 {approx = true} : vector<4x1x1xf32> -> vector<4x1x1xf32>
    %204 = vector.broadcast %203 : vector<4x1x1xf32> to vector<4x1x8xf32>
    %205 = arith.mulf %200, %204 : vector<4x1x8xf32>
    "tpu.trace_start"() <{level = 10 : i32, message = "bqk,bkd->bqd"}> : () -> ()
    %cst_118 = arith.constant dense<0.000000e+00> : vector<4x1x32xf32>
    %206 = tpu.matmul %205, %183, %cst_118 {dimension_numbers = #tpu.dot_dimension_numbers<[2], [1], [1], [2], [0, 0, 0, 1, 1, 2], [0], [0]>} : vector<4x1x8xf32>, vector<4x8x32xf32>, vector<4x1x32xf32> -> vector<4x1x32xf32>
    "tpu.trace_stop"() : () -> ()
    %207 = vector.shape_cast %206 : vector<4x1x32xf32> to vector<4x32xf32>
    %c1_119 = arith.constant 1 : index
    %c0_120 = arith.constant 0 : index
    %c96_121 = arith.constant 96 : index
    %208 = vector.load %arg1[%c1_119, %c0_120, %c96_121] : memref<2x176x128xf32, #tpu.memory_space<vmem>>, vector<1x32x32xf32>
    %209 = vector.shape_cast %208 : vector<1x32x32xf32> to vector<32x32xf32>
    %cst_122 = arith.constant dense<0.000000e+00> : vector<4x32xf32>
    %210 = tpu.matmul %207, %209, %cst_122 {dimension_numbers = #tpu.dot_dimension_numbers<[1], [0], [0], [1], [0, 0, 1, 1], [], []>} : vector<4x32xf32>, vector<32x32xf32>, vector<4x32xf32> -> vector<4x32xf32>
    %211 = vector.broadcast %158 : vector<1x32xf32> to vector<4x32xf32>
    %212 = arith.addf %210, %211 : vector<4x32xf32>
    %213 = arith.addf %186, %212 : vector<4x32xf32>
    %cst_123 = arith.constant dense<0.000000e+00> : vector<4xf32>
    %214 = vector.multi_reduction <add>, %213, %cst_123 [1] : vector<4x32xf32> to vector<4xf32>
    %215 = vector.shape_cast %214 : vector<4xf32> to vector<4x1xf32>
    %cst_124 = arith.constant 3.200000e+01 : f32
    %216 = vector.broadcast %cst_124 : f32 to vector<4x1xf32>
    %217 = arith.divf %215, %216 : vector<4x1xf32>
    %218 = vector.broadcast %217 : vector<4x1xf32> to vector<4x32xf32>
    %219 = arith.subf %213, %218 : vector<4x32xf32>
    %220 = arith.mulf %219, %219 : vector<4x32xf32>
    %cst_125 = arith.constant dense<0.000000e+00> : vector<4xf32>
    %221 = vector.multi_reduction <add>, %220, %cst_125 [1] : vector<4x32xf32> to vector<4xf32>
    %222 = vector.shape_cast %221 : vector<4xf32> to vector<4x1xf32>
    %cst_126 = arith.constant 3.200000e+01 : f32
    %223 = vector.broadcast %cst_126 : f32 to vector<4x1xf32>
    %224 = arith.divf %222, %223 : vector<4x1xf32>
    %225 = vector.broadcast %217 : vector<4x1xf32> to vector<4x32xf32>
    %226 = arith.subf %213, %225 : vector<4x32xf32>
    %cst_127 = arith.constant 9.99999996E-13 : f32
    %227 = vector.broadcast %cst_127 : f32 to vector<4x1xf32>
    %228 = arith.addf %224, %227 : vector<4x1xf32>
    %229 = math.rsqrt %228 : vector<4x1xf32>
    %230 = vector.broadcast %229 : vector<4x1xf32> to vector<4x32xf32>
    %231 = arith.mulf %226, %230 : vector<4x32xf32>
    %232 = vector.broadcast %160 : vector<1x32xf32> to vector<4x32xf32>
    %233 = arith.mulf %231, %232 : vector<4x32xf32>
    %234 = vector.broadcast %162 : vector<1x32xf32> to vector<4x32xf32>
    %235 = arith.addf %233, %234 : vector<4x32xf32>
    %c1_128 = arith.constant 1 : index
    %c32_129 = arith.constant 32 : index
    %c0_130 = arith.constant 0 : index
    %236 = vector.load %arg1[%c1_128, %c32_129, %c0_130] : memref<2x176x128xf32, #tpu.memory_space<vmem>>, vector<1x32x64xf32>
    %237 = vector.shape_cast %236 : vector<1x32x64xf32> to vector<32x64xf32>
    %cst_131 = arith.constant dense<0.000000e+00> : vector<4x64xf32>
    %238 = tpu.matmul %235, %237, %cst_131 {dimension_numbers = #tpu.dot_dimension_numbers<[1], [0], [0], [1], [0, 0, 1, 1], [], []>} : vector<4x32xf32>, vector<32x64xf32>, vector<4x64xf32> -> vector<4x64xf32>
    %239 = vector.broadcast %164 : vector<1x64xf32> to vector<4x64xf32>
    %240 = arith.addf %238, %239 : vector<4x64xf32>
    %cst_132 = arith.constant 0.636619746 : f32
    %241 = math.sqrt %cst_132 : f32
    %cst_133 = arith.constant 5.000000e-01 : f32
    %242 = vector.broadcast %cst_133 : f32 to vector<4x64xf32>
    %243 = arith.mulf %242, %240 : vector<4x64xf32>
    %cst_134 = arith.constant 4.471500e-02 : f32
    %244 = vector.broadcast %cst_134 : f32 to vector<4x64xf32>
    %245 = arith.mulf %244, %240 : vector<4x64xf32>
    %246 = arith.mulf %245, %240 : vector<4x64xf32>
    %247 = arith.mulf %246, %240 : vector<4x64xf32>
    %248 = arith.addf %240, %247 : vector<4x64xf32>
    %249 = vector.broadcast %241 : f32 to vector<4x64xf32>
    %250 = arith.mulf %249, %248 : vector<4x64xf32>
    %251 = math.tanh %250 : vector<4x64xf32>
    %cst_135 = arith.constant 1.000000e+00 : f32
    %252 = vector.broadcast %cst_135 : f32 to vector<4x64xf32>
    %253 = arith.addf %252, %251 : vector<4x64xf32>
    %254 = arith.mulf %243, %253 : vector<4x64xf32>
    %c1_136 = arith.constant 1 : index
    %c64_137 = arith.constant 64 : index
    %c0_138 = arith.constant 0 : index
    %255 = vector.load %arg1[%c1_136, %c64_137, %c0_138] : memref<2x176x128xf32, #tpu.memory_space<vmem>>, vector<1x64x32xf32>
    %256 = vector.shape_cast %255 : vector<1x64x32xf32> to vector<64x32xf32>
    %cst_139 = arith.constant dense<0.000000e+00> : vector<4x32xf32>
    %257 = tpu.matmul %254, %256, %cst_139 {dimension_numbers = #tpu.dot_dimension_numbers<[1], [0], [0], [1], [0, 0, 1, 1], [], []>} : vector<4x64xf32>, vector<64x32xf32>, vector<4x32xf32> -> vector<4x32xf32>
    %258 = vector.broadcast %166 : vector<1x32xf32> to vector<4x32xf32>
    %259 = arith.addf %257, %258 : vector<4x32xf32>
    %260 = arith.addf %235, %259 : vector<4x32xf32>
    %cst_140 = arith.constant dense<0.000000e+00> : vector<4xf32>
    %261 = vector.multi_reduction <add>, %260, %cst_140 [1] : vector<4x32xf32> to vector<4xf32>
    %262 = vector.shape_cast %261 : vector<4xf32> to vector<4x1xf32>
    %cst_141 = arith.constant 3.200000e+01 : f32
    %263 = vector.broadcast %cst_141 : f32 to vector<4x1xf32>
    %264 = arith.divf %262, %263 : vector<4x1xf32>
    %265 = vector.broadcast %264 : vector<4x1xf32> to vector<4x32xf32>
    %266 = arith.subf %260, %265 : vector<4x32xf32>
    %267 = arith.mulf %266, %266 : vector<4x32xf32>
    %cst_142 = arith.constant dense<0.000000e+00> : vector<4xf32>
    %268 = vector.multi_reduction <add>, %267, %cst_142 [1] : vector<4x32xf32> to vector<4xf32>
    %269 = vector.shape_cast %268 : vector<4xf32> to vector<4x1xf32>
    %cst_143 = arith.constant 3.200000e+01 : f32
    %270 = vector.broadcast %cst_143 : f32 to vector<4x1xf32>
    %271 = arith.divf %269, %270 : vector<4x1xf32>
    %272 = vector.broadcast %264 : vector<4x1xf32> to vector<4x32xf32>
    %273 = arith.subf %260, %272 : vector<4x32xf32>
    %cst_144 = arith.constant 9.99999996E-13 : f32
    %274 = vector.broadcast %cst_144 : f32 to vector<4x1xf32>
    %275 = arith.addf %271, %274 : vector<4x1xf32>
    %276 = math.rsqrt %275 : vector<4x1xf32>
    %277 = vector.broadcast %276 : vector<4x1xf32> to vector<4x32xf32>
    %278 = arith.mulf %273, %277 : vector<4x32xf32>
    %279 = vector.broadcast %168 : vector<1x32xf32> to vector<4x32xf32>
    %280 = arith.mulf %278, %279 : vector<4x32xf32>
    %281 = vector.broadcast %170 : vector<1x32xf32> to vector<4x32xf32>
    %282 = arith.addf %280, %281 : vector<4x32xf32>
    %c1_145 = arith.constant 1 : index
    %c128_146 = arith.constant 128 : index
    %c0_147 = arith.constant 0 : index
    %283 = vector.load %arg1[%c1_145, %c128_146, %c0_147] : memref<2x176x128xf32, #tpu.memory_space<vmem>>, vector<1x32x128xf32>
    %284 = vector.shape_cast %283 : vector<1x32x128xf32> to vector<32x128xf32>
    %cst_148 = arith.constant dense<0.000000e+00> : vector<4x128xf32>
    %285 = tpu.matmul %282, %284, %cst_148 {dimension_numbers = #tpu.dot_dimension_numbers<[1], [0], [0], [1], [0, 0, 1, 1], [], []>} : vector<4x32xf32>, vector<32x128xf32>, vector<4x128xf32> -> vector<4x128xf32>
    %c1_149 = arith.constant 1 : index
    %c160_150 = arith.constant 160 : index
    %c0_151 = arith.constant 0 : index
    %286 = vector.load %arg1[%c1_149, %c160_150, %c0_151] : memref<2x176x128xf32, #tpu.memory_space<vmem>>, vector<1x4x128xf32>
    %287 = vector.shape_cast %286 : vector<1x4x128xf32> to vector<4x128xf32>
    %288 = arith.mulf %285, %287 : vector<4x128xf32>
    %cst_152 = arith.constant dense<0.000000e+00> : vector<128xf32>
    %289 = vector.multi_reduction <add>, %288, %cst_152 [0] : vector<4x128xf32> to vector<128xf32>
    %290 = vector.shape_cast %289 : vector<128xf32> to vector<1x128xf32>
    %291 = arith.addf %290, %172 : vector<1x128xf32>
    %292 = math.tanh %291 : vector<1x128xf32>
    %c1_153 = arith.constant 1 : index
    %c0_154 = arith.constant 0 : index
    %293 = vector.load %arg2[%c1_153, %c0_154] : memref<2x128xf32, #tpu.memory_space<vmem>>, vector<1x128xf32>
    tpu.vector_store %arg2[%c1_153, %c0_154], %292 {strides = array<i32>} : memref<2x128xf32, #tpu.memory_space<vmem>>, vector<1x128xf32>,
    return
  }
}

</mosaic_0001>

<llo_original>
// kernel: bi_encoder_forward.1
$region0: #{bi_encoder_forward.1}
  #allocation0 [shape = 'u32[]', space=smem, size = 0x4, offset = 0x4, fixed_abs, tag = 'smem constant byte address 0x4 - core index']
  #allocation1 [shape = 'u32[144,128]{1,0:T(1,128)}', space=vmem, size = 0x12000, scoped, tag = 'internal scratch']
  %s0 = inlined_call_operand.vmem [shape: f32[2,40,32], index: 0, kind: input, shape index: {}]
  %s1 = inlined_call_operand.vmem [shape: f32[2,176,128], index: 1, kind: input, shape index: {}]
  %s2 = inlined_call_operand.vmem [shape: f32[2,128], index: 2, kind: output, shape index: {}]
  %s3 = sld [smem:[#allocation0]]
  $region18: #{bi_encoder_forward.1} parent=0
    _
  %s5 = ssub.s32 1, %s3
  %s6 = scalar_select 0, %s5, %s3
  // Predicated region
  $region2: #{bi_encoder_forward.1} parent=0 // pred_check
    _
  $region3: #{bi_encoder_forward.1} parent=0 // pred_check_branch
    %8 = sbr.rel (0) target = $region5
  $region4: #{bi_encoder_forward.1} parent=0 // pred_region
    _
  $region5: #{bi_encoder_forward.1} parent=0 // pred_fallthru
    _
  // Predicated region
  $region6: #{bi_encoder_forward.1} parent=0 // pred_check
    _
  $region7: #{bi_encoder_forward.1} parent=0 // pred_check_branch
    %10 = sbr.rel (0) target = $region9
  $region8: #{bi_encoder_forward.1} parent=0 // pred_region
    _
  $region9: #{bi_encoder_forward.1} parent=0 // pred_fallthru
    _
  %v11 = vld [vmem:[%s0] sm:$0xff]
  %v12 = vld [vmem:[%s0 + $0x8] sm:$0xff]
  %v13 = vld [vmem:[%s0 + $0x10] sm:$0xff]
  %v14 = vld [vmem:[%s0 + $0x18] sm:$0xff]
  %v15 = vld [vmem:[%s0 + $0x20] sm:$0xf]
  %v16 = vld [vmem:[%s1 + $0xa4] sm:$0x1]
  %v17 = vld [vmem:[%s1 + $0xa5] sm:$0x1]
  %v18 = vld [vmem:[%s1 + $0xa6] sm:$0x1]
  %v19 = vld [vmem:[%s1 + $0xa7] sm:$0x1]
  %v20 = vld [vmem:[%s1 + $0xa8] sm:$0x1]
  %v21 = vld [vmem:[%s1 + $0xa9] sm:$0x1]
  %v22 = vld [vmem:[%s1 + $0xaa] sm:$0x1]
  %v23 = vld [vmem:[%s1 + $0xab] sm:$0x1]
  %v24 = vld [vmem:[%s1 + $0xac] sm:$0x1]
  %v25 = vld [vmem:[%s1 + $0xad] sm:$0x1]
  %v26 = vld [vmem:[%s1 + $0xae] sm:$0x1]
  %v27 = vld [vmem:[%s1] sm:$0xff]
  %v28 = vld [vmem:[%s1 + $0x8] sm:$0xff]
  %v29 = vld [vmem:[%s1 + $0x10] sm:$0xff]
  %v30 = vld [vmem:[%s1 + $0x18] sm:$0xff]
  %35 = vrot.lane.b32.xlu0 %v27, 96
  %v36 = vpop.permute.xlu0 %35
  %37 = vrot.lane.b32.xlu0 %v28, 96
  %v38 = vpop.permute.xlu0 %37
  %39 = vrot.lane.b32.xlu0 %v29, 96
  %v40 = vpop.permute.xlu0 %39
  %41 = vrot.lane.b32.xlu0 %v30, 96
  %v42 = vpop.permute.xlu0 %41
  %vm47 = vcmask 261120
  %v49 = vsel %vm47, %v11, 0
  %v52 = vsel %vm47, %v12, 0
  %v55 = vsel %vm47, %v13, 0
  %v58 = vsel %vm47, %v14, 0
  %60 = vmatprep.subr.mxu0 0.0
  %61 = vmatpush1.msra.mxu0 %v36
  %62 = vmatprep.subr.mxu0 0.0
  %63 = vmatpush1.msra.mxu0 %v38
  %64 = vmatprep.subr.mxu0 0.0
  %65 = vmatpush1.msra.mxu0 %v40
  %66 = vmatprep.subr.mxu0 0.0
  %67 = vmatpush1.msra.mxu0 %v42
  %68 = vmatprep.subr.mxu0 0.0
  %69 = vmatpush1.msra.mxu0 0.0
  %70 = vmatprep.subr.mxu0 0.0
  %71 = vmatpush1.msra.mxu0 0.0
  %72 = vmatprep.subr.mxu0 0.0
  %73 = vmatpush1.msra.mxu0 0.0
  %74 = vmatprep.subr.mxu0 0.0
  %75 = vmatpush1.msra.mxu0 0.0
  %76 = vmatprep.subr.mxu0 0.0
  %77 = vmatpush1.msra.mxu0 0.0
  %78 = vmatprep.subr.mxu0 0.0
  %79 = vmatpush1.msra.mxu0 0.0
  %80 = vmatprep.subr.mxu0 0.0
  %81 = vmatpush1.msra.mxu0 0.0
  %82 = vmatprep.subr.mxu0 0.0
  %83 = vmatpush1.msra.mxu0 0.0
  %84 = vmatprep.subr.mxu0 0.0
  %85 = vmatpush1.msra.mxu0 0.0
  %86 = vmatprep.subr.mxu0 0.0
  %87 = vmatpush1.msra.mxu0 0.0
  %88 = vmatprep.subr.mxu0 0.0
  %89 = vmatpush1.msra.mxu0 0.0
  %90 = vmatprep.subr.mxu0 0.0
  %91 = vmatpush1.msra.mxu0 0.0
  %92 = vmatprep.subr.mxu0 0.0
  %93 = vmatpush1.msra.mxu0 0.0
  %94 = vmatprep.subr.mxu0 0.0
  %95 = vmatpush1.msra.mxu0 0.0
  %96 = vmatprep.subr.mxu0 0.0
  %97 = vmatpush1.msra.mxu0 0.0
  %98 = vmatprep.subr.mxu0 0.0
  %99 = vmatpush1.msra.mxu0 0.0
  %100 = vmatprep.subr.mxu0 0.0
  %101 = vmatpush1.msra.mxu0 0.0
  %102 = vmatprep.subr.mxu0 0.0
  %103 = vmatpush1.msra.mxu0 0.0
  %104 = vmatprep.subr.mxu0 0.0
  %105 = vmatpush1.msra.mxu0 0.0
  %106 = vmatprep.subr.mxu0 0.0
  %107 = vmatpush1.msra.mxu0 0.0
  %108 = vmatprep.subr.mxu0 0.0
  %109 = vmatpush1.msra.mxu0 0.0
  %110 = vmatprep.subr.mxu0 0.0
  %111 = vmatpush1.msra.mxu0 0.0
  %112 = vmatprep.subr.mxu0 0.0
  %113 = vmatpush1.msra.mxu0 0.0
  %114 = vmatprep.subr.mxu0 0.0
  %115 = vmatpush1.msra.mxu0 0.0
  %116 = vmatprep.subr.mxu0 0.0
  %117 = vmatpush1.msra.mxu0 0.0
  %118 = vmatprep.subr.mxu0 0.0
  %119 = vmatpush1.msra.mxu0 0.0
  %120 = vmatprep.subr.mxu0 0.0
  %121 = vmatpush1.msra.mxu0 0.0
  %122 = vmatprep.subr.mxu0 0.0
  %123 = vmatpush1.msra.mxu0 0.0
  %124 = vmatprep.mubr.f32.mxu0 0.0
  %125 = vmatmul.mubr.f32.gmra.mrb[0].mxu0 %v49
  %v126 = vpop.f32.mrb[0].mxu0
  %v127 = vadd.f32 0.0, %v126
  %v128 = vpop.f32.mrb[0].mxu0
  %129 = vmatprep.mubr.f32.mxu0 0.0
  %130 = vmatmul.mubr.f32.gmra.mrb[0].mxu0 %v52
  %v131 = vpop.f32.mrb[0].mxu0
  %v132 = vadd.f32 0.0, %v131
  %v133 = vpop.f32.mrb[0].mxu0
  %134 = vmatprep.mubr.f32.mxu0 0.0
  %135 = vmatmul.mubr.f32.gmra.mrb[0].mxu0 %v55
  %v136 = vpop.f32.mrb[0].mxu0
  %v137 = vadd.f32 0.0, %v136
  %v138 = vpop.f32.mrb[0].mxu0
  %139 = vmatprep.mubr.f32.mxu0 0.0
  %140 = vmatmul.mubr.f32.gmra.mrb[0].mxu0 %v58
  %v141 = vpop.f32.mrb[0].mxu0
  %v142 = vadd.f32 0.0, %v141
  %v143 = vpop.f32.mrb[0].mxu0
  %144 = vdwg.mxu0
  %v145 = vlaneseq
  %v146 = vshrl.u32 %v145, 7
  %v147 = vsub.s32 0, %v146
  %v148 = vrot.slane %v17, %v147
  %v149 = vadd.f32 %v127, %v148
  %v150 = vadd.f32 %v132, %v148
  %v151 = vadd.f32 %v137, %v148
  %v152 = vadd.f32 %v142, %v148
  %v153 = vlaneseq
  %v154 = vshrl.u32 %v153, 7
  %v155 = vsub.s32 0, %v154
  %v156 = vrot.slane %v18, %v155
  %158 = vrot.lane.b32.xlu0 %v156, 32
  %v159 = vpop.permute.xlu0 %158
  %v161 = vadd.f32 %v127, %v159
  %v162 = vadd.f32 %v132, %v159
  %v163 = vadd.f32 %v137, %v159
  %v164 = vadd.f32 %v142, %v159
  %v165 = vlaneseq
  %v166 = vshrl.u32 %v165, 7
  %v167 = vsub.s32 0, %v166
  %v168 = vrot.slane %v16, %v167
  %v169 = vrot.slane %v12, 7
  %vm170 = vcmask 1041409
  %v171 = vsel %vm170, %v169, %v11
  %v172 = vrot.slane %v13, 6
  %vm173 = vcmask 1042434
  %v174 = vsel %vm173, %v172, %v171
  %v175 = vrot.slane %v14, 5
  %vm176 = vcmask 1043459
  %v177 = vsel %vm176, %v175, %v174
  %v178 = vsel %vm47, %v177, 0
  %180 = vmatprep.subr.mxu0 0.0
  %181 = vmatpush1.msra.mxu0 %v27
  %182 = vmatprep.subr.mxu0 0.0
  %183 = vmatpush1.msra.mxu0 %v28
  %184 = vmatprep.subr.mxu0 0.0
  %185 = vmatpush1.msra.mxu0 %v29
  %186 = vmatprep.subr.mxu0 0.0
  %187 = vmatpush1.msra.mxu0 %v30
  %188 = vmatprep.subr.mxu0 0.0
  %189 = vmatpush1.msra.mxu0 0.0
  %190 = vmatprep.subr.mxu0 0.0
  %191 = vmatpush1.msra.mxu0 0.0
  %192 = vmatprep.subr.mxu0 0.0
  %193 = vmatpush1.msra.mxu0 0.0
  %194 = vmatprep.subr.mxu0 0.0
  %195 = vmatpush1.msra.mxu0 0.0
  %196 = vmatprep.subr.mxu0 0.0
  %197 = vmatpush1.msra.mxu0 0.0
  %198 = vmatprep.subr.mxu0 0.0
  %199 = vmatpush1.msra.mxu0 0.0
  %200 = vmatprep.subr.mxu0 0.0
  %201 = vmatpush1.msra.mxu0 0.0
  %202 = vmatprep.subr.mxu0 0.0
  %203 = vmatpush1.msra.mxu0 0.0
  %204 = vmatprep.subr.mxu0 0.0
  %205 = vmatpush1.msra.mxu0 0.0
  %206 = vmatprep.subr.mxu0 0.0
  %207 = vmatpush1.msra.mxu0 0.0
  %208 = vmatprep.subr.mxu0 0.0
  %209 = vmatpush1.msra.mxu0 0.0
  %210 = vmatprep.subr.mxu0 0.0
  %211 = vmatpush1.msra.mxu0 0.0
  %212 = vmatprep.subr.mxu0 0.0
  %213 = vmatpush1.msra.mxu0 0.0
  %214 = vmatprep.subr.mxu0 0.0
  %215 = vmatpush1.msra.mxu0 0.0
  %216 = vmatprep.subr.mxu0 0.0
  %217 = vmatpush1.msra.mxu0 0.0
  %218 = vmatprep.subr.mxu0 0.0
  %219 = vmatpush1.msra.mxu0 0.0
  %220 = vmatprep.subr.mxu0 0.0
  %221 = vmatpush1.msra.mxu0 0.0
  %222 = vmatprep.subr.mxu0 0.0
  %223 = vmatpush1.msra.mxu0 0.0
  %224 = vmatprep.subr.mxu0 0.0
  %225 = vmatpush1.msra.mxu0 0.0
  %226 = vmatprep.subr.mxu0 0.0
  %227 = vmatpush1.msra.mxu0 0.0
  %228 = vmatprep.subr.mxu0 0.0
  %229 = vmatpush1.msra.mxu0 0.0
  %230 = vmatprep.subr.mxu0 0.0
  %231 = vmatpush1.msra.mxu0 0.0
  %232 = vmatprep.subr.mxu0 0.0
  %233 = vmatpush1.msra.mxu0 0.0
  %234 = vmatprep.subr.mxu0 0.0
  %235 = vmatpush1.msra.mxu0 0.0
  %236 = vmatprep.subr.mxu0 0.0
  %237 = vmatpush1.msra.mxu0 0.0
  %238 = vmatprep.subr.mxu0 0.0
  %239 = vmatpush1.msra.mxu0 0.0
  %240 = vmatprep.subr.mxu0 0.0
  %241 = vmatpush1.msra.mxu0 0.0
  %242 = vmatprep.subr.mxu0 0.0
  %243 = vmatpush1.msra.mxu0 0.0
  %244 = vmatprep.mubr.f32.mxu0 0.0
  %245 = vmatmul.mubr.f32.gmra.mrb[0].mxu0 %v178
  %v246 = vpop.f32.mrb[0].mxu0
  %v247 = vadd.f32 %v168, %v246
  %v248 = vpop.f32.mrb[0].mxu0
  %249 = vdwg.mxu0
  %v252 = vunpack.c.l.s4 1966171168
  %v253 = vunpack.c.0.s8 %v252
  %v254 = vlaneseq
  %v255 = vshrl.u32 %v254, 7
  %v256 = vsub.s32 %v253, %v255
  %v257 = vrot.slane %v247, %v256
  %v258 = vcombine.high %v257, %v257
  %v260 = vunpack.c.l.s4 1966171168
  %v261 = vunpack.c.0.s8 %v260
  %v262 = vlaneseq
  %v263 = vshrl.u32 %v262, 7
  %v264 = vsub.s32 %v261, %v263
  %v265 = vrot.slane %v257, %v264
  %v267 = vunpack.c.l.s4 1966171168
  %v268 = vunpack.c.0.s8 %v267
  %v269 = vlaneseq
  %v270 = vshrl.u32 %v269, 7
  %v271 = vsub.s32 %v268, %v270
  %v272 = vrot.slane %v258, %v271
  %v273 = vcombine.high %v265, %v265
  %v274 = vcombine.high %v272, %v272
  %v277 = vunpack.c.l.s4 1966171168
  %v278 = vunpack.c.0.s8 %v277
  %v279 = vlaneseq
  %v280 = vshrl.u32 %v279, 7
  %v281 = vsub.s32 %v278, %v280
  %v282 = vrot.slane %v15, %v281
  %v283 = vcombine.high %v282, %v282
  %v285 = vunpack.c.l.s4 1966171168
  %v286 = vunpack.c.0.s8 %v285
  %v287 = vlaneseq
  %v288 = vshrl.u32 %v287, 7
  %v289 = vsub.s32 %v286, %v288
  %v290 = vrot.slane %v282, %v289
  %v292 = vunpack.c.l.s4 1966171168
  %v293 = vunpack.c.0.s8 %v292
  %v294 = vlaneseq
  %v295 = vshrl.u32 %v294, 7
  %v296 = vsub.s32 %v293, %v295
  %v297 = vrot.slane %v283, %v296
  %v298 = vcombine.high %v290, %v290
  %v299 = vcombine.high %v297, %v297
  %v304 = vsel %vm47, %v265, 0
  %v307 = vsel %vm47, %v149, 0
  %309 = vmatprep.subr.mxu0 0.0
  %310 = vmatpush1.xpose.msra.mxu0 %v307
  %311 = vmatprep.subr.mxu0 0.0
  %312 = vmatpush1.xpose.msra.mxu0 0.0
  %313 = vmatprep.subr.mxu0 0.0
  %314 = vmatpush1.xpose.msra.mxu0 0.0
  %315 = vmatprep.subr.mxu0 0.0
  %316 = vmatpush1.xpose.msra.mxu0 0.0
  %317 = vmatprep.subr.mxu0 0.0
  %318 = vmatpush1.xpose.msra.mxu0 0.0
  %319 = vmatprep.subr.mxu0 0.0
  %320 = vmatpush1.xpose.msra.mxu0 0.0
  %321 = vmatprep.subr.mxu0 0.0
  %322 = vmatpush1.xpose.msra.mxu0 0.0
  %323 = vmatprep.subr.mxu0 0.0
  %324 = vmatpush1.xpose.msra.mxu0 0.0
  %325 = vmatprep.subr.mxu0 0.0
  %326 = vmatpush1.xpose.msra.mxu0 0.0
  %327 = vmatprep.subr.mxu0 0.0
  %328 = vmatpush1.xpose.msra.mxu0 0.0
  %329 = vmatprep.subr.mxu0 0.0
  %330 = vmatpush1.xpose.msra.mxu0 0.0
  %331 = vmatprep.subr.mxu0 0.0
  %332 = vmatpush1.xpose.msra.mxu0 0.0
  %333 = vmatprep.subr.mxu0 0.0
  %334 = vmatpush1.xpose.msra.mxu0 0.0
  %335 = vmatprep.subr.mxu0 0.0
  %336 = vmatpush1.xpose.msra.mxu0 0.0
  %337 = vmatprep.subr.mxu0 0.0
  %338 = vmatpush1.xpose.msra.mxu0 0.0
  %339 = vmatprep.subr.mxu0 0.0
  %340 = vmatpush1.xpose.msra.mxu0 0.0
  %341 = vmatprep.subr.mxu0 0.0
  %342 = vmatpush1.xpose.msra.mxu0 0.0
  %343 = vmatprep.subr.mxu0 0.0
  %344 = vmatpush1.xpose.msra.mxu0 0.0
  %345 = vmatprep.subr.mxu0 0.0
  %346 = vmatpush1.xpose.msra.mxu0 0.0
  %347 = vmatprep.subr.mxu0 0.0
  %348 = vmatpush1.xpose.msra.mxu0 0.0
  %349 = vmatprep.subr.mxu0 0.0
  %350 = vmatpush1.xpose.msra.mxu0 0.0
  %351 = vmatprep.subr.mxu0 0.0
  %352 = vmatpush1.xpose.msra.mxu0 0.0
  %353 = vmatprep.subr.mxu0 0.0
  %354 = vmatpush1.xpose.msra.mxu0 0.0
  %355 = vmatprep.subr.mxu0 0.0
  %356 = vmatpush1.xpose.msra.mxu0 0.0
  %357 = vmatprep.subr.mxu0 0.0
  %358 = vmatpush1.xpose.msra.mxu0 0.0
  %359 = vmatprep.subr.mxu0 0.0
  %360 = vmatpush1.xpose.msra.mxu0 0.0
  %361 = vmatprep.subr.mxu0 0.0
  %362 = vmatpush1.xpose.msra.mxu0 0.0
  %363 = vmatprep.subr.mxu0 0.0
  %364 = vmatpush1.xpose.msra.mxu0 0.0
  %365 = vmatprep.subr.mxu0 0.0
  %366 = vmatpush1.xpose.msra.mxu0 0.0
  %367 = vmatprep.subr.mxu0 0.0
  %368 = vmatpush1.xpose.msra.mxu0 0.0
  %369 = vmatprep.subr.mxu0 0.0
  %370 = vmatpush1.xpose.msra.mxu0 0.0
  %371 = vmatprep.subr.mxu0 0.0
  %372 = vmatpush1.xpose.msra.mxu0 0.0
  %373 = vmatprep.mubr.f32.mxu0 0.0
  %374 = vmatmul.mubr.f32.gmra.mrb[0].mxu0 %v304
  %v375 = vpop.f32.mrb[0].mxu0
  %v376 = vadd.f32 %v290, %v375
  %v377 = vpop.f32.mrb[0].mxu0
  %378 = vdwg.mxu0
  %v379 = vsel %vm47, %v272, 0
  %v382 = vsel %vm47, %v150, 0
  %384 = vmatprep.subr.mxu0 0.0
  %385 = vmatpush1.xpose.msra.mxu0 %v382
  %386 = vmatprep.subr.mxu0 0.0
  %387 = vmatpush1.xpose.msra.mxu0 0.0
  %388 = vmatprep.subr.mxu0 0.0
  %389 = vmatpush1.xpose.msra.mxu0 0.0
  %390 = vmatprep.subr.mxu0 0.0
  %391 = vmatpush1.xpose.msra.mxu0 0.0
  %392 = vmatprep.subr.mxu0 0.0
  %393 = vmatpush1.xpose.msra.mxu0 0.0
  %394 = vmatprep.subr.mxu0 0.0
  %395 = vmatpush1.xpose.msra.mxu0 0.0
  %396 = vmatprep.subr.mxu0 0.0
  %397 = vmatpush1.xpose.msra.mxu0 0.0
  %398 = vmatprep.subr.mxu0 0.0
  %399 = vmatpush1.xpose.msra.mxu0 0.0
  %400 = vmatprep.subr.mxu0 0.0
  %401 = vmatpush1.xpose.msra.mxu0 0.0
  %402 = vmatprep.subr.mxu0 0.0
  %403 = vmatpush1.xpose.msra.mxu0 0.0
  %404 = vmatprep.subr.mxu0 0.0
  %405 = vmatpush1.xpose.msra.mxu0 0.0
  %406 = vmatprep.subr.mxu0 0.0
  %407 = vmatpush1.xpose.msra.mxu0 0.0
  %408 = vmatprep.subr.mxu0 0.0
  %409 = vmatpush1.xpose.msra.mxu0 0.0
  %410 = vmatprep.subr.mxu0 0.0
  %411 = vmatpush1.xpose.msra.mxu0 0.0
  %412 = vmatprep.subr.mxu0 0.0
  %413 = vmatpush1.xpose.msra.mxu0 0.0
  %414 = vmatprep.subr.mxu0 0.0
  %415 = vmatpush1.xpose.msra.mxu0 0.0
  %416 = vmatprep.subr.mxu0 0.0
  %417 = vmatpush1.xpose.msra.mxu0 0.0
  %418 = vmatprep.subr.mxu0 0.0
  %419 = vmatpush1.xpose.msra.mxu0 0.0
  %420 = vmatprep.subr.mxu0 0.0
  %421 = vmatpush1.xpose.msra.mxu0 0.0
  %422 = vmatprep.subr.mxu0 0.0
  %423 = vmatpush1.xpose.msra.mxu0 0.0
  %424 = vmatprep.subr.mxu0 0.0
  %425 = vmatpush1.xpose.msra.mxu0 0.0
  %426 = vmatprep.subr.mxu0 0.0
  %427 = vmatpush1.xpose.msra.mxu0 0.0
  %428 = vmatprep.subr.mxu0 0.0
  %429 = vmatpush1.xpose.msra.mxu0 0.0
  %430 = vmatprep.subr.mxu0 0.0
  %431 = vmatpush1.xpose.msra.mxu0 0.0
  %432 = vmatprep.subr.mxu0 0.0
  %433 = vmatpush1.xpose.msra.mxu0 0.0
  %434 = vmatprep.subr.mxu0 0.0
  %435 = vmatpush1.xpose.msra.mxu0 0.0
  %436 = vmatprep.subr.mxu0 0.0
  %437 = vmatpush1.xpose.msra.mxu0 0.0
  %438 = vmatprep.subr.mxu0 0.0
  %439 = vmatpush1.xpose.msra.mxu0 0.0
  %440 = vmatprep.subr.mxu0 0.0
  %441 = vmatpush1.xpose.msra.mxu0 0.0
  %442 = vmatprep.subr.mxu0 0.0
  %443 = vmatpush1.xpose.msra.mxu0 0.0
  %444 = vmatprep.subr.mxu0 0.0
  %445 = vmatpush1.xpose.msra.mxu0 0.0
  %446 = vmatprep.subr.mxu0 0.0
  %447 = vmatpush1.xpose.msra.mxu0 0.0
  %448 = vmatprep.mubr.f32.mxu0 0.0
  %449 = vmatmul.mubr.f32.gmra.mrb[0].mxu0 %v379
  %v450 = vpop.f32.mrb[0].mxu0
  %v451 = vadd.f32 %v297, %v450
  %v452 = vpop.f32.mrb[0].mxu0
  %453 = vdwg.mxu0
  %v454 = vsel %vm47, %v273, 0
  %v457 = vsel %vm47, %v151, 0
  %459 = vmatprep.subr.mxu0 0.0
  %460 = vmatpush1.xpose.msra.mxu0 %v457
  %461 = vmatprep.subr.mxu0 0.0
  %462 = vmatpush1.xpose.msra.mxu0 0.0
  %463 = vmatprep.subr.mxu0 0.0
  %464 = vmatpush1.xpose.msra.mxu0 0.0
  %465 = vmatprep.subr.mxu0 0.0
  %466 = vmatpush1.xpose.msra.mxu0 0.0
  %467 = vmatprep.subr.mxu0 0.0
  %468 = vmatpush1.xpose.msra.mxu0 0.0
  %469 = vmatprep.subr.mxu0 0.0
  %470 = vmatpush1.xpose.msra.mxu0 0.0
  %471 = vmatprep.subr.mxu0 0.0
  %472 = vmatpush1.xpose.msra.mxu0 0.0
  %473 = vmatprep.subr.mxu0 0.0
  %474 = vmatpush1.xpose.msra.mxu0 0.0
  %475 = vmatprep.subr.mxu0 0.0
  %476 = vmatpush1.xpose.msra.mxu0 0.0
  %477 = vmatprep.subr.mxu0 0.0
  %478 = vmatpush1.xpose.msra.mxu0 0.0
  %479 = vmatprep.subr.mxu0 0.0
  %480 = vmatpush1.xpose.msra.mxu0 0.0
  %481 = vmatprep.subr.mxu0 0.0
  %482 = vmatpush1.xpose.msra.mxu0 0.0
  %483 = vmatprep.subr.mxu0 0.0
  %484 = vmatpush1.xpose.msra.mxu0 0.0
  %485 = vmatprep.subr.mxu0 0.0
  %486 = vmatpush1.xpose.msra.mxu0 0.0
  %487 = vmatprep.subr.mxu0 0.0
  %488 = vmatpush1.xpose.msra.mxu0 0.0
  %489 = vmatprep.subr.mxu0 0.0
  %490 = vmatpush1.xpose.msra.mxu0 0.0
  %491 = vmatprep.subr.mxu0 0.0
  %492 = vmatpush1.xpose.msra.mxu0 0.0
  %493 = vmatprep.subr.mxu0 0.0
  %494 = vmatpush1.xpose.msra.mxu0 0.0
  %495 = vmatprep.subr.mxu0 0.0
  %496 = vmatpush1.xpose.msra.mxu0 0.0
  %497 = vmatprep.subr.mxu0 0.0
  %498 = vmatpush1.xpose.msra.mxu0 0.0
  %499 = vmatprep.subr.mxu0 0.0
  %500 = vmatpush1.xpose.msra.mxu0 0.0
  %501 = vmatprep.subr.mxu0 0.0
  %502 = vmatpush1.xpose.msra.mxu0 0.0
  %503 = vmatprep.subr.mxu0 0.0
  %504 = vmatpush1.xpose.msra.mxu0 0.0
  %505 = vmatprep.subr.mxu0 0.0
  %506 = vmatpush1.xpose.msra.mxu0 0.0
  %507 = vmatprep.subr.mxu0 0.0
  %508 = vmatpush1.xpose.msra.mxu0 0.0
  %509 = vmatprep.subr.mxu0 0.0
  %510 = vmatpush1.xpose.msra.mxu0 0.0
  %511 = vmatprep.subr.mxu0 0.0
  %512 = vmatpush1.xpose.msra.mxu0 0.0
  %513 = vmatprep.subr.mxu0 0.0
  %514 = vmatpush1.xpose.msra.mxu0 0.0
  %515 = vmatprep.subr.mxu0 0.0
  %516 = vmatpush1.xpose.msra.mxu0 0.0
  %517 = vmatprep.subr.mxu0 0.0
  %518 = vmatpush1.xpose.msra.mxu0 0.0
  %519 = vmatprep.subr.mxu0 0.0
  %520 = vmatpush1.xpose.msra.mxu0 0.0
  %521 = vmatprep.subr.mxu0 0.0
  %522 = vmatpush1.xpose.msra.mxu0 0.0
  %523 = vmatprep.mubr.f32.mxu0 0.0
  %524 = vmatmul.mubr.f32.gmra.mrb[0].mxu0 %v454
  %v525 = vpop.f32.mrb[0].mxu0
  %v526 = vadd.f32 %v298, %v525
  %v527 = vpop.f32.mrb[0].mxu0
  %528 = vdwg.mxu0
  %v529 = vsel %vm47, %v274, 0
  %v532 = vsel %vm47, %v152, 0
  %534 = vmatprep.subr.mxu0 0.0
  %535 = vmatpush1.xpose.msra.mxu0 %v532
  %536 = vmatprep.subr.mxu0 0.0
  %537 = vmatpush1.xpose.msra.mxu0 0.0
  %538 = vmatprep.subr.mxu0 0.0
  %539 = vmatpush1.xpose.msra.mxu0 0.0
  %540 = vmatprep.subr.mxu0 0.0
  %541 = vmatpush1.xpose.msra.mxu0 0.0
  %542 = vmatprep.subr.mxu0 0.0
  %543 = vmatpush1.xpose.msra.mxu0 0.0
  %544 = vmatprep.subr.mxu0 0.0
  %545 = vmatpush1.xpose.msra.mxu0 0.0
  %546 = vmatprep.subr.mxu0 0.0
  %547 = vmatpush1.xpose.msra.mxu0 0.0
  %548 = vmatprep.subr.mxu0 0.0
  %549 = vmatpush1.xpose.msra.mxu0 0.0
  %550 = vmatprep.subr.mxu0 0.0
  %551 = vmatpush1.xpose.msra.mxu0 0.0
  %552 = vmatprep.subr.mxu0 0.0
  %553 = vmatpush1.xpose.msra.mxu0 0.0
  %554 = vmatprep.subr.mxu0 0.0
  %555 = vmatpush1.xpose.msra.mxu0 0.0
  %556 = vmatprep.subr.mxu0 0.0
  %557 = vmatpush1.xpose.msra.mxu0 0.0
  %558 = vmatprep.subr.mxu0 0.0
  %559 = vmatpush1.xpose.msra.mxu0 0.0
  %560 = vmatprep.subr.mxu0 0.0
  %561 = vmatpush1.xpose.msra.mxu0 0.0
  %562 = vmatprep.subr.mxu0 0.0
  %563 = vmatpush1.xpose.msra.mxu0 0.0
  %564 = vmatprep.subr.mxu0 0.0
  %565 = vmatpush1.xpose.msra.mxu0 0.0
  %566 = vmatprep.subr.mxu0 0.0
  %567 = vmatpush1.xpose.msra.mxu0 0.0
  %568 = vmatprep.subr.mxu0 0.0
  %569 = vmatpush1.xpose.msra.mxu0 0.0
  %570 = vmatprep.subr.mxu0 0.0
  %571 = vmatpush1.xpose.msra.mxu0 0.0
  %572 = vmatprep.subr.mxu0 0.0
  %573 = vmatpush1.xpose.msra.mxu0 0.0
  %574 = vmatprep.subr.mxu0 0.0
  %575 = vmatpush1.xpose.msra.mxu0 0.0
  %576 = vmatprep.subr.mxu0 0.0
  %577 = vmatpush1.xpose.msra.mxu0 0.0
  %578 = vmatprep.subr.mxu0 0.0
  %579 = vmatpush1.xpose.msra.mxu0 0.0
  %580 = vmatprep.subr.mxu0 0.0
  %581 = vmatpush1.xpose.msra.mxu0 0.0
  %582 = vmatprep.subr.mxu0 0.0
  %583 = vmatpush1.xpose.msra.mxu0 0.0
  %584 = vmatprep.subr.mxu0 0.0
  %585 = vmatpush1.xpose.msra.mxu0 0.0
  %586 = vmatprep.subr.mxu0 0.0
  %587 = vmatpush1.xpose.msra.mxu0 0.0
  %588 = vmatprep.subr.mxu0 0.0
  %589 = vmatpush1.xpose.msra.mxu0 0.0
  %590 = vmatprep.subr.mxu0 0.0
  %591 = vmatpush1.xpose.msra.mxu0 0.0
  %592 = vmatprep.subr.mxu0 0.0
  %593 = vmatpush1.xpose.msra.mxu0 0.0
  %594 = vmatprep.subr.mxu0 0.0
  %595 = vmatpush1.xpose.msra.mxu0 0.0
  %596 = vmatprep.subr.mxu0 0.0
  %597 = vmatpush1.xpose.msra.mxu0 0.0
  %598 = vmatprep.mubr.f32.mxu0 0.0
  %599 = vmatmul.mubr.f32.gmra.mrb[0].mxu0 %v529
  %v600 = vpop.f32.mrb[0].mxu0
  %v601 = vadd.f32 %v299, %v600
  %v602 = vpop.f32.mrb[0].mxu0
  %603 = vdwg.mxu0
  %vm604 = vcmask 57344
  %v605 = vsel %vm604, %v376, -inf
  %606 = vmax.xlane.f32.xlu0 %v605
  %v607 = vpop.xlane.xlu0 %606
  %v608 = vsel %vm604, %v451, -inf
  %609 = vmax.xlane.f32.xlu0 %v608
  %v610 = vpop.xlane.xlu0 %609
  %v611 = vsel %vm604, %v526, -inf
  %612 = vmax.xlane.f32.xlu0 %v611
  %v613 = vpop.xlane.xlu0 %612
  %v614 = vsel %vm604, %v601, -inf
  %615 = vmax.xlane.f32.xlu0 %v614
  %v616 = vpop.xlane.xlu0 %615
  %v617 = vsub.f32 %v376, %v607
  %v618 = vsub.f32 %v451, %v610
  %v619 = vsub.f32 %v526, %v613
  %v620 = vsub.f32 %v601, %v616
  %v621 = vmul.f32 %v617, 1.442695
  %v622 = vpow.pop %v621
  %v623 = vmul.f32 %v618, 1.442695
  %v624 = vpow.pop %v623
  %v625 = vmul.f32 %v619, 1.442695
  %v626 = vpow.pop %v625
  %v627 = vmul.f32 %v620, 1.442695
  %v628 = vpow.pop %v627
  %v629 = vsel %vm604, %v622, 0.0
  %630 = vadd.xlane.f32.xlu0 %v629
  %v631 = vpop.xlane.xlu0 %630
  %v632 = vsel %vm604, %v624, 0.0
  %633 = vadd.xlane.f32.xlu0 %v632
  %v634 = vpop.xlane.xlu0 %633
  %v635 = vsel %vm604, %v626, 0.0
  %636 = vadd.xlane.f32.xlu0 %v635
  %v637 = vpop.xlane.xlu0 %636
  %v638 = vsel %vm604, %v628, 0.0
  %639 = vadd.xlane.f32.xlu0 %v638
  %v640 = vpop.xlane.xlu0 %639
  %v641 = vrcp.pop %v631
  %v642 = vrcp.pop %v634
  %v643 = vrcp.pop %v637
  %v644 = vrcp.pop %v640
  %v645 = vmul.f32 %v622, %v641
  %v646 = vmul.f32 %v624, %v642
  %v647 = vmul.f32 %v626, %v643
  %v648 = vmul.f32 %v628, %v644
  %650 = vrot.lane.b32.xlu0 %v161, 96
  %v651 = vpop.permute.xlu0 %650
  %vm653 = vcmask 64512
  %v655 = vsel %vm653, %v645, 0
  %657 = vmatprep.subr.mxu0 0.0
  %658 = vmatpush1.msra.mxu0 %v651
  %659 = vmatprep.subr.mxu0 0.0
  %660 = vmatpush1.msra.mxu0 0.0
  %661 = vmatprep.subr.mxu0 0.0
  %662 = vmatpush1.msra.mxu0 0.0
  %663 = vmatprep.subr.mxu0 0.0
  %664 = vmatpush1.msra.mxu0 0.0
  %665 = vmatprep.subr.mxu0 0.0
  %666 = vmatpush1.msra.mxu0 0.0
  %667 = vmatprep.subr.mxu0 0.0
  %668 = vmatpush1.msra.mxu0 0.0
  %669 = vmatprep.subr.mxu0 0.0
  %670 = vmatpush1.msra.mxu0 0.0
  %671 = vmatprep.subr.mxu0 0.0
  %672 = vmatpush1.msra.mxu0 0.0
  %673 = vmatprep.subr.mxu0 0.0
  %674 = vmatpush1.msra.mxu0 0.0
  %675 = vmatprep.subr.mxu0 0.0
  %676 = vmatpush1.msra.mxu0 0.0
  %677 = vmatprep.subr.mxu0 0.0
  %678 = vmatpush1.msra.mxu0 0.0
  %679 = vmatprep.subr.mxu0 0.0
  %680 = vmatpush1.msra.mxu0 0.0
  %681 = vmatprep.subr.mxu0 0.0
  %682 = vmatpush1.msra.mxu0 0.0
  %683 = vmatprep.subr.mxu0 0.0
  %684 = vmatpush1.msra.mxu0 0.0
  %685 = vmatprep.subr.mxu0 0.0
  %686 = vmatpush1.msra.mxu0 0.0
  %687 = vmatprep.subr.mxu0 0.0
  %688 = vmatpush1.msra.mxu0 0.0
  %689 = vmatprep.subr.mxu0 0.0
  %690 = vmatpush1.msra.mxu0 0.0
  %691 = vmatprep.subr.mxu0 0.0
  %692 = vmatpush1.msra.mxu0 0.0
  %693 = vmatprep.subr.mxu0 0.0
  %694 = vmatpush1.msra.mxu0 0.0
  %695 = vmatprep.subr.mxu0 0.0
  %696 = vmatpush1.msra.mxu0 0.0
  %697 = vmatprep.subr.mxu0 0.0
  %698 = vmatpush1.msra.mxu0 0.0
  %699 = vmatprep.subr.mxu0 0.0
  %700 = vmatpush1.msra.mxu0 0.0
  %701 = vmatprep.subr.mxu0 0.0
  %702 = vmatpush1.msra.mxu0 0.0
  %703 = vmatprep.subr.mxu0 0.0
  %704 = vmatpush1.msra.mxu0 0.0
  %705 = vmatprep.subr.mxu0 0.0
  %706 = vmatpush1.msra.mxu0 0.0
  %707 = vmatprep.subr.mxu0 0.0
  %708 = vmatpush1.msra.mxu0 0.0
  %709 = vmatprep.subr.mxu0 0.0
  %710 = vmatpush1.msra.mxu0 0.0
  %711 = vmatprep.subr.mxu0 0.0
  %712 = vmatpush1.msra.mxu0 0.0
  %713 = vmatprep.subr.mxu0 0.0
  %714 = vmatpush1.msra.mxu0 0.0
  %715 = vmatprep.subr.mxu0 0.0
  %716 = vmatpush1.msra.mxu0 0.0
  %717 = vmatprep.subr.mxu0 0.0
  %718 = vmatpush1.msra.mxu0 0.0
  %719 = vmatprep.subr.mxu0 0.0
  %720 = vmatpush1.msra.mxu0 0.0
  %721 = vmatprep.mubr.f32.mxu0 0.0
  %722 = vmatmul.mubr.f32.gmra.mrb[0].mxu0 %v655
  %v723 = vpop.f32.mrb[0].mxu0
  %v724 = vadd.f32 0.0, %v723
  %v725 = vpop.f32.mrb[0].mxu0
  %726 = vdwg.mxu0
  %728 = vrot.lane.b32.xlu0 %v162, 96
  %v729 = vpop.permute.xlu0 %728
  %v732 = vsel %vm653, %v646, 0
  %734 = vmatprep.subr.mxu0 0.0
  %735 = vmatpush1.msra.mxu0 %v729
  %736 = vmatprep.subr.mxu0 0.0
  %737 = vmatpush1.msra.mxu0 0.0
  %738 = vmatprep.subr.mxu0 0.0
  %739 = vmatpush1.msra.mxu0 0.0
  %740 = vmatprep.subr.mxu0 0.0
  %741 = vmatpush1.msra.mxu0 0.0
  %742 = vmatprep.subr.mxu0 0.0
  %743 = vmatpush1.msra.mxu0 0.0
  %744 = vmatprep.subr.mxu0 0.0
  %745 = vmatpush1.msra.mxu0 0.0
  %746 = vmatprep.subr.mxu0 0.0
  %747 = vmatpush1.msra.mxu0 0.0
  %748 = vmatprep.subr.mxu0 0.0
  %749 = vmatpush1.msra.mxu0 0.0
  %750 = vmatprep.subr.mxu0 0.0
  %751 = vmatpush1.msra.mxu0 0.0
  %752 = vmatprep.subr.mxu0 0.0
  %753 = vmatpush1.msra.mxu0 0.0
  %754 = vmatprep.subr.mxu0 0.0
  %755 = vmatpush1.msra.mxu0 0.0
  %756 = vmatprep.subr.mxu0 0.0
  %757 = vmatpush1.msra.mxu0 0.0
  %758 = vmatprep.subr.mxu0 0.0
  %759 = vmatpush1.msra.mxu0 0.0
  %760 = vmatprep.subr.mxu0 0.0
  %761 = vmatpush1.msra.mxu0 0.0
  %762 = vmatprep.subr.mxu0 0.0
  %763 = vmatpush1.msra.mxu0 0.0
  %764 = vmatprep.subr.mxu0 0.0
  %765 = vmatpush1.msra.mxu0 0.0
  %766 = vmatprep.subr.mxu0 0.0
  %767 = vmatpush1.msra.mxu0 0.0
  %768 = vmatprep.subr.mxu0 0.0
  %769 = vmatpush1.msra.mxu0 0.0
  %770 = vmatprep.subr.mxu0 0.0
  %771 = vmatpush1.msra.mxu0 0.0
  %772 = vmatprep.subr.mxu0 0.0
  %773 = vmatpush1.msra.mxu0 0.0
  %774 = vmatprep.subr.mxu0 0.0
  %775 = vmatpush1.msra.mxu0 0.0
  %776 = vmatprep.subr.mxu0 0.0
  %777 = vmatpush1.msra.mxu0 0.0
  %778 = vmatprep.subr.mxu0 0.0
  %779 = vmatpush1.msra.mxu0 0.0
  %780 = vmatprep.subr.mxu0 0.0
  %781 = vmatpush1.msra.mxu0 0.0
  %782 = vmatprep.subr.mxu0 0.0
  %783 = vmatpush1.msra.mxu0 0.0
  %784 = vmatprep.subr.mxu0 0.0
  %785 = vmatpush1.msra.mxu0 0.0
  %786 = vmatprep.subr.mxu0 0.0
  %787 = vmatpush1.msra.mxu0 0.0
  %788 = vmatprep.subr.mxu0 0.0
  %789 = vmatpush1.msra.mxu0 0.0
  %790 = vmatprep.subr.mxu0 0.0
  %791 = vmatpush1.msra.mxu0 0.0
  %792 = vmatprep.subr.mxu0 0.0
  %793 = vmatpush1.msra.mxu0 0.0
  %794 = vmatprep.subr.mxu0 0.0
  %795 = vmatpush1.msra.mxu0 0.0
  %796 = vmatprep.subr.mxu0 0.0
  %797 = vmatpush1.msra.mxu0 0.0
  %798 = vmatprep.mubr.f32.mxu0 0.0
  %799 = vmatmul.mubr.f32.gmra.mrb[0].mxu0 %v732
  %v800 = vpop.f32.mrb[0].mxu0
  %v801 = vadd.f32 0.0, %v800
  %v802 = vpop.f32.mrb[0].mxu0
  %803 = vdwg.mxu0
  %805 = vrot.lane.b32.xlu0 %v163, 96
  %v806 = vpop.permute.xlu0 %805
  %v809 = vsel %vm653, %v647, 0
  %811 = vmatprep.subr.mxu0 0.0
  %812 = vmatpush1.msra.mxu0 %v806
  %813 = vmatprep.subr.mxu0 0.0
  %814 = vmatpush1.msra.mxu0 0.0
  %815 = vmatprep.subr.mxu0 0.0
  %816 = vmatpush1.msra.mxu0 0.0
  %817 = vmatprep.subr.mxu0 0.0
  %818 = vmatpush1.msra.mxu0 0.0
  %819 = vmatprep.subr.mxu0 0.0
  %820 = vmatpush1.msra.mxu0 0.0
  %821 = vmatprep.subr.mxu0 0.0
  %822 = vmatpush1.msra.mxu0 0.0
  %823 = vmatprep.subr.mxu0 0.0
  %824 = vmatpush1.msra.mxu0 0.0
  %825 = vmatprep.subr.mxu0 0.0
  %826 = vmatpush1.msra.mxu0 0.0
  %827 = vmatprep.subr.mxu0 0.0
  %828 = vmatpush1.msra.mxu0 0.0
  %829 = vmatprep.subr.mxu0 0.0
  %830 = vmatpush1.msra.mxu0 0.0
  %831 = vmatprep.subr.mxu0 0.0
  %832 = vmatpush1.msra.mxu0 0.0
  %833 = vmatprep.subr.mxu0 0.0
  %834 = vmatpush1.msra.mxu0 0.0
  %835 = vmatprep.subr.mxu0 0.0
  %836 = vmatpush1.msra.mxu0 0.0
  %837 = vmatprep.subr.mxu0 0.0
  %838 = vmatpush1.msra.mxu0 0.0
  %839 = vmatprep.subr.mxu0 0.0
  %840 = vmatpush1.msra.mxu0 0.0
  %841 = vmatprep.subr.mxu0 0.0
  %842 = vmatpush1.msra.mxu0 0.0
  %843 = vmatprep.subr.mxu0 0.0
  %844 = vmatpush1.msra.mxu0 0.0
  %845 = vmatprep.subr.mxu0 0.0
  %846 = vmatpush1.msra.mxu0 0.0
  %847 = vmatprep.subr.mxu0 0.0
  %848 = vmatpush1.msra.mxu0 0.0
  %849 = vmatprep.subr.mxu0 0.0
  %850 = vmatpush1.msra.mxu0 0.0
  %851 = vmatprep.subr.mxu0 0.0
  %852 = vmatpush1.msra.mxu0 0.0
  %853 = vmatprep.subr.mxu0 0.0
  %854 = vmatpush1.msra.mxu0 0.0
  %855 = vmatprep.subr.mxu0 0.0
  %856 = vmatpush1.msra.mxu0 0.0
  %857 = vmatprep.subr.mxu0 0.0
  %858 = vmatpush1.msra.mxu0 0.0
  %859 = vmatprep.subr.mxu0 0.0
  %860 = vmatpush1.msra.mxu0 0.0
  %861 = vmatprep.subr.mxu0 0.0
  %862 = vmatpush1.msra.mxu0 0.0
  %863 = vmatprep.subr.mxu0 0.0
  %864 = vmatpush1.msra.mxu0 0.0
  %865 = vmatprep.subr.mxu0 0.0
  %866 = vmatpush1.msra.mxu0 0.0
  %867 = vmatprep.subr.mxu0 0.0
  %868 = vmatpush1.msra.mxu0 0.0
  %869 = vmatprep.subr.mxu0 0.0
  %870 = vmatpush1.msra.mxu0 0.0
  %871 = vmatprep.subr.mxu0 0.0
  %872 = vmatpush1.msra.mxu0 0.0
  %873 = vmatprep.subr.mxu0 0.0
  %874 = vmatpush1.msra.mxu0 0.0
  %875 = vmatprep.mubr.f32.mxu0 0.0
  %876 = vmatmul.mubr.f32.gmra.mrb[0].mxu0 %v809
  %v877 = vpop.f32.mrb[0].mxu0
  %v878 = vadd.f32 0.0, %v877
  %v879 = vpop.f32.mrb[0].mxu0
  %880 = vdwg.mxu0
  %882 = vrot.lane.b32.xlu0 %v164, 96
  %v883 = vpop.permute.xlu0 %882
  %v886 = vsel %vm653, %v648, 0
  %888 = vmatprep.subr.mxu0 0.0
  %889 = vmatpush1.msra.mxu0 %v883
  %890 = vmatprep.subr.mxu0 0.0
  %891 = vmatpush1.msra.mxu0 0.0
  %892 = vmatprep.subr.mxu0 0.0
  %893 = vmatpush1.msra.mxu0 0.0
  %894 = vmatprep.subr.mxu0 0.0
  %895 = vmatpush1.msra.mxu0 0.0
  %896 = vmatprep.subr.mxu0 0.0
  %897 = vmatpush1.msra.mxu0 0.0
  %898 = vmatprep.subr.mxu0 0.0
  %899 = vmatpush1.msra.mxu0 0.0
  %900 = vmatprep.subr.mxu0 0.0
  %901 = vmatpush1.msra.mxu0 0.0
  %902 = vmatprep.subr.mxu0 0.0
  %903 = vmatpush1.msra.mxu0 0.0
  %904 = vmatprep.subr.mxu0 0.0
  %905 = vmatpush1.msra.mxu0 0.0
  %906 = vmatprep.subr.mxu0 0.0
  %907 = vmatpush1.msra.mxu0 0.0
  %908 = vmatprep.subr.mxu0 0.0
  %909 = vmatpush1.msra.mxu0 0.0
  %910 = vmatprep.subr.mxu0 0.0
  %911 = vmatpush1.msra.mxu0 0.0
  %912 = vmatprep.subr.mxu0 0.0
  %913 = vmatpush1.msra.mxu0 0.0
  %914 = vmatprep.subr.mxu0 0.0
  %915 = vmatpush1.msra.mxu0 0.0
  %916 = vmatprep.subr.mxu0 0.0
  %917 = vmatpush1.msra.mxu0 0.0
  %918 = vmatprep.subr.mxu0 0.0
  %919 = vmatpush1.msra.mxu0 0.0
  %920 = vmatprep.subr.mxu0 0.0
  %921 = vmatpush1.msra.mxu0 0.0
  %922 = vmatprep.subr.mxu0 0.0
  %923 = vmatpush1.msra.mxu0 0.0
  %924 = vmatprep.subr.mxu0 0.0
  %925 = vmatpush1.msra.mxu0 0.0
  %926 = vmatprep.subr.mxu0 0.0
  %927 = vmatpush1.msra.mxu0 0.0
  %928 = vmatprep.subr.mxu0 0.0
  %929 = vmatpush1.msra.mxu0 0.0
  %930 = vmatprep.subr.mxu0 0.0
  %931 = vmatpush1.msra.mxu0 0.0
  %932 = vmatprep.subr.mxu0 0.0
  %933 = vmatpush1.msra.mxu0 0.0
  %934 = vmatprep.subr.mxu0 0.0
  %935 = vmatpush1.msra.mxu0 0.0
  %936 = vmatprep.subr.mxu0 0.0
  %937 = vmatpush1.msra.mxu0 0.0
  %938 = vmatprep.subr.mxu0 0.0
  %939 = vmatpush1.msra.mxu0 0.0
  %940 = vmatprep.subr.mxu0 0.0
  %941 = vmatpush1.msra.mxu0 0.0
  %942 = vmatprep.subr.mxu0 0.0
  %943 = vmatpush1.msra.mxu0 0.0
  %944 = vmatprep.subr.mxu0 0.0
  %945 = vmatpush1.msra.mxu0 0.0
  %946 = vmatprep.subr.mxu0 0.0
  %947 = vmatpush1.msra.mxu0 0.0
  %948 = vmatprep.subr.mxu0 0.0
  %949 = vmatpush1.msra.mxu0 0.0
  %950 = vmatprep.subr.mxu0 0.0
  %951 = vmatpush1.msra.mxu0 0.0
  %952 = vmatprep.mubr.f32.mxu0 0.0
  %953 = vmatmul.mubr.f32.gmra.mrb[0].mxu0 %v886
  %v954 = vpop.f32.mrb[0].mxu0
  %v955 = vadd.f32 0.0, %v954
  %v956 = vpop.f32.mrb[0].mxu0
  %957 = vdwg.mxu0
  %v958 = vld [vmem:[%s1] sm:$0xff]
  %v959 = vld [vmem:[%s1 + $0x8] sm:$0xff]
  %v960 = vld [vmem:[%s1 + $0x10] sm:$0xff]
  %v961 = vld [vmem:[%s1 + $0x18] sm:$0xff]
  %v962 = vlaneseq
  %v963 = vshrl.u32 %v962, 7
  %v964 = vsub.s32 0, %v963
  %v965 = vrot.slane %v19, %v964
  %v970 = vrot.slane %v801, 7
  %v971 = vsel %vm170, %v970, %v724
  %v972 = vrot.slane %v878, 6
  %v973 = vsel %vm173, %v972, %v971
  %v974 = vrot.slane %v955, 5
  %v975 = vsel %vm176, %v974, %v973
  %980 = vrot.lane.b32.xlu0 %v958, 32
  %v981 = vpop.permute.xlu0 %980
  %982 = vrot.lane.b32.xlu0 %v959, 32
  %v983 = vpop.permute.xlu0 %982
  %984 = vrot.lane.b32.xlu0 %v960, 32
  %v985 = vpop.permute.xlu0 %984
  %986 = vrot.lane.b32.xlu0 %v961, 32
  %v987 = vpop.permute.xlu0 %986
  %v992 = vsel %vm47, %v975, 0
  %994 = vmatprep.subr.mxu0 0.0
  %995 = vmatpush1.msra.mxu0 %v981
  %996 = vmatprep.subr.mxu0 0.0
  %997 = vmatpush1.msra.mxu0 %v983
  %998 = vmatprep.subr.mxu0 0.0
  %999 = vmatpush1.msra.mxu0 %v985
  %1000 = vmatprep.subr.mxu0 0.0
  %1001 = vmatpush1.msra.mxu0 %v987
  %1002 = vmatprep.subr.mxu0 0.0
  %1003 = vmatpush1.msra.mxu0 0.0
  %1004 = vmatprep.subr.mxu0 0.0
  %1005 = vmatpush1.msra.mxu0 0.0
  %1006 = vmatprep.subr.mxu0 0.0
  %1007 = vmatpush1.msra.mxu0 0.0
  %1008 = vmatprep.subr.mxu0 0.0
  %1009 = vmatpush1.msra.mxu0 0.0
  %1010 = vmatprep.subr.mxu0 0.0
  %1011 = vmatpush1.msra.mxu0 0.0
  %1012 = vmatprep.subr.mxu0 0.0
  %1013 = vmatpush1.msra.mxu0 0.0
  %1014 = vmatprep.subr.mxu0 0.0
  %1015 = vmatpush1.msra.mxu0 0.0
  %1016 = vmatprep.subr.mxu0 0.0
  %1017 = vmatpush1.msra.mxu0 0.0
  %1018 = vmatprep.subr.mxu0 0.0
  %1019 = vmatpush1.msra.mxu0 0.0
  %1020 = vmatprep.subr.mxu0 0.0
  %1021 = vmatpush1.msra.mxu0 0.0
  %1022 = vmatprep.subr.mxu0 0.0
  %1023 = vmatpush1.msra.mxu0 0.0
  %1024 = vmatprep.subr.mxu0 0.0
  %1025 = vmatpush1.msra.mxu0 0.0
  %1026 = vmatprep.subr.mxu0 0.0
  %1027 = vmatpush1.msra.mxu0 0.0
  %1028 = vmatprep.subr.mxu0 0.0
  %1029 = vmatpush1.msra.mxu0 0.0
  %1030 = vmatprep.subr.mxu0 0.0
  %1031 = vmatpush1.msra.mxu0 0.0
  %1032 = vmatprep.subr.mxu0 0.0
  %1033 = vmatpush1.msra.mxu0 0.0
  %1034 = vmatprep.subr.mxu0 0.0
  %1035 = vmatpush1.msra.mxu0 0.0
  %1036 = vmatprep.subr.mxu0 0.0
  %1037 = vmatpush1.msra.mxu0 0.0
  %1038 = vmatprep.subr.mxu0 0.0
  %1039 = vmatpush1.msra.mxu0 0.0
  %1040 = vmatprep.subr.mxu0 0.0
  %1041 = vmatpush1.msra.mxu0 0.0
  %1042 = vmatprep.subr.mxu0 0.0
  %1043 = vmatpush1.msra.mxu0 0.0
  %1044 = vmatprep.subr.mxu0 0.0
  %1045 = vmatpush1.msra.mxu0 0.0
  %1046 = vmatprep.subr.mxu0 0.0
  %1047 = vmatpush1.msra.mxu0 0.0
  %1048 = vmatprep.subr.mxu0 0.0
  %1049 = vmatpush1.msra.mxu0 0.0
  %1050 = vmatprep.subr.mxu0 0.0
  %1051 = vmatpush1.msra.mxu0 0.0
  %1052 = vmatprep.subr.mxu0 0.0
  %1053 = vmatpush1.msra.mxu0 0.0
  %1054 = vmatprep.subr.mxu0 0.0
  %1055 = vmatpush1.msra.mxu0 0.0
  %1056 = vmatprep.subr.mxu0 0.0
  %1057 = vmatpush1.msra.mxu0 0.0
  %1058 = vmatprep.mubr.f32.mxu0 0.0
  %1059 = vmatmul.mubr.f32.gmra.mrb[0].mxu0 %v992
  %v1060 = vpop.f32.mrb[0].mxu0
  %v1061 = vadd.f32 %v965, %v1060
  %v1062 = vpop.f32.mrb[0].mxu0
  %1063 = vdwg.mxu0
  %v1065 = vrot.slane %v1061, 1
  %v1066 = vrot.slane %v1061, 2
  %v1067 = vrot.slane %v1061, 3
  %v1072 = vadd.f32 %v11, %v1061
  %v1073 = vadd.f32 %v12, %v1065
  %v1074 = vadd.f32 %v13, %v1066
  %v1075 = vadd.f32 %v14, %v1067
  %v1080 = vrot.slane %v1073, 7
  %v1081 = vsel %vm170, %v1080, %v1072
  %v1082 = vrot.slane %v1074, 6
  %v1083 = vsel %vm173, %v1082, %v1081
  %v1084 = vrot.slane %v1075, 5
  %v1085 = vsel %vm176, %v1084, %v1083
  %vm1087 = vcmask 257024
  %v1088 = vsel %vm1087, %v1085, 0.0
  %1089 = vadd.xlane.f32.xlu0 %v1088
  %v1090 = vpop.xlane.xlu0 %1089
  %v1091 = vrcp.pop 32.0
  %v1092 = vmul.f32 %v1090, %v1091
  %v1094 = vrot.slane %v1092, 1
  %v1095 = vrot.slane %v1092, 2
  %v1096 = vrot.slane %v1092, 3
  %v1101 = vsub.f32 %v1072, %v1092
  %v1102 = vsub.f32 %v1073, %v1094
  %v1103 = vsub.f32 %v1074, %v1095
  %v1104 = vsub.f32 %v1075, %v1096
  %v1105 = vmul.f32 %v1101, %v1101
  %v1106 = vmul.f32 %v1102, %v1102
  %v1107 = vmul.f32 %v1103, %v1103
  %v1108 = vmul.f32 %v1104, %v1104
  %v1113 = vrot.slane %v1106, 7
  %v1114 = vsel %vm170, %v1113, %v1105
  %v1115 = vrot.slane %v1107, 6
  %v1116 = vsel %vm173, %v1115, %v1114
  %v1117 = vrot.slane %v1108, 5
  %v1118 = vsel %vm176, %v1117, %v1116
  %v1120 = vsel %vm1087, %v1118, 0.0
  %1121 = vadd.xlane.f32.xlu0 %v1120
  %v1122 = vpop.xlane.xlu0 %1121
  %v1123 = vmul.f32 %v1122, %v1091
  %v1124 = vadd.f32 %v1123, 1e-12
  %v1125 = vrsqrt.pop %v1124
  %v1127 = vrot.slane %v1125, 1
  %v1128 = vrot.slane %v1125, 2
  %v1129 = vrot.slane %v1125, 3
  %v1134 = vmul.f32 %v1101, %v1125
  %v1135 = vmul.f32 %v1102, %v1127
  %v1136 = vmul.f32 %v1103, %v1128
  %v1137 = vmul.f32 %v1104, %v1129
  %v1138 = vlaneseq
  %v1139 = vshrl.u32 %v1138, 7
  %v1140 = vsub.s32 0, %v1139
  %v1141 = vrot.slane %v20, %v1140
  %v1142 = vmul.f32 %v1134, %v1141
  %v1143 = vmul.f32 %v1135, %v1141
  %v1144 = vmul.f32 %v1136, %v1141
  %v1145 = vmul.f32 %v1137, %v1141
  %v1146 = vlaneseq
  %v1147 = vshrl.u32 %v1146, 7
  %v1148 = vsub.s32 0, %v1147
  %v1149 = vrot.slane %v21, %v1148
  %v1150 = vadd.f32 %v1142, %v1149
  %v1151 = vadd.f32 %v1143, %v1149
  %v1152 = vadd.f32 %v1144, %v1149
  %v1153 = vadd.f32 %v1145, %v1149
  %v1154 = vld [vmem:[%s1 + $0x20] sm:$0xff]
  %v1155 = vld [vmem:[%s1 + $0x28] sm:$0xff]
  %v1156 = vld [vmem:[%s1 + $0x30] sm:$0xff]
  %v1157 = vld [vmem:[%s1 + $0x38] sm:$0xff]
  %v1158 = vlaneseq
  %v1159 = vshrl.u32 %v1158, 7
  %v1160 = vsub.s32 0, %v1159
  %v1161 = vrot.slane %v22, %v1160
  %v1166 = vrot.slane %v1151, 7
  %v1167 = vsel %vm170, %v1166, %v1150
  %v1168 = vrot.slane %v1152, 6
  %v1169 = vsel %vm173, %v1168, %v1167
  %v1170 = vrot.slane %v1153, 5
  %v1171 = vsel %vm176, %v1170, %v1169
  %v1172 = vsel %vm47, %v1171, 0
  %1174 = vmatprep.subr.mxu0 0.0
  %1175 = vmatpush1.msra.mxu0 %v1154
  %1176 = vmatprep.subr.mxu0 0.0
  %1177 = vmatpush1.msra.mxu0 %v1155
  %1178 = vmatprep.subr.mxu0 0.0
  %1179 = vmatpush1.msra.mxu0 %v1156
  %1180 = vmatprep.subr.mxu0 0.0
  %1181 = vmatpush1.msra.mxu0 %v1157
  %1182 = vmatprep.subr.mxu0 0.0
  %1183 = vmatpush1.msra.mxu0 0.0
  %1184 = vmatprep.subr.mxu0 0.0
  %1185 = vmatpush1.msra.mxu0 0.0
  %1186 = vmatprep.subr.mxu0 0.0
  %1187 = vmatpush1.msra.mxu0 0.0
  %1188 = vmatprep.subr.mxu0 0.0
  %1189 = vmatpush1.msra.mxu0 0.0
  %1190 = vmatprep.subr.mxu0 0.0
  %1191 = vmatpush1.msra.mxu0 0.0
  %1192 = vmatprep.subr.mxu0 0.0
  %1193 = vmatpush1.msra.mxu0 0.0
  %1194 = vmatprep.subr.mxu0 0.0
  %1195 = vmatpush1.msra.mxu0 0.0
  %1196 = vmatprep.subr.mxu0 0.0
  %1197 = vmatpush1.msra.mxu0 0.0
  %1198 = vmatprep.subr.mxu0 0.0
  %1199 = vmatpush1.msra.mxu0 0.0
  %1200 = vmatprep.subr.mxu0 0.0
  %1201 = vmatpush1.msra.mxu0 0.0
  %1202 = vmatprep.subr.mxu0 0.0
  %1203 = vmatpush1.msra.mxu0 0.0
  %1204 = vmatprep.subr.mxu0 0.0
  %1205 = vmatpush1.msra.mxu0 0.0
  %1206 = vmatprep.subr.mxu0 0.0
  %1207 = vmatpush1.msra.mxu0 0.0
  %1208 = vmatprep.subr.mxu0 0.0
  %1209 = vmatpush1.msra.mxu0 0.0
  %1210 = vmatprep.subr.mxu0 0.0
  %1211 = vmatpush1.msra.mxu0 0.0
  %1212 = vmatprep.subr.mxu0 0.0
  %1213 = vmatpush1.msra.mxu0 0.0
  %1214 = vmatprep.subr.mxu0 0.0
  %1215 = vmatpush1.msra.mxu0 0.0
  %1216 = vmatprep.subr.mxu0 0.0
  %1217 = vmatpush1.msra.mxu0 0.0
  %1218 = vmatprep.subr.mxu0 0.0
  %1219 = vmatpush1.msra.mxu0 0.0
  %1220 = vmatprep.subr.mxu0 0.0
  %1221 = vmatpush1.msra.mxu0 0.0
  %1222 = vmatprep.subr.mxu0 0.0
  %1223 = vmatpush1.msra.mxu0 0.0
  %1224 = vmatprep.subr.mxu0 0.0
  %1225 = vmatpush1.msra.mxu0 0.0
  %1226 = vmatprep.subr.mxu0 0.0
  %1227 = vmatpush1.msra.mxu0 0.0
  %1228 = vmatprep.subr.mxu0 0.0
  %1229 = vmatpush1.msra.mxu0 0.0
  %1230 = vmatprep.subr.mxu0 0.0
  %1231 = vmatpush1.msra.mxu0 0.0
  %1232 = vmatprep.subr.mxu0 0.0
  %1233 = vmatpush1.msra.mxu0 0.0
  %1234 = vmatprep.subr.mxu0 0.0
  %1235 = vmatpush1.msra.mxu0 0.0
  %1236 = vmatprep.subr.mxu0 0.0
  %1237 = vmatpush1.msra.mxu0 0.0
  %1238 = vmatprep.mubr.f32.mxu0 0.0
  %1239 = vmatmul.mubr.f32.gmra.mrb[0].mxu0 %v1172
  %v1240 = vpop.f32.mrb[0].mxu0
  %v1241 = vadd.f32 %v1161, %v1240
  %v1242 = vpop.f32.mrb[0].mxu0
  %1243 = vdwg.mxu0
  %v1244 = vmul.f32 %v1241, 0.5
  %v1245 = vmul.f32 %v1241, 0.044715
  %v1246 = vmul.f32 %v1245, %v1241
  %v1247 = vmul.f32 %v1246, %v1241
  %v1248 = vadd.f32 %v1241, %v1247
  %v1249 = vmul.f32 %v1248, 0.7978845
  %v1250 = vtanh.pop %v1249
  %v1251 = vadd.f32 %v1250, 1.0
  %v1252 = vmul.f32 %v1244, %v1251
  %v1253 = vld [vmem:[%s1 + $0x40] sm:$0xff]
  %v1254 = vld [vmem:[%s1 + $0x48] sm:$0xff]
  %v1255 = vld [vmem:[%s1 + $0x50] sm:$0xff]
  %v1256 = vld [vmem:[%s1 + $0x58] sm:$0xff]
  %v1257 = vld [vmem:[%s1 + $0x60] sm:$0xff]
  %v1258 = vld [vmem:[%s1 + $0x68] sm:$0xff]
  %v1259 = vld [vmem:[%s1 + $0x70] sm:$0xff]
  %v1260 = vld [vmem:[%s1 + $0x78] sm:$0xff]
  %v1261 = vlaneseq
  %v1262 = vshrl.u32 %v1261, 7
  %v1263 = vsub.s32 0, %v1262
  %v1264 = vrot.slane %v23, %v1263
  %vm1265 = vcmask 523264
  %v1267 = vsel %vm1265, %v1252, 0
  %1269 = vmatprep.subr.mxu0 0.0
  %1270 = vmatpush1.msra.mxu0 %v1253
  %1271 = vmatprep.subr.mxu0 0.0
  %1272 = vmatpush1.msra.mxu0 %v1254
  %1273 = vmatprep.subr.mxu0 0.0
  %1274 = vmatpush1.msra.mxu0 %v1255
  %1275 = vmatprep.subr.mxu0 0.0
  %1276 = vmatpush1.msra.mxu0 %v1256
  %1277 = vmatprep.subr.mxu0 0.0
  %1278 = vmatpush1.msra.mxu0 %v1257
  %1279 = vmatprep.subr.mxu0 0.0
  %1280 = vmatpush1.msra.mxu0 %v1258
  %1281 = vmatprep.subr.mxu0 0.0
  %1282 = vmatpush1.msra.mxu0 %v1259
  %1283 = vmatprep.subr.mxu0 0.0
  %1284 = vmatpush1.msra.mxu0 %v1260
  %1285 = vmatprep.subr.mxu0 0.0
  %1286 = vmatpush1.msra.mxu0 0.0
  %1287 = vmatprep.subr.mxu0 0.0
  %1288 = vmatpush1.msra.mxu0 0.0
  %1289 = vmatprep.subr.mxu0 0.0
  %1290 = vmatpush1.msra.mxu0 0.0
  %1291 = vmatprep.subr.mxu0 0.0
  %1292 = vmatpush1.msra.mxu0 0.0
  %1293 = vmatprep.subr.mxu0 0.0
  %1294 = vmatpush1.msra.mxu0 0.0
  %1295 = vmatprep.subr.mxu0 0.0
  %1296 = vmatpush1.msra.mxu0 0.0
  %1297 = vmatprep.subr.mxu0 0.0
  %1298 = vmatpush1.msra.mxu0 0.0
  %1299 = vmatprep.subr.mxu0 0.0
  %1300 = vmatpush1.msra.mxu0 0.0
  %1301 = vmatprep.subr.mxu0 0.0
  %1302 = vmatpush1.msra.mxu0 0.0
  %1303 = vmatprep.subr.mxu0 0.0
  %1304 = vmatpush1.msra.mxu0 0.0
  %1305 = vmatprep.subr.mxu0 0.0
  %1306 = vmatpush1.msra.mxu0 0.0
  %1307 = vmatprep.subr.mxu0 0.0
  %1308 = vmatpush1.msra.mxu0 0.0
  %1309 = vmatprep.subr.mxu0 0.0
  %1310 = vmatpush1.msra.mxu0 0.0
  %1311 = vmatprep.subr.mxu0 0.0
  %1312 = vmatpush1.msra.mxu0 0.0
  %1313 = vmatprep.subr.mxu0 0.0
  %1314 = vmatpush1.msra.mxu0 0.0
  %1315 = vmatprep.subr.mxu0 0.0
  %1316 = vmatpush1.msra.mxu0 0.0
  %1317 = vmatprep.subr.mxu0 0.0
  %1318 = vmatpush1.msra.mxu0 0.0
  %1319 = vmatprep.subr.mxu0 0.0
  %1320 = vmatpush1.msra.mxu0 0.0
  %1321 = vmatprep.subr.mxu0 0.0
  %1322 = vmatpush1.msra.mxu0 0.0
  %1323 = vmatprep.subr.mxu0 0.0
  %1324 = vmatpush1.msra.mxu0 0.0
  %1325 = vmatprep.subr.mxu0 0.0
  %1326 = vmatpush1.msra.mxu0 0.0
  %1327 = vmatprep.subr.mxu0 0.0
  %1328 = vmatpush1.msra.mxu0 0.0
  %1329 = vmatprep.subr.mxu0 0.0
  %1330 = vmatpush1.msra.mxu0 0.0
  %1331 = vmatprep.subr.mxu0 0.0
  %1332 = vmatpush1.msra.mxu0 0.0
  %1333 = vmatprep.mubr.f32.mxu0 0.0
  %1334 = vmatmul.mubr.f32.gmra.mrb[0].mxu0 %v1267
  %v1335 = vpop.f32.mrb[0].mxu0
  %v1336 = vadd.f32 %v1264, %v1335
  %v1337 = vpop.f32.mrb[0].mxu0
  %1338 = vdwg.mxu0
  %v1340 = vrot.slane %v1336, 1
  %v1341 = vrot.slane %v1336, 2
  %v1342 = vrot.slane %v1336, 3
  %v1347 = vadd.f32 %v1150, %v1336
  %v1348 = vadd.f32 %v1151, %v1340
  %v1349 = vadd.f32 %v1152, %v1341
  %v1350 = vadd.f32 %v1153, %v1342
  %v1355 = vrot.slane %v1348, 7
  %v1356 = vsel %vm170, %v1355, %v1347
  %v1357 = vrot.slane %v1349, 6
  %v1358 = vsel %vm173, %v1357, %v1356
  %v1359 = vrot.slane %v1350, 5
  %v1360 = vsel %vm176, %v1359, %v1358
  %v1362 = vsel %vm1087, %v1360, 0.0
  %1363 = vadd.xlane.f32.xlu0 %v1362
  %v1364 = vpop.xlane.xlu0 %1363
  %v1365 = vmul.f32 %v1364, %v1091
  %v1367 = vrot.slane %v1365, 1
  %v1368 = vrot.slane %v1365, 2
  %v1369 = vrot.slane %v1365, 3
  %v1374 = vsub.f32 %v1347, %v1365
  %v1375 = vsub.f32 %v1348, %v1367
  %v1376 = vsub.f32 %v1349, %v1368
  %v1377 = vsub.f32 %v1350, %v1369
  %v1378 = vmul.f32 %v1374, %v1374
  %v1379 = vmul.f32 %v1375, %v1375
  %v1380 = vmul.f32 %v1376, %v1376
  %v1381 = vmul.f32 %v1377, %v1377
  %v1386 = vrot.slane %v1379, 7
  %v1387 = vsel %vm170, %v1386, %v1378
  %v1388 = vrot.slane %v1380, 6
  %v1389 = vsel %vm173, %v1388, %v1387
  %v1390 = vrot.slane %v1381, 5
  %v1391 = vsel %vm176, %v1390, %v1389
  %v1393 = vsel %vm1087, %v1391, 0.0
  %1394 = vadd.xlane.f32.xlu0 %v1393
  %v1395 = vpop.xlane.xlu0 %1394
  %v1396 = vmul.f32 %v1395, %v1091
  %v1397 = vadd.f32 %v1396, 1e-12
  %v1398 = vrsqrt.pop %v1397
  %v1400 = vrot.slane %v1398, 1
  %v1401 = vrot.slane %v1398, 2
  %v1402 = vrot.slane %v1398, 3
  %v1407 = vmul.f32 %v1374, %v1398
  %v1408 = vmul.f32 %v1375, %v1400
  %v1409 = vmul.f32 %v1376, %v1401
  %v1410 = vmul.f32 %v1377, %v1402
  %v1411 = vlaneseq
  %v1412 = vshrl.u32 %v1411, 7
  %v1413 = vsub.s32 0, %v1412
  %v1414 = vrot.slane %v24, %v1413
  %v1415 = vmul.f32 %v1407, %v1414
  %v1416 = vmul.f32 %v1408, %v1414
  %v1417 = vmul.f32 %v1409, %v1414
  %v1418 = vmul.f32 %v1410, %v1414
  %v1419 = vlaneseq
  %v1420 = vshrl.u32 %v1419, 7
  %v1421 = vsub.s32 0, %v1420
  %v1422 = vrot.slane %v25, %v1421
  %v1423 = vadd.f32 %v1415, %v1422
  %v1424 = vadd.f32 %v1416, %v1422
  %v1425 = vadd.f32 %v1417, %v1422
  %v1426 = vadd.f32 %v1418, %v1422
  %v1427 = vld [vmem:[%s1 + $0x80] sm:$0xff]
  %v1428 = vld [vmem:[%s1 + $0x88] sm:$0xff]
  %v1429 = vld [vmem:[%s1 + $0x90] sm:$0xff]
  %v1430 = vld [vmem:[%s1 + $0x98] sm:$0xff]
  %v1435 = vrot.slane %v1424, 7
  %v1436 = vsel %vm170, %v1435, %v1423
  %v1437 = vrot.slane %v1425, 6
  %v1438 = vsel %vm173, %v1437, %v1436
  %v1439 = vrot.slane %v1426, 5
  %v1440 = vsel %vm176, %v1439, %v1438
  %v1441 = vsel %vm47, %v1440, 0
  %1443 = vmatprep.subr.mxu0 0.0
  %1444 = vmatpush1.msra.mxu0 %v1427
  %1445 = vmatprep.subr.mxu0 0.0
  %1446 = vmatpush1.msra.mxu0 %v1428
  %1447 = vmatprep.subr.mxu0 0.0
  %1448 = vmatpush1.msra.mxu0 %v1429
  %1449 = vmatprep.subr.mxu0 0.0
  %1450 = vmatpush1.msra.mxu0 %v1430
  %1451 = vmatprep.subr.mxu0 0.0
  %1452 = vmatpush1.msra.mxu0 0.0
  %1453 = vmatprep.subr.mxu0 0.0
  %1454 = vmatpush1.msra.mxu0 0.0
  %1455 = vmatprep.subr.mxu0 0.0
  %1456 = vmatpush1.msra.mxu0 0.0
  %1457 = vmatprep.subr.mxu0 0.0
  %1458 = vmatpush1.msra.mxu0 0.0
  %1459 = vmatprep.subr.mxu0 0.0
  %1460 = vmatpush1.msra.mxu0 0.0
  %1461 = vmatprep.subr.mxu0 0.0
  %1462 = vmatpush1.msra.mxu0 0.0
  %1463 = vmatprep.subr.mxu0 0.0
  %1464 = vmatpush1.msra.mxu0 0.0
  %1465 = vmatprep.subr.mxu0 0.0
  %1466 = vmatpush1.msra.mxu0 0.0
  %1467 = vmatprep.subr.mxu0 0.0
  %1468 = vmatpush1.msra.mxu0 0.0
  %1469 = vmatprep.subr.mxu0 0.0
  %1470 = vmatpush1.msra.mxu0 0.0
  %1471 = vmatprep.subr.mxu0 0.0
  %1472 = vmatpush1.msra.mxu0 0.0
  %1473 = vmatprep.subr.mxu0 0.0
  %1474 = vmatpush1.msra.mxu0 0.0
  %1475 = vmatprep.subr.mxu0 0.0
  %1476 = vmatpush1.msra.mxu0 0.0
  %1477 = vmatprep.subr.mxu0 0.0
  %1478 = vmatpush1.msra.mxu0 0.0
  %1479 = vmatprep.subr.mxu0 0.0
  %1480 = vmatpush1.msra.mxu0 0.0
  %1481 = vmatprep.subr.mxu0 0.0
  %1482 = vmatpush1.msra.mxu0 0.0
  %1483 = vmatprep.subr.mxu0 0.0
  %1484 = vmatpush1.msra.mxu0 0.0
  %1485 = vmatprep.subr.mxu0 0.0
  %1486 = vmatpush1.msra.mxu0 0.0
  %1487 = vmatprep.subr.mxu0 0.0
  %1488 = vmatpush1.msra.mxu0 0.0
  %1489 = vmatprep.subr.mxu0 0.0
  %1490 = vmatpush1.msra.mxu0 0.0
  %1491 = vmatprep.subr.mxu0 0.0
  %1492 = vmatpush1.msra.mxu0 0.0
  %1493 = vmatprep.subr.mxu0 0.0
  %1494 = vmatpush1.msra.mxu0 0.0
  %1495 = vmatprep.subr.mxu0 0.0
  %1496 = vmatpush1.msra.mxu0 0.0
  %1497 = vmatprep.subr.mxu0 0.0
  %1498 = vmatpush1.msra.mxu0 0.0
  %1499 = vmatprep.subr.mxu0 0.0
  %1500 = vmatpush1.msra.mxu0 0.0
  %1501 = vmatprep.subr.mxu0 0.0
  %1502 = vmatpush1.msra.mxu0 0.0
  %1503 = vmatprep.subr.mxu0 0.0
  %1504 = vmatpush1.msra.mxu0 0.0
  %1505 = vmatprep.subr.mxu0 0.0
  %1506 = vmatpush1.msra.mxu0 0.0
  %1507 = vmatprep.mubr.f32.mxu0 0.0
  %1508 = vmatmul.mubr.f32.gmra.mrb[0].mxu0 %v1441
  %v1509 = vpop.f32.mrb[0].mxu0
  %v1510 = vadd.f32 0.0, %v1509
  %v1511 = vpop.f32.mrb[0].mxu0
  %1512 = vdwg.mxu0
  %v1513 = vld [vmem:[%s1 + $0xa0] sm:$0xf]
  %v1514 = vmul.f32 %v1510, %v1513
  %vm1515 = vcmask 1043456
  %v1516 = vsel %vm1515, %v1514, 0.0
  %v1517 = vrot.slane %v1516, 4
  %v1518 = vadd.f32 %v1516, %v1517
  %v1519 = vrot.slane %v1518, 2
  %v1520 = vadd.f32 %v1518, %v1519
  %v1521 = vrot.slane %v1520, 1
  %v1522 = vadd.f32 %v1520, %v1521
  %v1523 = vadd.f32 %v1522, %v26
  %v1524 = vtanh.pop %v1523
  %1525 = vst [vmem:[%s2] sm:$0x1] %v1524
  %s1526 = scalar_lea.vmem %s0, 40
  %v1527 = vld [vmem:[%s1526] sm:$0xff]
  %v1528 = vld [vmem:[%s1526 + $0x8] sm:$0xff]
  %v1529 = vld [vmem:[%s1526 + $0x10] sm:$0xff]
  %v1530 = vld [vmem:[%s1526 + $0x18] sm:$0xff]
  %v1531 = vld [vmem:[%s1526 + $0x20] sm:$0xf]
  %s1532 = scalar_lea.vmem %s1, 176
  %v1533 = vld [vmem:[%s1532 + $0xa4] sm:$0x1]
  %v1534 = vld [vmem:[%s1532 + $0xa5] sm:$0x1]
  %v1535 = vld [vmem:[%s1532 + $0xa6] sm:$0x1]
  %v1536 = vld [vmem:[%s1532 + $0xa7] sm:$0x1]
  %v1537 = vld [vmem:[%s1532 + $0xa8] sm:$0x1]
  %v1538 = vld [vmem:[%s1532 + $0xa9] sm:$0x1]
  %v1539 = vld [vmem:[%s1532 + $0xaa] sm:$0x1]
  %v1540 = vld [vmem:[%s1532 + $0xab] sm:$0x1]
  %v1541 = vld [vmem:[%s1532 + $0xac] sm:$0x1]
  %v1542 = vld [vmem:[%s1532 + $0xad] sm:$0x1]
  %v1543 = vld [vmem:[%s1532 + $0xae] sm:$0x1]
  %v1544 = vld [vmem:[%s1532] sm:$0xff]
  %v1545 = vld [vmem:[%s1532 + $0x8] sm:$0xff]
  %v1546 = vld [vmem:[%s1532 + $0x10] sm:$0xff]
  %v1547 = vld [vmem:[%s1532 + $0x18] sm:$0xff]
  %1552 = vrot.lane.b32.xlu0 %v1544, 96
  %v1553 = vpop.permute.xlu0 %1552
  %1554 = vrot.lane.b32.xlu0 %v1545, 96
  %v1555 = vpop.permute.xlu0 %1554
  %1556 = vrot.lane.b32.xlu0 %v1546, 96
  %v1557 = vpop.permute.xlu0 %1556
  %1558 = vrot.lane.b32.xlu0 %v1547, 96
  %v1559 = vpop.permute.xlu0 %1558
  %v1565 = vsel %vm47, %v1527, 0
  %v1568 = vsel %vm47, %v1528, 0
  %v1571 = vsel %vm47, %v1529, 0
  %v1574 = vsel %vm47, %v1530, 0
  %1576 = vmatprep.subr.mxu0 0.0
  %1577 = vmatpush1.msra.mxu0 %v1553
  %1578 = vmatprep.subr.mxu0 0.0
  %1579 = vmatpush1.msra.mxu0 %v1555
  %1580 = vmatprep.subr.mxu0 0.0
  %1581 = vmatpush1.msra.mxu0 %v1557
  %1582 = vmatprep.subr.mxu0 0.0
  %1583 = vmatpush1.msra.mxu0 %v1559
  %1584 = vmatprep.subr.mxu0 0.0
  %1585 = vmatpush1.msra.mxu0 0.0
  %1586 = vmatprep.subr.mxu0 0.0
  %1587 = vmatpush1.msra.mxu0 0.0
  %1588 = vmatprep.subr.mxu0 0.0
  %1589 = vmatpush1.msra.mxu0 0.0
  %1590 = vmatprep.subr.mxu0 0.0
  %1591 = vmatpush1.msra.mxu0 0.0
  %1592 = vmatprep.subr.mxu0 0.0
  %1593 = vmatpush1.msra.mxu0 0.0
  %1594 = vmatprep.subr.mxu0 0.0
  %1595 = vmatpush1.msra.mxu0 0.0
  %1596 = vmatprep.subr.mxu0 0.0
  %1597 = vmatpush1.msra.mxu0 0.0
  %1598 = vmatprep.subr.mxu0 0.0
  %1599 = vmatpush1.msra.mxu0 0.0
  %1600 = vmatprep.subr.mxu0 0.0
  %1601 = vmatpush1.msra.mxu0 0.0
  %1602 = vmatprep.subr.mxu0 0.0
  %1603 = vmatpush1.msra.mxu0 0.0
  %1604 = vmatprep.subr.mxu0 0.0
  %1605 = vmatpush1.msra.mxu0 0.0
  %1606 = vmatprep.subr.mxu0 0.0
  %1607 = vmatpush1.msra.mxu0 0.0
  %1608 = vmatprep.subr.mxu0 0.0
  %1609 = vmatpush1.msra.mxu0 0.0
  %1610 = vmatprep.subr.mxu0 0.0
  %1611 = vmatpush1.msra.mxu0 0.0
  %1612 = vmatprep.subr.mxu0 0.0
  %1613 = vmatpush1.msra.mxu0 0.0
  %1614 = vmatprep.subr.mxu0 0.0
  %1615 = vmatpush1.msra.mxu0 0.0
  %1616 = vmatprep.subr.mxu0 0.0
  %1617 = vmatpush1.msra.mxu0 0.0
  %1618 = vmatprep.subr.mxu0 0.0
  %1619 = vmatpush1.msra.mxu0 0.0
  %1620 = vmatprep.subr.mxu0 0.0
  %1621 = vmatpush1.msra.mxu0 0.0
  %1622 = vmatprep.subr.mxu0 0.0
  %1623 = vmatpush1.msra.mxu0 0.0
  %1624 = vmatprep.subr.mxu0 0.0
  %1625 = vmatpush1.msra.mxu0 0.0
  %1626 = vmatprep.subr.mxu0 0.0
  %1627 = vmatpush1.msra.mxu0 0.0
  %1628 = vmatprep.subr.mxu0 0.0
  %1629 = vmatpush1.msra.mxu0 0.0
  %1630 = vmatprep.subr.mxu0 0.0
  %1631 = vmatpush1.msra.mxu0 0.0
  %1632 = vmatprep.subr.mxu0 0.0
  %1633 = vmatpush1.msra.mxu0 0.0
  %1634 = vmatprep.subr.mxu0 0.0
  %1635 = vmatpush1.msra.mxu0 0.0
  %1636 = vmatprep.subr.mxu0 0.0
  %1637 = vmatpush1.msra.mxu0 0.0
  %1638 = vmatprep.subr.mxu0 0.0
  %1639 = vmatpush1.msra.mxu0 0.0
  %1640 = vmatprep.mubr.f32.mxu0 0.0
  %1641 = vmatmul.mubr.f32.gmra.mrb[0].mxu0 %v1565
  %v1642 = vpop.f32.mrb[0].mxu0
  %v1643 = vadd.f32 0.0, %v1642
  %v1644 = vpop.f32.mrb[0].mxu0
  %1645 = vmatprep.mubr.f32.mxu0 0.0
  %1646 = vmatmul.mubr.f32.gmra.mrb[0].mxu0 %v1568
  %v1647 = vpop.f32.mrb[0].mxu0
  %v1648 = vadd.f32 0.0, %v1647
  %v1649 = vpop.f32.mrb[0].mxu0
  %1650 = vmatprep.mubr.f32.mxu0 0.0
  %1651 = vmatmul.mubr.f32.gmra.mrb[0].mxu0 %v1571
  %v1652 = vpop.f32.mrb[0].mxu0
  %v1653 = vadd.f32 0.0, %v1652
  %v1654 = vpop.f32.mrb[0].mxu0
  %1655 = vmatprep.mubr.f32.mxu0 0.0
  %1656 = vmatmul.mubr.f32.gmra.mrb[0].mxu0 %v1574
  %v1657 = vpop.f32.mrb[0].mxu0
  %v1658 = vadd.f32 0.0, %v1657
  %v1659 = vpop.f32.mrb[0].mxu0
  %1660 = vdwg.mxu0
  %v1661 = vlaneseq
  %v1662 = vshrl.u32 %v1661, 7
  %v1663 = vsub.s32 0, %v1662
  %v1664 = vrot.slane %v1534, %v1663
  %v1665 = vadd.f32 %v1643, %v1664
  %v1666 = vadd.f32 %v1648, %v1664
  %v1667 = vadd.f32 %v1653, %v1664
  %v1668 = vadd.f32 %v1658, %v1664
  %v1669 = vlaneseq
  %v1670 = vshrl.u32 %v1669, 7
  %v1671 = vsub.s32 0, %v1670
  %v1672 = vrot.slane %v1535, %v1671
  %1674 = vrot.lane.b32.xlu0 %v1672, 32
  %v1675 = vpop.permute.xlu0 %1674
  %v1677 = vadd.f32 %v1643, %v1675
  %v1678 = vadd.f32 %v1648, %v1675
  %v1679 = vadd.f32 %v1653, %v1675
  %v1680 = vadd.f32 %v1658, %v1675
  %v1681 = vlaneseq
  %v1682 = vshrl.u32 %v1681, 7
  %v1683 = vsub.s32 0, %v1682
  %v1684 = vrot.slane %v1533, %v1683
  %v1685 = vrot.slane %v1528, 7
  %v1686 = vsel %vm170, %v1685, %v1527
  %v1687 = vrot.slane %v1529, 6
  %v1688 = vsel %vm173, %v1687, %v1686
  %v1689 = vrot.slane %v1530, 5
  %v1690 = vsel %vm176, %v1689, %v1688
  %v1691 = vsel %vm47, %v1690, 0
  %1693 = vmatprep.subr.mxu0 0.0
  %1694 = vmatpush1.msra.mxu0 %v1544
  %1695 = vmatprep.subr.mxu0 0.0
  %1696 = vmatpush1.msra.mxu0 %v1545
  %1697 = vmatprep.subr.mxu0 0.0
  %1698 = vmatpush1.msra.mxu0 %v1546
  %1699 = vmatprep.subr.mxu0 0.0
  %1700 = vmatpush1.msra.mxu0 %v1547
  %1701 = vmatprep.subr.mxu0 0.0
  %1702 = vmatpush1.msra.mxu0 0.0
  %1703 = vmatprep.subr.mxu0 0.0
  %1704 = vmatpush1.msra.mxu0 0.0
  %1705 = vmatprep.subr.mxu0 0.0
  %1706 = vmatpush1.msra.mxu0 0.0
  %1707 = vmatprep.subr.mxu0 0.0
  %1708 = vmatpush1.msra.mxu0 0.0
  %1709 = vmatprep.subr.mxu0 0.0
  %1710 = vmatpush1.msra.mxu0 0.0
  %1711 = vmatprep.subr.mxu0 0.0
  %1712 = vmatpush1.msra.mxu0 0.0
  %1713 = vmatprep.subr.mxu0 0.0
  %1714 = vmatpush1.msra.mxu0 0.0
  %1715 = vmatprep.subr.mxu0 0.0
  %1716 = vmatpush1.msra.mxu0 0.0
  %1717 = vmatprep.subr.mxu0 0.0
  %1718 = vmatpush1.msra.mxu0 0.0
  %1719 = vmatprep.subr.mxu0 0.0
  %1720 = vmatpush1.msra.mxu0 0.0
  %1721 = vmatprep.subr.mxu0 0.0
  %1722 = vmatpush1.msra.mxu0 0.0
  %1723 = vmatprep.subr.mxu0 0.0
  %1724 = vmatpush1.msra.mxu0 0.0
  %1725 = vmatprep.subr.mxu0 0.0
  %1726 = vmatpush1.msra.mxu0 0.0
  %1727 = vmatprep.subr.mxu0 0.0
  %1728 = vmatpush1.msra.mxu0 0.0
  %1729 = vmatprep.subr.mxu0 0.0
  %1730 = vmatpush1.msra.mxu0 0.0
  %1731 = vmatprep.subr.mxu0 0.0
  %1732 = vmatpush1.msra.mxu0 0.0
  %1733 = vmatprep.subr.mxu0 0.0
  %1734 = vmatpush1.msra.mxu0 0.0
  %1735 = vmatprep.subr.mxu0 0.0
  %1736 = vmatpush1.msra.mxu0 0.0
  %1737 = vmatprep.subr.mxu0 0.0
  %1738 = vmatpush1.msra.mxu0 0.0
  %1739 = vmatprep.subr.mxu0 0.0
  %1740 = vmatpush1.msra.mxu0 0.0
  %1741 = vmatprep.subr.mxu0 0.0
  %1742 = vmatpush1.msra.mxu0 0.0
  %1743 = vmatprep.subr.mxu0 0.0
  %1744 = vmatpush1.msra.mxu0 0.0
  %1745 = vmatprep.subr.mxu0 0.0
  %1746 = vmatpush1.msra.mxu0 0.0
  %1747 = vmatprep.subr.mxu0 0.0
  %1748 = vmatpush1.msra.mxu0 0.0
  %1749 = vmatprep.subr.mxu0 0.0
  %1750 = vmatpush1.msra.mxu0 0.0
  %1751 = vmatprep.subr.mxu0 0.0
  %1752 = vmatpush1.msra.mxu0 0.0
  %1753 = vmatprep.subr.mxu0 0.0
  %1754 = vmatpush1.msra.mxu0 0.0
  %1755 = vmatprep.subr.mxu0 0.0
  %1756 = vmatpush1.msra.mxu0 0.0
  %1757 = vmatprep.mubr.f32.mxu0 0.0
  %1758 = vmatmul.mubr.f32.gmra.mrb[0].mxu0 %v1691
  %v1759 = vpop.f32.mrb[0].mxu0
  %v1760 = vadd.f32 %v1684, %v1759
  %v1761 = vpop.f32.mrb[0].mxu0
  %1762 = vdwg.mxu0
  %v1765 = vunpack.c.l.s4 1966171168
  %v1766 = vunpack.c.0.s8 %v1765
  %v1767 = vlaneseq
  %v1768 = vshrl.u32 %v1767, 7
  %v1769 = vsub.s32 %v1766, %v1768
  %v1770 = vrot.slane %v1760, %v1769
  %v1771 = vcombine.high %v1770, %v1770
  %v1773 = vunpack.c.l.s4 1966171168
  %v1774 = vunpack.c.0.s8 %v1773
  %v1775 = vlaneseq
  %v1776 = vshrl.u32 %v1775, 7
  %v1777 = vsub.s32 %v1774, %v1776
  %v1778 = vrot.slane %v1770, %v1777
  %v1780 = vunpack.c.l.s4 1966171168
  %v1781 = vunpack.c.0.s8 %v1780
  %v1782 = vlaneseq
  %v1783 = vshrl.u32 %v1782, 7
  %v1784 = vsub.s32 %v1781, %v1783
  %v1785 = vrot.slane %v1771, %v1784
  %v1786 = vcombine.high %v1778, %v1778
  %v1787 = vcombine.high %v1785, %v1785
  %v1790 = vunpack.c.l.s4 1966171168
  %v1791 = vunpack.c.0.s8 %v1790
  %v1792 = vlaneseq
  %v1793 = vshrl.u32 %v1792, 7
  %v1794 = vsub.s32 %v1791, %v1793
  %v1795 = vrot.slane %v1531, %v1794
  %v1796 = vcombine.high %v1795, %v1795
  %v1798 = vunpack.c.l.s4 1966171168
  %v1799 = vunpack.c.0.s8 %v1798
  %v1800 = vlaneseq
  %v1801 = vshrl.u32 %v1800, 7
  %v1802 = vsub.s32 %v1799, %v1801
  %v1803 = vrot.slane %v1795, %v1802
  %v1805 = vunpack.c.l.s4 1966171168
  %v1806 = vunpack.c.0.s8 %v1805
  %v1807 = vlaneseq
  %v1808 = vshrl.u32 %v1807, 7
  %v1809 = vsub.s32 %v1806, %v1808
  %v1810 = vrot.slane %v1796, %v1809
  %v1811 = vcombine.high %v1803, %v1803
  %v1812 = vcombine.high %v1810, %v1810
  %v1817 = vsel %vm47, %v1778, 0
  %v1820 = vsel %vm47, %v1665, 0
  %1822 = vmatprep.subr.mxu0 0.0
  %1823 = vmatpush1.xpose.msra.mxu0 %v1820
  %1824 = vmatprep.subr.mxu0 0.0
  %1825 = vmatpush1.xpose.msra.mxu0 0.0
  %1826 = vmatprep.subr.mxu0 0.0
  %1827 = vmatpush1.xpose.msra.mxu0 0.0
  %1828 = vmatprep.subr.mxu0 0.0
  %1829 = vmatpush1.xpose.msra.mxu0 0.0
  %1830 = vmatprep.subr.mxu0 0.0
  %1831 = vmatpush1.xpose.msra.mxu0 0.0
  %1832 = vmatprep.subr.mxu0 0.0
  %1833 = vmatpush1.xpose.msra.mxu0 0.0
  %1834 = vmatprep.subr.mxu0 0.0
  %1835 = vmatpush1.xpose.msra.mxu0 0.0
  %1836 = vmatprep.subr.mxu0 0.0
  %1837 = vmatpush1.xpose.msra.mxu0 0.0
  %1838 = vmatprep.subr.mxu0 0.0
  %1839 = vmatpush1.xpose.msra.mxu0 0.0
  %1840 = vmatprep.subr.mxu0 0.0
  %1841 = vmatpush1.xpose.msra.mxu0 0.0
  %1842 = vmatprep.subr.mxu0 0.0
  %1843 = vmatpush1.xpose.msra.mxu0 0.0
  %1844 = vmatprep.subr.mxu0 0.0
  %1845 = vmatpush1.xpose.msra.mxu0 0.0
  %1846 = vmatprep.subr.mxu0 0.0
  %1847 = vmatpush1.xpose.msra.mxu0 0.0
  %1848 = vmatprep.subr.mxu0 0.0
  %1849 = vmatpush1.xpose.msra.mxu0 0.0
  %1850 = vmatprep.subr.mxu0 0.0
  %1851 = vmatpush1.xpose.msra.mxu0 0.0
  %1852 = vmatprep.subr.mxu0 0.0
  %1853 = vmatpush1.xpose.msra.mxu0 0.0
  %1854 = vmatprep.subr.mxu0 0.0
  %1855 = vmatpush1.xpose.msra.mxu0 0.0
  %1856 = vmatprep.subr.mxu0 0.0
  %1857 = vmatpush1.xpose.msra.mxu0 0.0
  %1858 = vmatprep.subr.mxu0 0.0
  %1859 = vmatpush1.xpose.msra.mxu0 0.0
  %1860 = vmatprep.subr.mxu0 0.0
  %1861 = vmatpush1.xpose.msra.mxu0 0.0
  %1862 = vmatprep.subr.mxu0 0.0
  %1863 = vmatpush1.xpose.msra.mxu0 0.0
  %1864 = vmatprep.subr.mxu0 0.0
  %1865 = vmatpush1.xpose.msra.mxu0 0.0
  %1866 = vmatprep.subr.mxu0 0.0
  %1867 = vmatpush1.xpose.msra.mxu0 0.0
  %1868 = vmatprep.subr.mxu0 0.0
  %1869 = vmatpush1.xpose.msra.mxu0 0.0
  %1870 = vmatprep.subr.mxu0 0.0
  %1871 = vmatpush1.xpose.msra.mxu0 0.0
  %1872 = vmatprep.subr.mxu0 0.0
  %1873 = vmatpush1.xpose.msra.mxu0 0.0
  %1874 = vmatprep.subr.mxu0 0.0
  %1875 = vmatpush1.xpose.msra.mxu0 0.0
  %1876 = vmatprep.subr.mxu0 0.0
  %1877 = vmatpush1.xpose.msra.mxu0 0.0
  %1878 = vmatprep.subr.mxu0 0.0
  %1879 = vmatpush1.xpose.msra.mxu0 0.0
  %1880 = vmatprep.subr.mxu0 0.0
  %1881 = vmatpush1.xpose.msra.mxu0 0.0
  %1882 = vmatprep.subr.mxu0 0.0
  %1883 = vmatpush1.xpose.msra.mxu0 0.0
  %1884 = vmatprep.subr.mxu0 0.0
  %1885 = vmatpush1.xpose.msra.mxu0 0.0
  %1886 = vmatprep.mubr.f32.mxu0 0.0
  %1887 = vmatmul.mubr.f32.gmra.mrb[0].mxu0 %v1817
  %v1888 = vpop.f32.mrb[0].mxu0
  %v1889 = vadd.f32 %v1803, %v1888
  %v1890 = vpop.f32.mrb[0].mxu0
  %1891 = vdwg.mxu0
  %v1892 = vsel %vm47, %v1785, 0
  %v1895 = vsel %vm47, %v1666, 0
  %1897 = vmatprep.subr.mxu0 0.0
  %1898 = vmatpush1.xpose.msra.mxu0 %v1895
  %1899 = vmatprep.subr.mxu0 0.0
  %1900 = vmatpush1.xpose.msra.mxu0 0.0
  %1901 = vmatprep.subr.mxu0 0.0
  %1902 = vmatpush1.xpose.msra.mxu0 0.0
  %1903 = vmatprep.subr.mxu0 0.0
  %1904 = vmatpush1.xpose.msra.mxu0 0.0
  %1905 = vmatprep.subr.mxu0 0.0
  %1906 = vmatpush1.xpose.msra.mxu0 0.0
  %1907 = vmatprep.subr.mxu0 0.0
  %1908 = vmatpush1.xpose.msra.mxu0 0.0
  %1909 = vmatprep.subr.mxu0 0.0
  %1910 = vmatpush1.xpose.msra.mxu0 0.0
  %1911 = vmatprep.subr.mxu0 0.0
  %1912 = vmatpush1.xpose.msra.mxu0 0.0
  %1913 = vmatprep.subr.mxu0 0.0
  %1914 = vmatpush1.xpose.msra.mxu0 0.0
  %1915 = vmatprep.subr.mxu0 0.0
  %1916 = vmatpush1.xpose.msra.mxu0 0.0
  %1917 = vmatprep.subr.mxu0 0.0
  %1918 = vmatpush1.xpose.msra.mxu0 0.0
  %1919 = vmatprep.subr.mxu0 0.0
  %1920 = vmatpush1.xpose.msra.mxu0 0.0
  %1921 = vmatprep.subr.mxu0 0.0
  %1922 = vmatpush1.xpose.msra.mxu0 0.0
  %1923 = vmatprep.subr.mxu0 0.0
  %1924 = vmatpush1.xpose.msra.mxu0 0.0
  %1925 = vmatprep.subr.mxu0 0.0
  %1926 = vmatpush1.xpose.msra.mxu0 0.0
  %1927 = vmatprep.subr.mxu0 0.0
  %1928 = vmatpush1.xpose.msra.mxu0 0.0
  %1929 = vmatprep.subr.mxu0 0.0
  %1930 = vmatpush1.xpose.msra.mxu0 0.0
  %1931 = vmatprep.subr.mxu0 0.0
  %1932 = vmatpush1.xpose.msra.mxu0 0.0
  %1933 = vmatprep.subr.mxu0 0.0
  %1934 = vmatpush1.xpose.msra.mxu0 0.0
  %1935 = vmatprep.subr.mxu0 0.0
  %1936 = vmatpush1.xpose.msra.mxu0 0.0
  %1937 = vmatprep.subr.mxu0 0.0
  %1938 = vmatpush1.xpose.msra.mxu0 0.0
  %1939 = vmatprep.subr.mxu0 0.0
  %1940 = vmatpush1.xpose.msra.mxu0 0.0
  %1941 = vmatprep.subr.mxu0 0.0
  %1942 = vmatpush1.xpose.msra.mxu0 0.0
  %1943 = vmatprep.subr.mxu0 0.0
  %1944 = vmatpush1.xpose.msra.mxu0 0.0
  %1945 = vmatprep.subr.mxu0 0.0
  %1946 = vmatpush1.xpose.msra.mxu0 0.0
  %1947 = vmatprep.subr.mxu0 0.0
  %1948 = vmatpush1.xpose.msra.mxu0 0.0
  %1949 = vmatprep.subr.mxu0 0.0
  %1950 = vmatpush1.xpose.msra.mxu0 0.0
  %1951 = vmatprep.subr.mxu0 0.0
  %1952 = vmatpush1.xpose.msra.mxu0 0.0
  %1953 = vmatprep.subr.mxu0 0.0
  %1954 = vmatpush1.xpose.msra.mxu0 0.0
  %1955 = vmatprep.subr.mxu0 0.0
  %1956 = vmatpush1.xpose.msra.mxu0 0.0
  %1957 = vmatprep.subr.mxu0 0.0
  %1958 = vmatpush1.xpose.msra.mxu0 0.0
  %1959 = vmatprep.subr.mxu0 0.0
  %1960 = vmatpush1.xpose.msra.mxu0 0.0
  %1961 = vmatprep.mubr.f32.mxu0 0.0
  %1962 = vmatmul.mubr.f32.gmra.mrb[0].mxu0 %v1892
  %v1963 = vpop.f32.mrb[0].mxu0
  %v1964 = vadd.f32 %v1810, %v1963
  %v1965 = vpop.f32.mrb[0].mxu0
  %1966 = vdwg.mxu0
  %v1967 = vsel %vm47, %v1786, 0
  %v1970 = vsel %vm47, %v1667, 0
  %1972 = vmatprep.subr.mxu0 0.0
  %1973 = vmatpush1.xpose.msra.mxu0 %v1970
  %1974 = vmatprep.subr.mxu0 0.0
  %1975 = vmatpush1.xpose.msra.mxu0 0.0
  %1976 = vmatprep.subr.mxu0 0.0
  %1977 = vmatpush1.xpose.msra.mxu0 0.0
  %1978 = vmatprep.subr.mxu0 0.0
  %1979 = vmatpush1.xpose.msra.mxu0 0.0
  %1980 = vmatprep.subr.mxu0 0.0
  %1981 = vmatpush1.xpose.msra.mxu0 0.0
  %1982 = vmatprep.subr.mxu0 0.0
  %1983 = vmatpush1.xpose.msra.mxu0 0.0
  %1984 = vmatprep.subr.mxu0 0.0
  %1985 = vmatpush1.xpose.msra.mxu0 0.0
  %1986 = vmatprep.subr.mxu0 0.0
  %1987 = vmatpush1.xpose.msra.mxu0 0.0
  %1988 = vmatprep.subr.mxu0 0.0
  %1989 = vmatpush1.xpose.msra.mxu0 0.0
  %1990 = vmatprep.subr.mxu0 0.0
  %1991 = vmatpush1.xpose.msra.mxu0 0.0
  %1992 = vmatprep.subr.mxu0 0.0
  %1993 = vmatpush1.xpose.msra.mxu0 0.0
  %1994 = vmatprep.subr.mxu0 0.0
  %1995 = vmatpush1.xpose.msra.mxu0 0.0
  %1996 = vmatprep.subr.mxu0 0.0
  %1997 = vmatpush1.xpose.msra.mxu0 0.0
  %1998 = vmatprep.subr.mxu0 0.0
  %1999 = vmatpush1.xpose.msra.mxu0 0.0
  %2000 = vmatprep.subr.mxu0 0.0
  %2001 = vmatpush1.xpose.msra.mxu0 0.0
  %2002 = vmatprep.subr.mxu0 0.0
  %2003 = vmatpush1.xpose.msra.mxu0 0.0
  %2004 = vmatprep.subr.mxu0 0.0
  %2005 = vmatpush1.xpose.msra.mxu0 0.0
  %2006 = vmatprep.subr.mxu0 0.0
  %2007 = vmatpush1.xpose.msra.mxu0 0.0
  %2008 = vmatprep.subr.mxu0 0.0
  %2009 = vmatpush1.xpose.msra.mxu0 0.0
  %2010 = vmatprep.subr.mxu0 0.0
  %2011 = vmatpush1.xpose.msra.mxu0 0.0
  %2012 = vmatprep.subr.mxu0 0.0
  %2013 = vmatpush1.xpose.msra.mxu0 0.0
  %2014 = vmatprep.subr.mxu0 0.0
  %2015 = vmatpush1.xpose.msra.mxu0 0.0
  %2016 = vmatprep.subr.mxu0 0.0
  %2017 = vmatpush1.xpose.msra.mxu0 0.0
  %2018 = vmatprep.subr.mxu0 0.0
  %2019 = vmatpush1.xpose.msra.mxu0 0.0
  %2020 = vmatprep.subr.mxu0 0.0
  %2021 = vmatpush1.xpose.msra.mxu0 0.0
  %2022 = vmatprep.subr.mxu0 0.0
  %2023 = vmatpush1.xpose.msra.mxu0 0.0
  %2024 = vmatprep.subr.mxu0 0.0
  %2025 = vmatpush1.xpose.msra.mxu0 0.0
  %2026 = vmatprep.subr.mxu0 0.0
  %2027 = vmatpush1.xpose.msra.mxu0 0.0
  %2028 = vmatprep.subr.mxu0 0.0
  %2029 = vmatpush1.xpose.msra.mxu0 0.0
  %2030 = vmatprep.subr.mxu0 0.0
  %2031 = vmatpush1.xpose.msra.mxu0 0.0
  %2032 = vmatprep.subr.mxu0 0.0
  %2033 = vmatpush1.xpose.msra.mxu0 0.0
  %2034 = vmatprep.subr.mxu0 0.0
  %2035 = vmatpush1.xpose.msra.mxu0 0.0
  %2036 = vmatprep.mubr.f32.mxu0 0.0
  %2037 = vmatmul.mubr.f32.gmra.mrb[0].mxu0 %v1967
  %v2038 = vpop.f32.mrb[0].mxu0
  %v2039 = vadd.f32 %v1811, %v2038
  %v2040 = vpop.f32.mrb[0].mxu0
  %2041 = vdwg.mxu0
  %v2042 = vsel %vm47, %v1787, 0
  %v2045 = vsel %vm47, %v1668, 0
  %2047 = vmatprep.subr.mxu0 0.0
  %2048 = vmatpush1.xpose.msra.mxu0 %v2045
  %2049 = vmatprep.subr.mxu0 0.0
  %2050 = vmatpush1.xpose.msra.mxu0 0.0
  %2051 = vmatprep.subr.mxu0 0.0
  %2052 = vmatpush1.xpose.msra.mxu0 0.0
  %2053 = vmatprep.subr.mxu0 0.0
  %2054 = vmatpush1.xpose.msra.mxu0 0.0
  %2055 = vmatprep.subr.mxu0 0.0
  %2056 = vmatpush1.xpose.msra.mxu0 0.0
  %2057 = vmatprep.subr.mxu0 0.0
  %2058 = vmatpush1.xpose.msra.mxu0 0.0
  %2059 = vmatprep.subr.mxu0 0.0
  %2060 = vmatpush1.xpose.msra.mxu0 0.0
  %2061 = vmatprep.subr.mxu0 0.0
  %2062 = vmatpush1.xpose.msra.mxu0 0.0
  %2063 = vmatprep.subr.mxu0 0.0
  %2064 = vmatpush1.xpose.msra.mxu0 0.0
  %2065 = vmatprep.subr.mxu0 0.0
  %2066 = vmatpush1.xpose.msra.mxu0 0.0
  %2067 = vmatprep.subr.mxu0 0.0
  %2068 = vmatpush1.xpose.msra.mxu0 0.0
  %2069 = vmatprep.subr.mxu0 0.0
  %2070 = vmatpush1.xpose.msra.mxu0 0.0
  %2071 = vmatprep.subr.mxu0 0.0
  %2072 = vmatpush1.xpose.msra.mxu0 0.0
  %2073 = vmatprep.subr.mxu0 0.0
  %2074 = vmatpush1.xpose.msra.mxu0 0.0
  %2075 = vmatprep.subr.mxu0 0.0
  %2076 = vmatpush1.xpose.msra.mxu0 0.0
  %2077 = vmatprep.subr.mxu0 0.0
  %2078 = vmatpush1.xpose.msra.mxu0 0.0
  %2079 = vmatprep.subr.mxu0 0.0
  %2080 = vmatpush1.xpose.msra.mxu0 0.0
  %2081 = vmatprep.subr.mxu0 0.0
  %2082 = vmatpush1.xpose.msra.mxu0 0.0
  %2083 = vmatprep.subr.mxu0 0.0
  %2084 = vmatpush1.xpose.msra.mxu0 0.0
  %2085 = vmatprep.subr.mxu0 0.0
  %2086 = vmatpush1.xpose.msra.mxu0 0.0
  %2087 = vmatprep.subr.mxu0 0.0
  %2088 = vmatpush1.xpose.msra.mxu0 0.0
  %2089 = vmatprep.subr.mxu0 0.0
  %2090 = vmatpush1.xpose.msra.mxu0 0.0
  %2091 = vmatprep.subr.mxu0 0.0
  %2092 = vmatpush1.xpose.msra.mxu0 0.0
  %2093 = vmatprep.subr.mxu0 0.0
  %2094 = vmatpush1.xpose.msra.mxu0 0.0
  %2095 = vmatprep.subr.mxu0 0.0
  %2096 = vmatpush1.xpose.msra.mxu0 0.0
  %2097 = vmatprep.subr.mxu0 0.0
  %2098 = vmatpush1.xpose.msra.mxu0 0.0
  %2099 = vmatprep.subr.mxu0 0.0
  %2100 = vmatpush1.xpose.msra.mxu0 0.0
  %2101 = vmatprep.subr.mxu0 0.0
  %2102 = vmatpush1.xpose.msra.mxu0 0.0
  %2103 = vmatprep.subr.mxu0 0.0
  %2104 = vmatpush1.xpose.msra.mxu0 0.0
  %2105 = vmatprep.subr.mxu0 0.0
  %2106 = vmatpush1.xpose.msra.mxu0 0.0
  %2107 = vmatprep.subr.mxu0 0.0
  %2108 = vmatpush1.xpose.msra.mxu0 0.0
  %2109 = vmatprep.subr.mxu0 0.0
  %2110 = vmatpush1.xpose.msra.mxu0 0.0
  %2111 = vmatprep.mubr.f32.mxu0 0.0
  %2112 = vmatmul.mubr.f32.gmra.mrb[0].mxu0 %v2042
  %v2113 = vpop.f32.mrb[0].mxu0
  %v2114 = vadd.f32 %v1812, %v2113
  %v2115 = vpop.f32.mrb[0].mxu0
  %2116 = vdwg.mxu0
  %v2117 = vsel %vm604, %v1889, -inf
  %2118 = vmax.xlane.f32.xlu0 %v2117
  %v2119 = vpop.xlane.xlu0 %2118
  %v2120 = vsel %vm604, %v1964, -inf
  %2121 = vmax.xlane.f32.xlu0 %v2120
  %v2122 = vpop.xlane.xlu0 %2121
  %v2123 = vsel %vm604, %v2039, -inf
  %2124 = vmax.xlane.f32.xlu0 %v2123
  %v2125 = vpop.xlane.xlu0 %2124
  %v2126 = vsel %vm604, %v2114, -inf
  %2127 = vmax.xlane.f32.xlu0 %v2126
  %v2128 = vpop.xlane.xlu0 %2127
  %v2129 = vsub.f32 %v1889, %v2119
  %v2130 = vsub.f32 %v1964, %v2122
  %v2131 = vsub.f32 %v2039, %v2125
  %v2132 = vsub.f32 %v2114, %v2128
  %v2133 = vmul.f32 %v2129, 1.442695
  %v2134 = vpow.pop %v2133
  %v2135 = vmul.f32 %v2130, 1.442695
  %v2136 = vpow.pop %v2135
  %v2137 = vmul.f32 %v2131, 1.442695
  %v2138 = vpow.pop %v2137
  %v2139 = vmul.f32 %v2132, 1.442695
  %v2140 = vpow.pop %v2139
  %v2141 = vsel %vm604, %v2134, 0.0
  %2142 = vadd.xlane.f32.xlu0 %v2141
  %v2143 = vpop.xlane.xlu0 %2142
  %v2144 = vsel %vm604, %v2136, 0.0
  %2145 = vadd.xlane.f32.xlu0 %v2144
  %v2146 = vpop.xlane.xlu0 %2145
  %v2147 = vsel %vm604, %v2138, 0.0
  %2148 = vadd.xlane.f32.xlu0 %v2147
  %v2149 = vpop.xlane.xlu0 %2148
  %v2150 = vsel %vm604, %v2140, 0.0
  %2151 = vadd.xlane.f32.xlu0 %v2150
  %v2152 = vpop.xlane.xlu0 %2151
  %v2153 = vrcp.pop %v2143
  %v2154 = vrcp.pop %v2146
  %v2155 = vrcp.pop %v2149
  %v2156 = vrcp.pop %v2152
  %v2157 = vmul.f32 %v2134, %v2153
  %v2158 = vmul.f32 %v2136, %v2154
  %v2159 = vmul.f32 %v2138, %v2155
  %v2160 = vmul.f32 %v2140, %v2156
  %2162 = vrot.lane.b32.xlu0 %v1677, 96
  %v2163 = vpop.permute.xlu0 %2162
  %v2166 = vsel %vm653, %v2157, 0
  %2168 = vmatprep.subr.mxu0 0.0
  %2169 = vmatpush1.msra.mxu0 %v2163
  %2170 = vmatprep.subr.mxu0 0.0
  %2171 = vmatpush1.msra.mxu0 0.0
  %2172 = vmatprep.subr.mxu0 0.0
  %2173 = vmatpush1.msra.mxu0 0.0
  %2174 = vmatprep.subr.mxu0 0.0
  %2175 = vmatpush1.msra.mxu0 0.0
  %2176 = vmatprep.subr.mxu0 0.0
  %2177 = vmatpush1.msra.mxu0 0.0
  %2178 = vmatprep.subr.mxu0 0.0
  %2179 = vmatpush1.msra.mxu0 0.0
  %2180 = vmatprep.subr.mxu0 0.0
  %2181 = vmatpush1.msra.mxu0 0.0
  %2182 = vmatprep.subr.mxu0 0.0
  %2183 = vmatpush1.msra.mxu0 0.0
  %2184 = vmatprep.subr.mxu0 0.0
  %2185 = vmatpush1.msra.mxu0 0.0
  %2186 = vmatprep.subr.mxu0 0.0
  %2187 = vmatpush1.msra.mxu0 0.0
  %2188 = vmatprep.subr.mxu0 0.0
  %2189 = vmatpush1.msra.mxu0 0.0
  %2190 = vmatprep.subr.mxu0 0.0
  %2191 = vmatpush1.msra.mxu0 0.0
  %2192 = vmatprep.subr.mxu0 0.0
  %2193 = vmatpush1.msra.mxu0 0.0
  %2194 = vmatprep.subr.mxu0 0.0
  %2195 = vmatpush1.msra.mxu0 0.0
  %2196 = vmatprep.subr.mxu0 0.0
  %2197 = vmatpush1.msra.mxu0 0.0
  %2198 = vmatprep.subr.mxu0 0.0
  %2199 = vmatpush1.msra.mxu0 0.0
  %2200 = vmatprep.subr.mxu0 0.0
  %2201 = vmatpush1.msra.mxu0 0.0
  %2202 = vmatprep.subr.mxu0 0.0
  %2203 = vmatpush1.msra.mxu0 0.0
  %2204 = vmatprep.subr.mxu0 0.0
  %2205 = vmatpush1.msra.mxu0 0.0
  %2206 = vmatprep.subr.mxu0 0.0
  %2207 = vmatpush1.msra.mxu0 0.0
  %2208 = vmatprep.subr.mxu0 0.0
  %2209 = vmatpush1.msra.mxu0 0.0
  %2210 = vmatprep.subr.mxu0 0.0
  %2211 = vmatpush1.msra.mxu0 0.0
  %2212 = vmatprep.subr.mxu0 0.0
  %2213 = vmatpush1.msra.mxu0 0.0
  %2214 = vmatprep.subr.mxu0 0.0
  %2215 = vmatpush1.msra.mxu0 0.0
  %2216 = vmatprep.subr.mxu0 0.0
  %2217 = vmatpush1.msra.mxu0 0.0
  %2218 = vmatprep.subr.mxu0 0.0
  %2219 = vmatpush1.msra.mxu0 0.0
  %2220 = vmatprep.subr.mxu0 0.0
  %2221 = vmatpush1.msra.mxu0 0.0
  %2222 = vmatprep.subr.mxu0 0.0
  %2223 = vmatpush1.msra.mxu0 0.0
  %2224 = vmatprep.subr.mxu0 0.0
  %2225 = vmatpush1.msra.mxu0 0.0
  %2226 = vmatprep.subr.mxu0 0.0
  %2227 = vmatpush1.msra.mxu0 0.0
  %2228 = vmatprep.subr.mxu0 0.0
  %2229 = vmatpush1.msra.mxu0 0.0
  %2230 = vmatprep.subr.mxu0 0.0
  %2231 = vmatpush1.msra.mxu0 0.0
  %2232 = vmatprep.mubr.f32.mxu0 0.0
  %2233 = vmatmul.mubr.f32.gmra.mrb[0].mxu0 %v2166
  %v2234 = vpop.f32.mrb[0].mxu0
  %v2235 = vadd.f32 0.0, %v2234
  %v2236 = vpop.f32.mrb[0].mxu0
  %2237 = vdwg.mxu0
  %2239 = vrot.lane.b32.xlu0 %v1678, 96
  %v2240 = vpop.permute.xlu0 %2239
  %v2243 = vsel %vm653, %v2158, 0
  %2245 = vmatprep.subr.mxu0 0.0
  %2246 = vmatpush1.msra.mxu0 %v2240
  %2247 = vmatprep.subr.mxu0 0.0
  %2248 = vmatpush1.msra.mxu0 0.0
  %2249 = vmatprep.subr.mxu0 0.0
  %2250 = vmatpush1.msra.mxu0 0.0
  %2251 = vmatprep.subr.mxu0 0.0
  %2252 = vmatpush1.msra.mxu0 0.0
  %2253 = vmatprep.subr.mxu0 0.0
  %2254 = vmatpush1.msra.mxu0 0.0
  %2255 = vmatprep.subr.mxu0 0.0
  %2256 = vmatpush1.msra.mxu0 0.0
  %2257 = vmatprep.subr.mxu0 0.0
  %2258 = vmatpush1.msra.mxu0 0.0
  %2259 = vmatprep.subr.mxu0 0.0
  %2260 = vmatpush1.msra.mxu0 0.0
  %2261 = vmatprep.subr.mxu0 0.0
  %2262 = vmatpush1.msra.mxu0 0.0
  %2263 = vmatprep.subr.mxu0 0.0
  %2264 = vmatpush1.msra.mxu0 0.0
  %2265 = vmatprep.subr.mxu0 0.0
  %2266 = vmatpush1.msra.mxu0 0.0
  %2267 = vmatprep.subr.mxu0 0.0
  %2268 = vmatpush1.msra.mxu0 0.0
  %2269 = vmatprep.subr.mxu0 0.0
  %2270 = vmatpush1.msra.mxu0 0.0
  %2271 = vmatprep.subr.mxu0 0.0
  %2272 = vmatpush1.msra.mxu0 0.0
  %2273 = vmatprep.subr.mxu0 0.0
  %2274 = vmatpush1.msra.mxu0 0.0
  %2275 = vmatprep.subr.mxu0 0.0
  %2276 = vmatpush1.msra.mxu0 0.0
  %2277 = vmatprep.subr.mxu0 0.0
  %2278 = vmatpush1.msra.mxu0 0.0
  %2279 = vmatprep.subr.mxu0 0.0
  %2280 = vmatpush1.msra.mxu0 0.0
  %2281 = vmatprep.subr.mxu0 0.0
  %2282 = vmatpush1.msra.mxu0 0.0
  %2283 = vmatprep.subr.mxu0 0.0
  %2284 = vmatpush1.msra.mxu0 0.0
  %2285 = vmatprep.subr.mxu0 0.0
  %2286 = vmatpush1.msra.mxu0 0.0
  %2287 = vmatprep.subr.mxu0 0.0
  %2288 = vmatpush1.msra.mxu0 0.0
  %2289 = vmatprep.subr.mxu0 0.0
  %2290 = vmatpush1.msra.mxu0 0.0
  %2291 = vmatprep.subr.mxu0 0.0
  %2292 = vmatpush1.msra.mxu0 0.0
  %2293 = vmatprep.subr.mxu0 0.0
  %2294 = vmatpush1.msra.mxu0 0.0
  %2295 = vmatprep.subr.mxu0 0.0
  %2296 = vmatpush1.msra.mxu0 0.0
  %2297 = vmatprep.subr.mxu0 0.0
  %2298 = vmatpush1.msra.mxu0 0.0
  %2299 = vmatprep.subr.mxu0 0.0
  %2300 = vmatpush1.msra.mxu0 0.0
  %2301 = vmatprep.subr.mxu0 0.0
  %2302 = vmatpush1.msra.mxu0 0.0
  %2303 = vmatprep.subr.mxu0 0.0
  %2304 = vmatpush1.msra.mxu0 0.0
  %2305 = vmatprep.subr.mxu0 0.0
  %2306 = vmatpush1.msra.mxu0 0.0
  %2307 = vmatprep.subr.mxu0 0.0
  %2308 = vmatpush1.msra.mxu0 0.0
  %2309 = vmatprep.mubr.f32.mxu0 0.0
  %2310 = vmatmul.mubr.f32.gmra.mrb[0].mxu0 %v2243
  %v2311 = vpop.f32.mrb[0].mxu0
  %v2312 = vadd.f32 0.0, %v2311
  %v2313 = vpop.f32.mrb[0].mxu0
  %2314 = vdwg.mxu0
  %2316 = vrot.lane.b32.xlu0 %v1679, 96
  %v2317 = vpop.permute.xlu0 %2316
  %v2320 = vsel %vm653, %v2159, 0
  %2322 = vmatprep.subr.mxu0 0.0
  %2323 = vmatpush1.msra.mxu0 %v2317
  %2324 = vmatprep.subr.mxu0 0.0
  %2325 = vmatpush1.msra.mxu0 0.0
  %2326 = vmatprep.subr.mxu0 0.0
  %2327 = vmatpush1.msra.mxu0 0.0
  %2328 = vmatprep.subr.mxu0 0.0
  %2329 = vmatpush1.msra.mxu0 0.0
  %2330 = vmatprep.subr.mxu0 0.0
  %2331 = vmatpush1.msra.mxu0 0.0
  %2332 = vmatprep.subr.mxu0 0.0
  %2333 = vmatpush1.msra.mxu0 0.0
  %2334 = vmatprep.subr.mxu0 0.0
  %2335 = vmatpush1.msra.mxu0 0.0
  %2336 = vmatprep.subr.mxu0 0.0
  %2337 = vmatpush1.msra.mxu0 0.0
  %2338 = vmatprep.subr.mxu0 0.0
  %2339 = vmatpush1.msra.mxu0 0.0
  %2340 = vmatprep.subr.mxu0 0.0
  %2341 = vmatpush1.msra.mxu0 0.0
  %2342 = vmatprep.subr.mxu0 0.0
  %2343 = vmatpush1.msra.mxu0 0.0
  %2344 = vmatprep.subr.mxu0 0.0
  %2345 = vmatpush1.msra.mxu0 0.0
  %2346 = vmatprep.subr.mxu0 0.0
  %2347 = vmatpush1.msra.mxu0 0.0
  %2348 = vmatprep.subr.mxu0 0.0
  %2349 = vmatpush1.msra.mxu0 0.0
  %2350 = vmatprep.subr.mxu0 0.0
  %2351 = vmatpush1.msra.mxu0 0.0
  %2352 = vmatprep.subr.mxu0 0.0
  %2353 = vmatpush1.msra.mxu0 0.0
  %2354 = vmatprep.subr.mxu0 0.0
  %2355 = vmatpush1.msra.mxu0 0.0
  %2356 = vmatprep.subr.mxu0 0.0
  %2357 = vmatpush1.msra.mxu0 0.0
  %2358 = vmatprep.subr.mxu0 0.0
  %2359 = vmatpush1.msra.mxu0 0.0
  %2360 = vmatprep.subr.mxu0 0.0
  %2361 = vmatpush1.msra.mxu0 0.0
  %2362 = vmatprep.subr.mxu0 0.0
  %2363 = vmatpush1.msra.mxu0 0.0
  %2364 = vmatprep.subr.mxu0 0.0
  %2365 = vmatpush1.msra.mxu0 0.0
  %2366 = vmatprep.subr.mxu0 0.0
  %2367 = vmatpush1.msra.mxu0 0.0
  %2368 = vmatprep.subr.mxu0 0.0
  %2369 = vmatpush1.msra.mxu0 0.0
  %2370 = vmatprep.subr.mxu0 0.0
  %2371 = vmatpush1.msra.mxu0 0.0
  %2372 = vmatprep.subr.mxu0 0.0
  %2373 = vmatpush1.msra.mxu0 0.0
  %2374 = vmatprep.subr.mxu0 0.0
  %2375 = vmatpush1.msra.mxu0 0.0
  %2376 = vmatprep.subr.mxu0 0.0
  %2377 = vmatpush1.msra.mxu0 0.0
  %2378 = vmatprep.subr.mxu0 0.0
  %2379 = vmatpush1.msra.mxu0 0.0
  %2380 = vmatprep.subr.mxu0 0.0
  %2381 = vmatpush1.msra.mxu0 0.0
  %2382 = vmatprep.subr.mxu0 0.0
  %2383 = vmatpush1.msra.mxu0 0.0
  %2384 = vmatprep.subr.mxu0 0.0
  %2385 = vmatpush1.msra.mxu0 0.0
  %2386 = vmatprep.mubr.f32.mxu0 0.0
  %2387 = vmatmul.mubr.f32.gmra.mrb[0].mxu0 %v2320
  %v2388 = vpop.f32.mrb[0].mxu0
  %v2389 = vadd.f32 0.0, %v2388
  %v2390 = vpop.f32.mrb[0].mxu0
  %2391 = vdwg.mxu0
  %2393 = vrot.lane.b32.xlu0 %v1680, 96
  %v2394 = vpop.permute.xlu0 %2393
  %v2397 = vsel %vm653, %v2160, 0
  %2399 = vmatprep.subr.mxu0 0.0
  %2400 = vmatpush1.msra.mxu0 %v2394
  %2401 = vmatprep.subr.mxu0 0.0
  %2402 = vmatpush1.msra.mxu0 0.0
  %2403 = vmatprep.subr.mxu0 0.0
  %2404 = vmatpush1.msra.mxu0 0.0
  %2405 = vmatprep.subr.mxu0 0.0
  %2406 = vmatpush1.msra.mxu0 0.0
  %2407 = vmatprep.subr.mxu0 0.0
  %2408 = vmatpush1.msra.mxu0 0.0
  %2409 = vmatprep.subr.mxu0 0.0
  %2410 = vmatpush1.msra.mxu0 0.0
  %2411 = vmatprep.subr.mxu0 0.0
  %2412 = vmatpush1.msra.mxu0 0.0
  %2413 = vmatprep.subr.mxu0 0.0
  %2414 = vmatpush1.msra.mxu0 0.0
  %2415 = vmatprep.subr.mxu0 0.0
  %2416 = vmatpush1.msra.mxu0 0.0
  %2417 = vmatprep.subr.mxu0 0.0
  %2418 = vmatpush1.msra.mxu0 0.0
  %2419 = vmatprep.subr.mxu0 0.0
  %2420 = vmatpush1.msra.mxu0 0.0
  %2421 = vmatprep.subr.mxu0 0.0
  %2422 = vmatpush1.msra.mxu0 0.0
  %2423 = vmatprep.subr.mxu0 0.0
  %2424 = vmatpush1.msra.mxu0 0.0
  %2425 = vmatprep.subr.mxu0 0.0
  %2426 = vmatpush1.msra.mxu0 0.0
  %2427 = vmatprep.subr.mxu0 0.0
  %2428 = vmatpush1.msra.mxu0 0.0
  %2429 = vmatprep.subr.mxu0 0.0
  %2430 = vmatpush1.msra.mxu0 0.0
  %2431 = vmatprep.subr.mxu0 0.0
  %2432 = vmatpush1.msra.mxu0 0.0
  %2433 = vmatprep.subr.mxu0 0.0
  %2434 = vmatpush1.msra.mxu0 0.0
  %2435 = vmatprep.subr.mxu0 0.0
  %2436 = vmatpush1.msra.mxu0 0.0
  %2437 = vmatprep.subr.mxu0 0.0
  %2438 = vmatpush1.msra.mxu0 0.0
  %2439 = vmatprep.subr.mxu0 0.0
  %2440 = vmatpush1.msra.mxu0 0.0
  %2441 = vmatprep.subr.mxu0 0.0
  %2442 = vmatpush1.msra.mxu0 0.0
  %2443 = vmatprep.subr.mxu0 0.0
  %2444 = vmatpush1.msra.mxu0 0.0
  %2445 = vmatprep.subr.mxu0 0.0
  %2446 = vmatpush1.msra.mxu0 0.0
  %2447 = vmatprep.subr.mxu0 0.0
  %2448 = vmatpush1.msra.mxu0 0.0
  %2449 = vmatprep.subr.mxu0 0.0
  %2450 = vmatpush1.msra.mxu0 0.0
  %2451 = vmatprep.subr.mxu0 0.0
  %2452 = vmatpush1.msra.mxu0 0.0
  %2453 = vmatprep.subr.mxu0 0.0
  %2454 = vmatpush1.msra.mxu0 0.0
  %2455 = vmatprep.subr.mxu0 0.0
  %2456 = vmatpush1.msra.mxu0 0.0
  %2457 = vmatprep.subr.mxu0 0.0
  %2458 = vmatpush1.msra.mxu0 0.0
  %2459 = vmatprep.subr.mxu0 0.0
  %2460 = vmatpush1.msra.mxu0 0.0
  %2461 = vmatprep.subr.mxu0 0.0
  %2462 = vmatpush1.msra.mxu0 0.0
  %2463 = vmatprep.mubr.f32.mxu0 0.0
  %2464 = vmatmul.mubr.f32.gmra.mrb[0].mxu0 %v2397
  %v2465 = vpop.f32.mrb[0].mxu0
  %v2466 = vadd.f32 0.0, %v2465
  %v2467 = vpop.f32.mrb[0].mxu0
  %2468 = vdwg.mxu0
  %v2469 = vld [vmem:[%s1532] sm:$0xff]
  %v2470 = vld [vmem:[%s1532 + $0x8] sm:$0xff]
  %v2471 = vld [vmem:[%s1532 + $0x10] sm:$0xff]
  %v2472 = vld [vmem:[%s1532 + $0x18] sm:$0xff]
  %v2473 = vlaneseq
  %v2474 = vshrl.u32 %v2473, 7
  %v2475 = vsub.s32 0, %v2474
  %v2476 = vrot.slane %v1536, %v2475
  %v2481 = vrot.slane %v2312, 7
  %v2482 = vsel %vm170, %v2481, %v2235
  %v2483 = vrot.slane %v2389, 6
  %v2484 = vsel %vm173, %v2483, %v2482
  %v2485 = vrot.slane %v2466, 5
  %v2486 = vsel %vm176, %v2485, %v2484
  %2491 = vrot.lane.b32.xlu0 %v2469, 32
  %v2492 = vpop.permute.xlu0 %2491
  %2493 = vrot.lane.b32.xlu0 %v2470, 32
  %v2494 = vpop.permute.xlu0 %2493
  %2495 = vrot.lane.b32.xlu0 %v2471, 32
  %v2496 = vpop.permute.xlu0 %2495
  %2497 = vrot.lane.b32.xlu0 %v2472, 32
  %v2498 = vpop.permute.xlu0 %2497
  %v2503 = vsel %vm47, %v2486, 0
  %2505 = vmatprep.subr.mxu0 0.0
  %2506 = vmatpush1.msra.mxu0 %v2492
  %2507 = vmatprep.subr.mxu0 0.0
  %2508 = vmatpush1.msra.mxu0 %v2494
  %2509 = vmatprep.subr.mxu0 0.0
  %2510 = vmatpush1.msra.mxu0 %v2496
  %2511 = vmatprep.subr.mxu0 0.0
  %2512 = vmatpush1.msra.mxu0 %v2498
  %2513 = vmatprep.subr.mxu0 0.0
  %2514 = vmatpush1.msra.mxu0 0.0
  %2515 = vmatprep.subr.mxu0 0.0
  %2516 = vmatpush1.msra.mxu0 0.0
  %2517 = vmatprep.subr.mxu0 0.0
  %2518 = vmatpush1.msra.mxu0 0.0
  %2519 = vmatprep.subr.mxu0 0.0
  %2520 = vmatpush1.msra.mxu0 0.0
  %2521 = vmatprep.subr.mxu0 0.0
  %2522 = vmatpush1.msra.mxu0 0.0
  %2523 = vmatprep.subr.mxu0 0.0
  %2524 = vmatpush1.msra.mxu0 0.0
  %2525 = vmatprep.subr.mxu0 0.0
  %2526 = vmatpush1.msra.mxu0 0.0
  %2527 = vmatprep.subr.mxu0 0.0
  %2528 = vmatpush1.msra.mxu0 0.0
  %2529 = vmatprep.subr.mxu0 0.0
  %2530 = vmatpush1.msra.mxu0 0.0
  %2531 = vmatprep.subr.mxu0 0.0
  %2532 = vmatpush1.msra.mxu0 0.0
  %2533 = vmatprep.subr.mxu0 0.0
  %2534 = vmatpush1.msra.mxu0 0.0
  %2535 = vmatprep.subr.mxu0 0.0
  %2536 = vmatpush1.msra.mxu0 0.0
  %2537 = vmatprep.subr.mxu0 0.0
  %2538 = vmatpush1.msra.mxu0 0.0
  %2539 = vmatprep.subr.mxu0 0.0
  %2540 = vmatpush1.msra.mxu0 0.0
  %2541 = vmatprep.subr.mxu0 0.0
  %2542 = vmatpush1.msra.mxu0 0.0
  %2543 = vmatprep.subr.mxu0 0.0
  %2544 = vmatpush1.msra.mxu0 0.0
  %2545 = vmatprep.subr.mxu0 0.0
  %2546 = vmatpush1.msra.mxu0 0.0
  %2547 = vmatprep.subr.mxu0 0.0
  %2548 = vmatpush1.msra.mxu0 0.0
  %2549 = vmatprep.subr.mxu0 0.0
  %2550 = vmatpush1.msra.mxu0 0.0
  %2551 = vmatprep.subr.mxu0 0.0
  %2552 = vmatpush1.msra.mxu0 0.0
  %2553 = vmatprep.subr.mxu0 0.0
  %2554 = vmatpush1.msra.mxu0 0.0
  %2555 = vmatprep.subr.mxu0 0.0
  %2556 = vmatpush1.msra.mxu0 0.0
  %2557 = vmatprep.subr.mxu0 0.0
  %2558 = vmatpush1.msra.mxu0 0.0
  %2559 = vmatprep.subr.mxu0 0.0
  %2560 = vmatpush1.msra.mxu0 0.0
  %2561 = vmatprep.subr.mxu0 0.0
  %2562 = vmatpush1.msra.mxu0 0.0
  %2563 = vmatprep.subr.mxu0 0.0
  %2564 = vmatpush1.msra.mxu0 0.0
  %2565 = vmatprep.subr.mxu0 0.0
  %2566 = vmatpush1.msra.mxu0 0.0
  %2567 = vmatprep.subr.mxu0 0.0
  %2568 = vmatpush1.msra.mxu0 0.0
  %2569 = vmatprep.mubr.f32.mxu0 0.0
  %2570 = vmatmul.mubr.f32.gmra.mrb[0].mxu0 %v2503
  %v2571 = vpop.f32.mrb[0].mxu0
  %v2572 = vadd.f32 %v2476, %v2571
  %v2573 = vpop.f32.mrb[0].mxu0
  %2574 = vdwg.mxu0
  %v2576 = vrot.slane %v2572, 1
  %v2577 = vrot.slane %v2572, 2
  %v2578 = vrot.slane %v2572, 3
  %v2583 = vadd.f32 %v1527, %v2572
  %v2584 = vadd.f32 %v1528, %v2576
  %v2585 = vadd.f32 %v1529, %v2577
  %v2586 = vadd.f32 %v1530, %v2578
  %v2591 = vrot.slane %v2584, 7
  %v2592 = vsel %vm170, %v2591, %v2583
  %v2593 = vrot.slane %v2585, 6
  %v2594 = vsel %vm173, %v2593, %v2592
  %v2595 = vrot.slane %v2586, 5
  %v2596 = vsel %vm176, %v2595, %v2594
  %v2598 = vsel %vm1087, %v2596, 0.0
  %2599 = vadd.xlane.f32.xlu0 %v2598
  %v2600 = vpop.xlane.xlu0 %2599
  %v2601 = vmul.f32 %v2600, %v1091
  %v2603 = vrot.slane %v2601, 1
  %v2604 = vrot.slane %v2601, 2
  %v2605 = vrot.slane %v2601, 3
  %v2610 = vsub.f32 %v2583, %v2601
  %v2611 = vsub.f32 %v2584, %v2603
  %v2612 = vsub.f32 %v2585, %v2604
  %v2613 = vsub.f32 %v2586, %v2605
  %v2614 = vmul.f32 %v2610, %v2610
  %v2615 = vmul.f32 %v2611, %v2611
  %v2616 = vmul.f32 %v2612, %v2612
  %v2617 = vmul.f32 %v2613, %v2613
  %v2622 = vrot.slane %v2615, 7
  %v2623 = vsel %vm170, %v2622, %v2614
  %v2624 = vrot.slane %v2616, 6
  %v2625 = vsel %vm173, %v2624, %v2623
  %v2626 = vrot.slane %v2617, 5
  %v2627 = vsel %vm176, %v2626, %v2625
  %v2629 = vsel %vm1087, %v2627, 0.0
  %2630 = vadd.xlane.f32.xlu0 %v2629
  %v2631 = vpop.xlane.xlu0 %2630
  %v2632 = vmul.f32 %v2631, %v1091
  %v2633 = vadd.f32 %v2632, 1e-12
  %v2634 = vrsqrt.pop %v2633
  %v2636 = vrot.slane %v2634, 1
  %v2637 = vrot.slane %v2634, 2
  %v2638 = vrot.slane %v2634, 3
  %v2643 = vmul.f32 %v2610, %v2634
  %v2644 = vmul.f32 %v2611, %v2636
  %v2645 = vmul.f32 %v2612, %v2637
  %v2646 = vmul.f32 %v2613, %v2638
  %v2647 = vlaneseq
  %v2648 = vshrl.u32 %v2647, 7
  %v2649 = vsub.s32 0, %v2648
  %v2650 = vrot.slane %v1537, %v2649
  %v2651 = vmul.f32 %v2643, %v2650
  %v2652 = vmul.f32 %v2644, %v2650
  %v2653 = vmul.f32 %v2645, %v2650
  %v2654 = vmul.f32 %v2646, %v2650
  %v2655 = vlaneseq
  %v2656 = vshrl.u32 %v2655, 7
  %v2657 = vsub.s32 0, %v2656
  %v2658 = vrot.slane %v1538, %v2657
  %v2659 = vadd.f32 %v2651, %v2658
  %v2660 = vadd.f32 %v2652, %v2658
  %v2661 = vadd.f32 %v2653, %v2658
  %v2662 = vadd.f32 %v2654, %v2658
  %v2663 = vld [vmem:[%s1532 + $0x20] sm:$0xff]
  %v2664 = vld [vmem:[%s1532 + $0x28] sm:$0xff]
  %v2665 = vld [vmem:[%s1532 + $0x30] sm:$0xff]
  %v2666 = vld [vmem:[%s1532 + $0x38] sm:$0xff]
  %v2667 = vlaneseq
  %v2668 = vshrl.u32 %v2667, 7
  %v2669 = vsub.s32 0, %v2668
  %v2670 = vrot.slane %v1539, %v2669
  %v2675 = vrot.slane %v2660, 7
  %v2676 = vsel %vm170, %v2675, %v2659
  %v2677 = vrot.slane %v2661, 6
  %v2678 = vsel %vm173, %v2677, %v2676
  %v2679 = vrot.slane %v2662, 5
  %v2680 = vsel %vm176, %v2679, %v2678
  %v2681 = vsel %vm47, %v2680, 0
  %2683 = vmatprep.subr.mxu0 0.0
  %2684 = vmatpush1.msra.mxu0 %v2663
  %2685 = vmatprep.subr.mxu0 0.0
  %2686 = vmatpush1.msra.mxu0 %v2664
  %2687 = vmatprep.subr.mxu0 0.0
  %2688 = vmatpush1.msra.mxu0 %v2665
  %2689 = vmatprep.subr.mxu0 0.0
  %2690 = vmatpush1.msra.mxu0 %v2666
  %2691 = vmatprep.subr.mxu0 0.0
  %2692 = vmatpush1.msra.mxu0 0.0
  %2693 = vmatprep.subr.mxu0 0.0
  %2694 = vmatpush1.msra.mxu0 0.0
  %2695 = vmatprep.subr.mxu0 0.0
  %2696 = vmatpush1.msra.mxu0 0.0
  %2697 = vmatprep.subr.mxu0 0.0
  %2698 = vmatpush1.msra.mxu0 0.0
  %2699 = vmatprep.subr.mxu0 0.0
  %2700 = vmatpush1.msra.mxu0 0.0
  %2701 = vmatprep.subr.mxu0 0.0
  %2702 = vmatpush1.msra.mxu0 0.0
  %2703 = vmatprep.subr.mxu0 0.0
  %2704 = vmatpush1.msra.mxu0 0.0
  %2705 = vmatprep.subr.mxu0 0.0
  %2706 = vmatpush1.msra.mxu0 0.0
  %2707 = vmatprep.subr.mxu0 0.0
  %2708 = vmatpush1.msra.mxu0 0.0
  %2709 = vmatprep.subr.mxu0 0.0
  %2710 = vmatpush1.msra.mxu0 0.0
  %2711 = vmatprep.subr.mxu0 0.0
  %2712 = vmatpush1.msra.mxu0 0.0
  %2713 = vmatprep.subr.mxu0 0.0
  %2714 = vmatpush1.msra.mxu0 0.0
  %2715 = vmatprep.subr.mxu0 0.0
  %2716 = vmatpush1.msra.mxu0 0.0
  %2717 = vmatprep.subr.mxu0 0.0
  %2718 = vmatpush1.msra.mxu0 0.0
  %2719 = vmatprep.subr.mxu0 0.0
  %2720 = vmatpush1.msra.mxu0 0.0
  %2721 = vmatprep.subr.mxu0 0.0
  %2722 = vmatpush1.msra.mxu0 0.0
  %2723 = vmatprep.subr.mxu0 0.0
  %2724 = vmatpush1.msra.mxu0 0.0
  %2725 = vmatprep.subr.mxu0 0.0
  %2726 = vmatpush1.msra.mxu0 0.0
  %2727 = vmatprep.subr.mxu0 0.0
  %2728 = vmatpush1.msra.mxu0 0.0
  %2729 = vmatprep.subr.mxu0 0.0
  %2730 = vmatpush1.msra.mxu0 0.0
  %2731 = vmatprep.subr.mxu0 0.0
  %2732 = vmatpush1.msra.mxu0 0.0
  %2733 = vmatprep.subr.mxu0 0.0
  %2734 = vmatpush1.msra.mxu0 0.0
  %2735 = vmatprep.subr.mxu0 0.0
  %2736 = vmatpush1.msra.mxu0 0.0
  %2737 = vmatprep.subr.mxu0 0.0
  %2738 = vmatpush1.msra.mxu0 0.0
  %2739 = vmatprep.subr.mxu0 0.0
  %2740 = vmatpush1.msra.mxu0 0.0
  %2741 = vmatprep.subr.mxu0 0.0
  %2742 = vmatpush1.msra.mxu0 0.0
  %2743 = vmatprep.subr.mxu0 0.0
  %2744 = vmatpush1.msra.mxu0 0.0
  %2745 = vmatprep.subr.mxu0 0.0
  %2746 = vmatpush1.msra.mxu0 0.0
  %2747 = vmatprep.mubr.f32.mxu0 0.0
  %2748 = vmatmul.mubr.f32.gmra.mrb[0].mxu0 %v2681
  %v2749 = vpop.f32.mrb[0].mxu0
  %v2750 = vadd.f32 %v2670, %v2749
  %v2751 = vpop.f32.mrb[0].mxu0
  %2752 = vdwg.mxu0
  %v2753 = vmul.f32 %v2750, 0.5
  %v2754 = vmul.f32 %v2750, 0.044715
  %v2755 = vmul.f32 %v2754, %v2750
  %v2756 = vmul.f32 %v2755, %v2750
  %v2757 = vadd.f32 %v2750, %v2756
  %v2758 = vmul.f32 %v2757, 0.7978845
  %v2759 = vtanh.pop %v2758
  %v2760 = vadd.f32 %v2759, 1.0
  %v2761 = vmul.f32 %v2753, %v2760
  %v2762 = vld [vmem:[%s1532 + $0x40] sm:$0xff]
  %v2763 = vld [vmem:[%s1532 + $0x48] sm:$0xff]
  %v2764 = vld [vmem:[%s1532 + $0x50] sm:$0xff]
  %v2765 = vld [vmem:[%s1532 + $0x58] sm:$0xff]
  %v2766 = vld [vmem:[%s1532 + $0x60] sm:$0xff]
  %v2767 = vld [vmem:[%s1532 + $0x68] sm:$0xff]
  %v2768 = vld [vmem:[%s1532 + $0x70] sm:$0xff]
  %v2769 = vld [vmem:[%s1532 + $0x78] sm:$0xff]
  %v2770 = vlaneseq
  %v2771 = vshrl.u32 %v2770, 7
  %v2772 = vsub.s32 0, %v2771
  %v2773 = vrot.slane %v1540, %v2772
  %v2775 = vsel %vm1265, %v2761, 0
  %2777 = vmatprep.subr.mxu0 0.0
  %2778 = vmatpush1.msra.mxu0 %v2762
  %2779 = vmatprep.subr.mxu0 0.0
  %2780 = vmatpush1.msra.mxu0 %v2763
  %2781 = vmatprep.subr.mxu0 0.0
  %2782 = vmatpush1.msra.mxu0 %v2764
  %2783 = vmatprep.subr.mxu0 0.0
  %2784 = vmatpush1.msra.mxu0 %v2765
  %2785 = vmatprep.subr.mxu0 0.0
  %2786 = vmatpush1.msra.mxu0 %v2766
  %2787 = vmatprep.subr.mxu0 0.0
  %2788 = vmatpush1.msra.mxu0 %v2767
  %2789 = vmatprep.subr.mxu0 0.0
  %2790 = vmatpush1.msra.mxu0 %v2768
  %2791 = vmatprep.subr.mxu0 0.0
  %2792 = vmatpush1.msra.mxu0 %v2769
  %2793 = vmatprep.subr.mxu0 0.0
  %2794 = vmatpush1.msra.mxu0 0.0
  %2795 = vmatprep.subr.mxu0 0.0
  %2796 = vmatpush1.msra.mxu0 0.0
  %2797 = vmatprep.subr.mxu0 0.0
  %2798 = vmatpush1.msra.mxu0 0.0
  %2799 = vmatprep.subr.mxu0 0.0
  %2800 = vmatpush1.msra.mxu0 0.0
  %2801 = vmatprep.subr.mxu0 0.0
  %2802 = vmatpush1.msra.mxu0 0.0
  %2803 = vmatprep.subr.mxu0 0.0
  %2804 = vmatpush1.msra.mxu0 0.0
  %2805 = vmatprep.subr.mxu0 0.0
  %2806 = vmatpush1.msra.mxu0 0.0
  %2807 = vmatprep.subr.mxu0 0.0
  %2808 = vmatpush1.msra.mxu0 0.0
  %2809 = vmatprep.subr.mxu0 0.0
  %2810 = vmatpush1.msra.mxu0 0.0
  %2811 = vmatprep.subr.mxu0 0.0
  %2812 = vmatpush1.msra.mxu0 0.0
  %2813 = vmatprep.subr.mxu0 0.0
  %2814 = vmatpush1.msra.mxu0 0.0
  %2815 = vmatprep.subr.mxu0 0.0
  %2816 = vmatpush1.msra.mxu0 0.0
  %2817 = vmatprep.subr.mxu0 0.0
  %2818 = vmatpush1.msra.mxu0 0.0
  %2819 = vmatprep.subr.mxu0 0.0
  %2820 = vmatpush1.msra.mxu0 0.0
  %2821 = vmatprep.subr.mxu0 0.0
  %2822 = vmatpush1.msra.mxu0 0.0
  %2823 = vmatprep.subr.mxu0 0.0
  %2824 = vmatpush1.msra.mxu0 0.0
  %2825 = vmatprep.subr.mxu0 0.0
  %2826 = vmatpush1.msra.mxu0 0.0
  %2827 = vmatprep.subr.mxu0 0.0
  %2828 = vmatpush1.msra.mxu0 0.0
  %2829 = vmatprep.subr.mxu0 0.0
  %2830 = vmatpush1.msra.mxu0 0.0
  %2831 = vmatprep.subr.mxu0 0.0
  %2832 = vmatpush1.msra.mxu0 0.0
  %2833 = vmatprep.subr.mxu0 0.0
  %2834 = vmatpush1.msra.mxu0 0.0
  %2835 = vmatprep.subr.mxu0 0.0
  %2836 = vmatpush1.msra.mxu0 0.0
  %2837 = vmatprep.subr.mxu0 0.0
  %2838 = vmatpush1.msra.mxu0 0.0
  %2839 = vmatprep.subr.mxu0 0.0
  %2840 = vmatpush1.msra.mxu0 0.0
  %2841 = vmatprep.mubr.f32.mxu0 0.0
  %2842 = vmatmul.mubr.f32.gmra.mrb[0].mxu0 %v2775
  %v2843 = vpop.f32.mrb[0].mxu0
  %v2844 = vadd.f32 %v2773, %v2843
  %v2845 = vpop.f32.mrb[0].mxu0
  %2846 = vdwg.mxu0
  %v2848 = vrot.slane %v2844, 1
  %v2849 = vrot.slane %v2844, 2
  %v2850 = vrot.slane %v2844, 3
  %v2855 = vadd.f32 %v2659, %v2844
  %v2856 = vadd.f32 %v2660, %v2848
  %v2857 = vadd.f32 %v2661, %v2849
  %v2858 = vadd.f32 %v2662, %v2850
  %v2863 = vrot.slane %v2856, 7
  %v2864 = vsel %vm170, %v2863, %v2855
  %v2865 = vrot.slane %v2857, 6
  %v2866 = vsel %vm173, %v2865, %v2864
  %v2867 = vrot.slane %v2858, 5
  %v2868 = vsel %vm176, %v2867, %v2866
  %v2870 = vsel %vm1087, %v2868, 0.0
  %2871 = vadd.xlane.f32.xlu0 %v2870
  %v2872 = vpop.xlane.xlu0 %2871
  %v2873 = vmul.f32 %v2872, %v1091
  %v2875 = vrot.slane %v2873, 1
  %v2876 = vrot.slane %v2873, 2
  %v2877 = vrot.slane %v2873, 3
  %v2882 = vsub.f32 %v2855, %v2873
  %v2883 = vsub.f32 %v2856, %v2875
  %v2884 = vsub.f32 %v2857, %v2876
  %v2885 = vsub.f32 %v2858, %v2877
  %v2886 = vmul.f32 %v2882, %v2882
  %v2887 = vmul.f32 %v2883, %v2883
  %v2888 = vmul.f32 %v2884, %v2884
  %v2889 = vmul.f32 %v2885, %v2885
  %v2894 = vrot.slane %v2887, 7
  %v2895 = vsel %vm170, %v2894, %v2886
  %v2896 = vrot.slane %v2888, 6
  %v2897 = vsel %vm173, %v2896, %v2895
  %v2898 = vrot.slane %v2889, 5
  %v2899 = vsel %vm176, %v2898, %v2897
  %v2901 = vsel %vm1087, %v2899, 0.0
  %2902 = vadd.xlane.f32.xlu0 %v2901
  %v2903 = vpop.xlane.xlu0 %2902
  %v2904 = vmul.f32 %v2903, %v1091
  %v2905 = vadd.f32 %v2904, 1e-12
  %v2906 = vrsqrt.pop %v2905
  %v2908 = vrot.slane %v2906, 1
  %v2909 = vrot.slane %v2906, 2
  %v2910 = vrot.slane %v2906, 3
  %v2915 = vmul.f32 %v2882, %v2906
  %v2916 = vmul.f32 %v2883, %v2908
  %v2917 = vmul.f32 %v2884, %v2909
  %v2918 = vmul.f32 %v2885, %v2910
  %v2919 = vlaneseq
  %v2920 = vshrl.u32 %v2919, 7
  %v2921 = vsub.s32 0, %v2920
  %v2922 = vrot.slane %v1541, %v2921
  %v2923 = vmul.f32 %v2915, %v2922
  %v2924 = vmul.f32 %v2916, %v2922
  %v2925 = vmul.f32 %v2917, %v2922
  %v2926 = vmul.f32 %v2918, %v2922
  %v2927 = vlaneseq
  %v2928 = vshrl.u32 %v2927, 7
  %v2929 = vsub.s32 0, %v2928
  %v2930 = vrot.slane %v1542, %v2929
  %v2931 = vadd.f32 %v2923, %v2930
  %v2932 = vadd.f32 %v2924, %v2930
  %v2933 = vadd.f32 %v2925, %v2930
  %v2934 = vadd.f32 %v2926, %v2930
  %v2935 = vld [vmem:[%s1532 + $0x80] sm:$0xff]
  %v2936 = vld [vmem:[%s1532 + $0x88] sm:$0xff]
  %v2937 = vld [vmem:[%s1532 + $0x90] sm:$0xff]
  %v2938 = vld [vmem:[%s1532 + $0x98] sm:$0xff]
  %v2943 = vrot.slane %v2932, 7
  %v2944 = vsel %vm170, %v2943, %v2931
  %v2945 = vrot.slane %v2933, 6
  %v2946 = vsel %vm173, %v2945, %v2944
  %v2947 = vrot.slane %v2934, 5
  %v2948 = vsel %vm176, %v2947, %v2946
  %v2949 = vsel %vm47, %v2948, 0
  %2951 = vmatprep.subr.mxu0 0.0
  %2952 = vmatpush1.msra.mxu0 %v2935
  %2953 = vmatprep.subr.mxu0 0.0
  %2954 = vmatpush1.msra.mxu0 %v2936
  %2955 = vmatprep.subr.mxu0 0.0
  %2956 = vmatpush1.msra.mxu0 %v2937
  %2957 = vmatprep.subr.mxu0 0.0
  %2958 = vmatpush1.msra.mxu0 %v2938
  %2959 = vmatprep.subr.mxu0 0.0
  %2960 = vmatpush1.msra.mxu0 0.0
  %2961 = vmatprep.subr.mxu0 0.0
  %2962 = vmatpush1.msra.mxu0 0.0
  %2963 = vmatprep.subr.mxu0 0.0
  %2964 = vmatpush1.msra.mxu0 0.0
  %2965 = vmatprep.subr.mxu0 0.0
  %2966 = vmatpush1.msra.mxu0 0.0
  %2967 = vmatprep.subr.mxu0 0.0
  %2968 = vmatpush1.msra.mxu0 0.0
  %2969 = vmatprep.subr.mxu0 0.0
  %2970 = vmatpush1.msra.mxu0 0.0
  %2971 = vmatprep.subr.mxu0 0.0
  %2972 = vmatpush1.msra.mxu0 0.0
  %2973 = vmatprep.subr.mxu0 0.0
  %2974 = vmatpush1.msra.mxu0 0.0
  %2975 = vmatprep.subr.mxu0 0.0
  %2976 = vmatpush1.msra.mxu0 0.0
  %2977 = vmatprep.subr.mxu0 0.0
  %2978 = vmatpush1.msra.mxu0 0.0
  %2979 = vmatprep.subr.mxu0 0.0
  %2980 = vmatpush1.msra.mxu0 0.0
  %2981 = vmatprep.subr.mxu0 0.0
  %2982 = vmatpush1.msra.mxu0 0.0
  %2983 = vmatprep.subr.mxu0 0.0
  %2984 = vmatpush1.msra.mxu0 0.0
  %2985 = vmatprep.subr.mxu0 0.0
  %2986 = vmatpush1.msra.mxu0 0.0
  %2987 = vmatprep.subr.mxu0 0.0
  %2988 = vmatpush1.msra.mxu0 0.0
  %2989 = vmatprep.subr.mxu0 0.0
  %2990 = vmatpush1.msra.mxu0 0.0
  %2991 = vmatprep.subr.mxu0 0.0
  %2992 = vmatpush1.msra.mxu0 0.0
  %2993 = vmatprep.subr.mxu0 0.0
  %2994 = vmatpush1.msra.mxu0 0.0
  %2995 = vmatprep.subr.mxu0 0.0
  %2996 = vmatpush1.msra.mxu0 0.0
  %2997 = vmatprep.subr.mxu0 0.0
  %2998 = vmatpush1.msra.mxu0 0.0
  %2999 = vmatprep.subr.mxu0 0.0
  %3000 = vmatpush1.msra.mxu0 0.0
  %3001 = vmatprep.subr.mxu0 0.0
  %3002 = vmatpush1.msra.mxu0 0.0
  %3003 = vmatprep.subr.mxu0 0.0
  %3004 = vmatpush1.msra.mxu0 0.0
  %3005 = vmatprep.subr.mxu0 0.0
  %3006 = vmatpush1.msra.mxu0 0.0
  %3007 = vmatprep.subr.mxu0 0.0
  %3008 = vmatpush1.msra.mxu0 0.0
  %3009 = vmatprep.subr.mxu0 0.0
  %3010 = vmatpush1.msra.mxu0 0.0
  %3011 = vmatprep.subr.mxu0 0.0
  %3012 = vmatpush1.msra.mxu0 0.0
  %3013 = vmatprep.subr.mxu0 0.0
  %3014 = vmatpush1.msra.mxu0 0.0
  %3015 = vmatprep.mubr.f32.mxu0 0.0
  %3016 = vmatmul.mubr.f32.gmra.mrb[0].mxu0 %v2949
  %v3017 = vpop.f32.mrb[0].mxu0
  %v3018 = vadd.f32 0.0, %v3017
  %v3019 = vpop.f32.mrb[0].mxu0
  %3020 = vdwg.mxu0
  %v3021 = vld [vmem:[%s1532 + $0xa0] sm:$0xf]
  %v3022 = vmul.f32 %v3018, %v3021
  %v3023 = vsel %vm1515, %v3022, 0.0
  %v3024 = vrot.slane %v3023, 4
  %v3025 = vadd.f32 %v3023, %v3024
  %v3026 = vrot.slane %v3025, 2
  %v3027 = vadd.f32 %v3025, %v3026
  %v3028 = vrot.slane %v3027, 1
  %v3029 = vadd.f32 %v3027, %v3028
  %v3030 = vadd.f32 %v3029, %v1543
  %v3031 = vtanh.pop %v3030
  %3032 = vst [vmem:[%s2 + $0x1] sm:$0x1] %v3031
  // Predicated region
  $region10: #{bi_encoder_forward.1} parent=0 // pred_check
    _
  $region11: #{bi_encoder_forward.1} parent=0 // pred_check_branch
    %3034 = sbr.rel (0) target = $region13
  $region12: #{bi_encoder_forward.1} parent=0 // pred_region
    _
  $region13: #{bi_encoder_forward.1} parent=0 // pred_fallthru
    _
  // Predicated region
  $region14: #{bi_encoder_forward.1} parent=0 // pred_check
    _
  $region15: #{bi_encoder_forward.1} parent=0 // pred_check_branch
    %3036 = sbr.rel (0) target = $region17
  $region16: #{bi_encoder_forward.1} parent=0 // pred_region
    _
  $region17: #{bi_encoder_forward.1} parent=0 // pred_fallthru
    _

</llo_original>
